<compile_context>
chip_gen: v7x
topology: tpu7x:2x2x1
jax: 0.10.0
libtpu: 0.0.40
codegen_flags: <defaults>
</compile_context>

<pallas_src>
import functools

import jax
import jax.numpy as jnp
from jax.experimental import pallas as pl
from jax.experimental.pallas import tpu as pltpu

EPS = 1e-5  # nn.BatchNorm2d default eps


# ---------------------------------------------------------------------------
# Kernel 1/2: (optional folded-BN + SiLU of the previous stage) -> 3x3 conv as
# 3 accumulating MXU matmuls (kh taps; kw+Cin folded into K by a banded weight)
# -> pre-BN conv output + per-block sum / sum-of-squares statistics.
# Layouts: x_ref (G, H+2, (W+2)*Cin), w_ref (3, (W+2)*Cin, W*Cout),
#          y_ref (G, H, W*Cout), psum/psumsq (1, 1, W*Cout).
# ---------------------------------------------------------------------------
def _conv_stats_kernel(*refs, pre_act):
    if pre_act:
        x_ref, s_ref, t_ref, m_ref, w_ref, y_ref, psum_ref, psumsq_ref = refs
    else:
        x_ref, w_ref, y_ref, psum_ref, psumsq_ref = refs

    g, hp2, _ = x_ref.shape
    h = hp2 - 2
    wco = y_ref.shape[-1]
    mm_dtype = w_ref.dtype

    x = x_ref[...]
    if pre_act:
        # folded BatchNorm (scale/shift) + SiLU of the previous stage, then the
        # interior mask re-zeroes the spatial padding (silu(bn(0)) != 0).
        z = x.astype(jnp.float32) * s_ref[...] + t_ref[...]
        x = ((z * jax.nn.sigmoid(z)) * m_ref[...]).astype(mm_dtype)

    dot_kwargs = dict(preferred_element_type=jnp.float32)
    if mm_dtype == jnp.float32:
        dot_kwargs["precision"] = jax.lax.Precision.HIGHEST

    acc = jnp.zeros((g * h, wco), jnp.float32)
    for kh in range(3):  # kh taps; kw and Cin live in the matmul K dimension
        lhs = x[:, kh:kh + h, :].reshape(g * h, -1)
        acc = acc + jnp.dot(lhs.astype(mm_dtype), w_ref[kh], **dot_kwargs)

    y_ref[...] = acc.reshape(g, h, wco).astype(y_ref.dtype)
    # per-block partial statistics (single pass); parallel-safe: each grid step
    # writes its own slot, folded on the host.
    psum_ref[...] = jnp.sum(acc, axis=0).reshape(1, 1, wco)
    psumsq_ref[...] = jnp.sum(acc * acc, axis=0).reshape(1, 1, wco)


# ---------------------------------------------------------------------------
# Kernel 3: out = silu(y1*s1 + t1) + silu(y2*s2 + t2)   (x1 + h, elementwise)
# ---------------------------------------------------------------------------
def _residual_bn_silu_kernel(y1_ref, y2_ref, s1_ref, t1_ref, s2_ref, t2_ref,
                             o_ref):
    z1 = y1_ref[...].astype(jnp.float32) * s1_ref[...] + t1_ref[...]
    x1 = z1 * jax.nn.sigmoid(z1)
    z2 = y2_ref[...].astype(jnp.float32) * s2_ref[...] + t2_ref[...]
    hh = z2 * jax.nn.sigmoid(z2)
    o_ref[...] = (x1 + hh).astype(o_ref.dtype)


# ---------------------------------------------------------------------------
# pallas_call wrappers
# ---------------------------------------------------------------------------
def _conv_stage(x_flat, w_bands, s_flat, t_flat, mask_flat, *, group, y_dtype):
    n_img, hp2, lcin = x_flat.shape
    h = hp2 - 2
    _, k, wco = w_bands.shape
    assert lcin == k and n_img % group == 0
    n_blk = n_img // group
    pre_act = s_flat is not None

    in_arrays = [x_flat]
    in_specs = [pl.BlockSpec((group, hp2, lcin), lambda i: (i, 0, 0))]
    if pre_act:
        in_arrays += [s_flat, t_flat, mask_flat]
        in_specs += [pl.BlockSpec((1, lcin), lambda i: (0, 0)),
                     pl.BlockSpec((1, lcin), lambda i: (0, 0)),
                     pl.BlockSpec((1, hp2, lcin), lambda i: (0, 0, 0))]
    in_arrays.append(w_bands)
    in_specs.append(pl.BlockSpec((3, k, wco), lambda i: (0, 0, 0)))

    return pl.pallas_call(
        functools.partial(_conv_stats_kernel, pre_act=pre_act),
        out_shape=(
            jax.ShapeDtypeStruct((n_img, h, wco), y_dtype),       # pre-BN conv out
            jax.ShapeDtypeStruct((n_blk, 1, wco), jnp.float32),   # partial sums
            jax.ShapeDtypeStruct((n_blk, 1, wco), jnp.float32),   # partial sumsq
        ),
        grid=(n_blk,),
        in_specs=in_specs,
        out_specs=(
            pl.BlockSpec((group, h, wco), lambda i: (i, 0, 0)),
            pl.BlockSpec((1, 1, wco), lambda i: (i, 0, 0)),
            pl.BlockSpec((1, 1, wco), lambda i: (i, 0, 0)),
        ),
        compiler_params=pltpu.CompilerParams(
            # TODO(synk): pltpu.CORE_PARALLEL on v7x (2 TensorCores per chip).
            dimension_semantics=("parallel",)),
    )(*in_arrays)


def _finalize_stage(y1, y2, s1f, t1f, s2f, t2f, *, group):
    n_img, h, wco = y1.shape
    n_blk = n_img // group
    blk = pl.BlockSpec((group, h, wco), lambda i: (i, 0, 0))
    vec = pl.BlockSpec((1, wco), lambda i: (0, 0))
    return pl.pallas_call(
        _residual_bn_silu_kernel,
        out_shape=jax.ShapeDtypeStruct((n_img, h, wco), jnp.float32),
        grid=(n_blk,),
        in_specs=[blk, blk, vec, vec, vec, vec],
        out_specs=blk,
        compiler_params=pltpu.CompilerParams(dimension_semantics=("parallel",)),
    )(y1, y2, s1f, t1f, s2f, t2f)


# ---------------------------------------------------------------------------
# Host-side helpers
# ---------------------------------------------------------------------------
def _toeplitz_weight(w_oihw, width, dtype):
    """OIHW 3x3 weight -> (3, (W+2)*Cin, W*Cout) banded matmul weights (per kh).

    B[kh, (j+kw)*Cin + ci, j*Cout + co] = w[co, ci, kh, kw]: the kw taps and the
    input channels are folded into K; (W, Cout) is packed into the lane dim.
    """
    w = jnp.transpose(w_oihw, (2, 3, 1, 0)).astype(jnp.float32)   # (3,3,Cin,Cout)
    cin, cout = w.shape[2], w.shape[3]
    wp2 = width + 2
    p = jnp.arange(wp2).reshape(1, wp2, 1)
    j = jnp.arange(width).reshape(1, 1, width)
    kw = jnp.arange(3).reshape(3, 1, 1)
    band = (p == j + kw).astype(jnp.float32)                      # (3, W+2, W)
    b = jnp.einsum("kpj,hkio->hpijo", band, w)                    # (3,W+2,Cin,W,Cout)
    return b.reshape(3, wp2 * cin, width * cout).astype(dtype)


def _fold_bn(psum, psumsq, count, gamma, beta, width):
    """Partial sums -> folded BN constants  s = g*rsqrt(var+eps), t = b - mean*s."""
    cout = gamma.shape[0]
    total = psum.sum(axis=(0, 1)).reshape(width, cout).sum(axis=0)
    total_sq = psumsq.sum(axis=(0, 1)).reshape(width, cout).sum(axis=0)
    mean = total / count
    # TODO(synk): single-pass sum/sumsq can cancel for very large N*H*W or
    # large activation means; switch to shifted/Welford per-block stats at scale.
    var = jnp.maximum(total_sq / count - mean * mean, 0.0)        # biased var
    scale = gamma.astype(jnp.float32) * jax.lax.rsqrt(var + EPS)
    shift = beta.astype(jnp.float32) - mean * scale
    return scale.reshape(1, cout), shift.reshape(1, cout)


def _pick_group(n_images, per_image_bytes, budget=12 * 1024 * 1024):
    """Largest divisor of n_images whose per-step VMEM estimate fits the budget."""
    g = int(max(1, min(n_images, budget // max(per_image_bytes, 1))))
    while n_images % g:
        g -= 1
    return g


def double_conv(x, params, *, mm_dtype=jnp.bfloat16):
    """x: (N, C_in, H, W) f32 -> (N, C_out, H, W) f32 (PyTorch DouboleConv.forward)."""
    n, cin, h, w = x.shape
    cout = params["w1"].shape[0]
    hp2, wp2 = h + 2, w + 2
    count = n * h * w
    y_dtype = mm_dtype
    isz = jnp.dtype(mm_dtype).itemsize

    # one layout change at the boundary: NCHW -> (N, H, W*Cin) lane-packed rows,
    # zero spatial padding done once in XLA (pad of the lane dim = W padding).
    x_rows = jnp.transpose(x, (0, 2, 3, 1)).reshape(n, h, w * cin)
    xp = jnp.pad(x_rows, ((0, 0), (1, 1), (cin, cin))).astype(mm_dtype)

    # banded matmul weights.  NOTE: conv biases b1/b2 are intentionally dropped;
    # training-mode BatchNorm subtracts the batch mean, which cancels them.
    w1b = _toeplitz_weight(params["w1"], w, mm_dtype)   # (3, (W+2)*Cin,  W*Cout)
    w2b = _toeplitz_weight(params["w2"], w, mm_dtype)   # (3, (W+2)*Cout, W*Cout)

    # interior mask for stage 2 (zero-padded border must stay 0 AFTER bn+silu)
    mask = jnp.zeros((1, hp2, wp2, 1), jnp.float32).at[:, 1:-1, 1:-1, :].set(1.0)
    mask = jnp.broadcast_to(mask, (1, hp2, wp2, cout)).reshape(1, hp2, wp2 * cout)

    # ---- stage 1: y1 = conv1(x) (pre-BN) + per-block partial stats
    per_img1 = 2 * (hp2 * wp2 * cin * isz + h * w * cout * isz) + h * w * cout * 4
    g1 = _pick_group(n, per_img1)
    y1, ps1, pss1 = _conv_stage(xp, w1b, None, None, None, group=g1, y_dtype=y_dtype)
    s1, t1 = _fold_bn(ps1, pss1, count, params["g1"], params["beta1"], w)

    # ---- stage 2: y2 = conv2(silu(bn1(y1))) (pre-BN) + stats.
    # x1 is never round-tripped through HBM: it is recomputed in-kernel from y1.
    y1p = jnp.pad(y1, ((0, 0), (1, 1), (cout, cout)))            # zero borders
    per_img2 = (2 * (hp2 * wp2 * cout * isz + h * w * cout * isz)
                + h * w * cout * 4 + hp2 * wp2 * cout * 4)
    g2 = _pick_group(n, per_img2)
    y2, ps2, pss2 = _conv_stage(y1p, w2b, jnp.tile(s1, (1, wp2)),
                                jnp.tile(t1, (1, wp2)), mask,
                                group=g2, y_dtype=y_dtype)
    s2, t2 = _fold_bn(ps2, pss2, count, params["g2"], params["beta2"], w)

    # ---- finalize: out = silu(bn1(y1)) + silu(bn2(y2))
    gf = _pick_group(n, 3 * h * w * cout * 4 * 2)
    out = _finalize_stage(y1, y2,
                          jnp.tile(s1, (1, w)), jnp.tile(t1, (1, w)),
                          jnp.tile(s2, (1, w)), jnp.tile(t2, (1, w)),
                          group=gf)

    out = out.reshape(n, h, w, cout)
    return jnp.transpose(out, (0, 3, 1, 2))


# ---------------------------------------------------------------------------
# Pure-JAX reference (includes conv biases; full f32 precision).
# ---------------------------------------------------------------------------
def _ref_forward(x, params):
    def conv(inp, wgt, b):
        y = jax.lax.conv_general_dilated(
            inp, wgt, (1, 1), ((1, 1), (1, 1)),
            dimension_numbers=("NCHW", "OIHW", "NCHW"),
            precision=jax.lax.Precision.HIGHEST)
        return y + b[None, :, None, None]

    def bn_silu(y, g, bt):
        mean = y.mean(axis=(0, 2, 3), keepdims=True)
        var = ((y - mean) ** 2).mean(axis=(0, 2, 3), keepdims=True)
        z = (y - mean) * jax.lax.rsqrt(var + EPS) * g[None, :, None, None] \
            + bt[None, :, None, None]
        return z * jax.nn.sigmoid(z)

    x1 = bn_silu(conv(x, params["w1"], params["b1"]), params["g1"], params["beta1"])
    hh = bn_silu(conv(x1, params["w2"], params["b2"]), params["g2"], params["beta2"])
    return x1 + hh


if __name__ == "__main__":
    # Small shapes consistent with the module: input_dim=4, output_dim=8
    N, C_in, C_out, H, W = 2, 4, 8, 16, 16

    key = jax.random.PRNGKey(0)
    k_x, k_w1, k_b1, k_w2, k_b2 = jax.random.split(key, 5)

    x = jax.random.normal(k_x, (N, C_in, H, W), dtype=jnp.float32)
    params = {
        # conv weights (OIHW, like PyTorch) and biases — deterministic init
        "w1": jax.random.normal(k_w1, (C_out, C_in, 3, 3), dtype=jnp.float32) * 0.1,
        "b1": jax.random.normal(k_b1, (C_out,), dtype=jnp.float32) * 0.1,
        "w2": jax.random.normal(k_w2, (C_out, C_out, 3, 3), dtype=jnp.float32) * 0.1,
        "b2": jax.random.normal(k_b2, (C_out,), dtype=jnp.float32) * 0.1,
        # BatchNorm affine params: PyTorch default init (gamma=1, beta=0)
        "g1": jnp.ones((C_out,), jnp.float32),
        "beta1": jnp.zeros((C_out,), jnp.float32),
        "g2": jnp.ones((C_out,), jnp.float32),
        "beta2": jnp.zeros((C_out,), jnp.float32),
    }

    ref = jax.block_until_ready(_ref_forward(x, params))

    # 1) f32-operand path: tight structural check (padding / BN stats / SiLU /
    #    residual / layout plumbing must match the reference closely).
    out_f32 = jax.block_until_ready(
        jax.jit(functools.partial(double_conv, mm_dtype=jnp.float32))(x, params))
    assert out_f32.shape == (N, C_out, H, W)
    assert jnp.allclose(out_f32, ref, rtol=2e-3, atol=2e-3), \
        "f32 path mismatch vs JAX reference"

    # 2) default bf16-MXU path: same structure, expect ~1e-2..4e-2 absolute error
    #    from bf16 operand/storage rounding amplified by the two BN stages.
    out_bf16 = jax.block_until_ready(jax.jit(double_conv)(x, params))
    assert out_bf16.shape == (N, C_out, H, W)
    max_err = float(jnp.max(jnp.abs(out_bf16 - ref)))
    assert max_err < 0.1, f"bf16 path max abs err {max_err}"

    print("KERNEL_OK")
</pallas_src>

<mosaic_0001>
module attributes {stable_mosaic.version = 11 : i64} {
  func.func @_conv_stats_kernel(%arg0: i32, %arg1: memref<2x18x72xf32, #tpu.memory_space<vmem>>, %arg2: memref<3x72x128xf32, #tpu.memory_space<vmem>>, %arg3: memref<2x16x128xf32, #tpu.memory_space<vmem>>, %arg4: memref<1x1x128xf32, #tpu.memory_space<vmem>>, %arg5: memref<1x1x128xf32, #tpu.memory_space<vmem>>) attributes {dimension_semantics = [#tpu.dimension_semantics<parallel>], iteration_bounds = array<i64: 1>, scalar_prefetch = 0 : i64, scratch_operands = 0 : i64, tpu.core_type = #tpu.core_type<tc>, window_params = [{transform_indices = @transform_0, window_bounds = array<i64: 2, 18, 72>}, {pipeline_mode = #tpu.pipeline_mode<synchronous>, transform_indices = @transform_1, window_bounds = array<i64: 3, 72, 128>}, {transform_indices = @transform_2, window_bounds = array<i64: 2, 16, 128>}, {transform_indices = @transform_3, window_bounds = array<i64: 1, 1, 128>}, {transform_indices = @transform_4, window_bounds = array<i64: 1, 1, 128>}]} {
    %c0 = arith.constant 0 : index
    %c0_0 = arith.constant 0 : index
    %c0_1 = arith.constant 0 : index
    %0 = vector.load %arg1[%c0, %c0_0, %c0_1] : memref<2x18x72xf32, #tpu.memory_space<vmem>>, vector<2x18x72xf32>
    %cst = arith.constant 0.000000e+00 : f32
    %1 = vector.broadcast %cst : f32 to vector<32x128xf32>
    %2 = vector.extract_strided_slice %0 {offsets = [0, 0, 0], sizes = [2, 16, 72], strides = [1, 1, 1]} : vector<2x18x72xf32> to vector<2x16x72xf32>
    %3 = vector.shape_cast %2 : vector<2x16x72xf32> to vector<32x72xf32>
    %c0_2 = arith.constant 0 : index
    %c0_3 = arith.constant 0 : index
    %c0_4 = arith.constant 0 : index
    %4 = vector.load %arg2[%c0_2, %c0_3, %c0_4] : memref<3x72x128xf32, #tpu.memory_space<vmem>>, vector<1x72x128xf32>
    %5 = vector.shape_cast %4 : vector<1x72x128xf32> to vector<72x128xf32>
    %cst_5 = arith.constant dense<0.000000e+00> : vector<32x128xf32>
    %6 = tpu.matmul %3, %5, %cst_5 {dimension_numbers = #tpu.dot_dimension_numbers<[1], [0], [0], [1], [0, 0, 1, 1], [], []>, precision = #tpu.contract_precision<fp32>} : vector<32x72xf32>, vector<72x128xf32>, vector<32x128xf32> -> vector<32x128xf32>
    %7 = arith.addf %1, %6 : vector<32x128xf32>
    %8 = vector.extract_strided_slice %0 {offsets = [0, 1, 0], sizes = [2, 16, 72], strides = [1, 1, 1]} : vector<2x18x72xf32> to vector<2x16x72xf32>
    %9 = vector.shape_cast %8 : vector<2x16x72xf32> to vector<32x72xf32>
    %c1 = arith.constant 1 : index
    %c0_6 = arith.constant 0 : index
    %c0_7 = arith.constant 0 : index
    %10 = vector.load %arg2[%c1, %c0_6, %c0_7] : memref<3x72x128xf32, #tpu.memory_space<vmem>>, vector<1x72x128xf32>
    %11 = vector.shape_cast %10 : vector<1x72x128xf32> to vector<72x128xf32>
    %cst_8 = arith.constant dense<0.000000e+00> : vector<32x128xf32>
    %12 = tpu.matmul %9, %11, %cst_8 {dimension_numbers = #tpu.dot_dimension_numbers<[1], [0], [0], [1], [0, 0, 1, 1], [], []>, precision = #tpu.contract_precision<fp32>} : vector<32x72xf32>, vector<72x128xf32>, vector<32x128xf32> -> vector<32x128xf32>
    %13 = arith.addf %7, %12 : vector<32x128xf32>
    %14 = vector.extract_strided_slice %0 {offsets = [0, 2, 0], sizes = [2, 16, 72], strides = [1, 1, 1]} : vector<2x18x72xf32> to vector<2x16x72xf32>
    %15 = vector.shape_cast %14 : vector<2x16x72xf32> to vector<32x72xf32>
    %c2 = arith.constant 2 : index
    %c0_9 = arith.constant 0 : index
    %c0_10 = arith.constant 0 : index
    %16 = vector.load %arg2[%c2, %c0_9, %c0_10] : memref<3x72x128xf32, #tpu.memory_space<vmem>>, vector<1x72x128xf32>
    %17 = vector.shape_cast %16 : vector<1x72x128xf32> to vector<72x128xf32>
    %cst_11 = arith.constant dense<0.000000e+00> : vector<32x128xf32>
    %18 = tpu.matmul %15, %17, %cst_11 {dimension_numbers = #tpu.dot_dimension_numbers<[1], [0], [0], [1], [0, 0, 1, 1], [], []>, precision = #tpu.contract_precision<fp32>} : vector<32x72xf32>, vector<72x128xf32>, vector<32x128xf32> -> vector<32x128xf32>
    %19 = arith.addf %13, %18 : vector<32x128xf32>
    %20 = vector.shape_cast %19 : vector<32x128xf32> to vector<2x16x128xf32>
    %c0_12 = arith.constant 0 : index
    %c0_13 = arith.constant 0 : index
    %c0_14 = arith.constant 0 : index
    %21 = vector.load %arg3[%c0_12, %c0_13, %c0_14] : memref<2x16x128xf32, #tpu.memory_space<vmem>>, vector<2x16x128xf32>
    tpu.vector_store %arg3[%c0_12, %c0_13, %c0_14], %20 {strides = array<i32>} : memref<2x16x128xf32, #tpu.memory_space<vmem>>, vector<2x16x128xf32>,
    %cst_15 = arith.constant dense<0.000000e+00> : vector<128xf32>
    %22 = vector.multi_reduction <add>, %19, %cst_15 [0] : vector<32x128xf32> to vector<128xf32>
    %23 = vector.shape_cast %22 : vector<128xf32> to vector<1x1x128xf32>
    %c0_16 = arith.constant 0 : index
    %c0_17 = arith.constant 0 : index
    %c0_18 = arith.constant 0 : index
    %24 = vector.load %arg4[%c0_16, %c0_17, %c0_18] : memref<1x1x128xf32, #tpu.memory_space<vmem>>, vector<1x1x128xf32>
    tpu.vector_store %arg4[%c0_16, %c0_17, %c0_18], %23 {strides = array<i32>} : memref<1x1x128xf32, #tpu.memory_space<vmem>>, vector<1x1x128xf32>,
    %25 = arith.mulf %19, %19 : vector<32x128xf32>
    %cst_19 = arith.constant dense<0.000000e+00> : vector<128xf32>
    %26 = vector.multi_reduction <add>, %25, %cst_19 [0] : vector<32x128xf32> to vector<128xf32>
    %27 = vector.shape_cast %26 : vector<128xf32> to vector<1x1x128xf32>
    %c0_20 = arith.constant 0 : index
    %c0_21 = arith.constant 0 : index
    %c0_22 = arith.constant 0 : index
    %28 = vector.load %arg5[%c0_20, %c0_21, %c0_22] : memref<1x1x128xf32, #tpu.memory_space<vmem>>, vector<1x1x128xf32>
    tpu.vector_store %arg5[%c0_20, %c0_21, %c0_22], %27 {strides = array<i32>} : memref<1x1x128xf32, #tpu.memory_space<vmem>>, vector<1x1x128xf32>,
    return
  }
  func.func @transform_0(%arg0: i32) -> (i32, i32, i32) {
    %c0_i32 = arith.constant 0 : i32
    %c0_i32_0 = arith.constant 0 : i32
    %c0_i32_1 = arith.constant 0 : i32
    return %arg0, %c0_i32, %c0_i32_0 : i32, i32, i32
  }
  func.func @transform_1(%arg0: i32) -> (i32, i32, i32) {
    %c0_i32 = arith.constant 0 : i32
    %c0_i32_0 = arith.constant 0 : i32
    %c0_i32_1 = arith.constant 0 : i32
    %c0_i32_2 = arith.constant 0 : i32
    return %c0_i32, %c0_i32_0, %c0_i32_1 : i32, i32, i32
  }
  func.func @transform_2(%arg0: i32) -> (i32, i32, i32) {
    %c0_i32 = arith.constant 0 : i32
    %c0_i32_0 = arith.constant 0 : i32
    %c0_i32_1 = arith.constant 0 : i32
    return %arg0, %c0_i32, %c0_i32_0 : i32, i32, i32
  }
  func.func @transform_3(%arg0: i32) -> (i32, i32, i32) {
    %c0_i32 = arith.constant 0 : i32
    %c0_i32_0 = arith.constant 0 : i32
    %c0_i32_1 = arith.constant 0 : i32
    return %arg0, %c0_i32, %c0_i32_0 : i32, i32, i32
  }
  func.func @transform_4(%arg0: i32) -> (i32, i32, i32) {
    %c0_i32 = arith.constant 0 : i32
    %c0_i32_0 = arith.constant 0 : i32
    %c0_i32_1 = arith.constant 0 : i32
    return %arg0, %c0_i32, %c0_i32_0 : i32, i32, i32
  }
}

module attributes {stable_mosaic.version = 11 : i64} {
  func.func @_conv_stats_kernel(%arg0: i32, %arg1: memref<2x18x144xf32, #tpu.memory_space<vmem>>, %arg2: memref<1x144xf32, #tpu.memory_space<vmem>>, %arg3: memref<1x144xf32, #tpu.memory_space<vmem>>, %arg4: memref<1x18x144xf32, #tpu.memory_space<vmem>>, %arg5: memref<3x144x128xf32, #tpu.memory_space<vmem>>, %arg6: memref<2x16x128xf32, #tpu.memory_space<vmem>>, %arg7: memref<1x1x128xf32, #tpu.memory_space<vmem>>, %arg8: memref<1x1x128xf32, #tpu.memory_space<vmem>>) attributes {dimension_semantics = [#tpu.dimension_semantics<parallel>], iteration_bounds = array<i64: 1>, scalar_prefetch = 0 : i64, scratch_operands = 0 : i64, tpu.core_type = #tpu.core_type<tc>, window_params = [{transform_indices = @transform_0, window_bounds = array<i64: 2, 18, 144>}, {pipeline_mode = #tpu.pipeline_mode<synchronous>, transform_indices = @transform_1, window_bounds = array<i64: 1, 144>}, {pipeline_mode = #tpu.pipeline_mode<synchronous>, transform_indices = @transform_2, window_bounds = array<i64: 1, 144>}, {pipeline_mode = #tpu.pipeline_mode<synchronous>, transform_indices = @transform_3, window_bounds = array<i64: 1, 18, 144>}, {pipeline_mode = #tpu.pipeline_mode<synchronous>, transform_indices = @transform_4, window_bounds = array<i64: 3, 144, 128>}, {transform_indices = @transform_5, window_bounds = array<i64: 2, 16, 128>}, {transform_indices = @transform_6, window_bounds = array<i64: 1, 1, 128>}, {transform_indices = @transform_7, window_bounds = array<i64: 1, 1, 128>}]} {
    %c0 = arith.constant 0 : index
    %c0_0 = arith.constant 0 : index
    %c0_1 = arith.constant 0 : index
    %0 = vector.load %arg1[%c0, %c0_0, %c0_1] : memref<2x18x144xf32, #tpu.memory_space<vmem>>, vector<2x18x144xf32>
    %c0_2 = arith.constant 0 : index
    %c0_3 = arith.constant 0 : index
    %1 = vector.load %arg2[%c0_2, %c0_3] : memref<1x144xf32, #tpu.memory_space<vmem>>, vector<1x144xf32>
    %2 = vector.shape_cast %1 : vector<1x144xf32> to vector<1x1x144xf32>
    %3 = vector.broadcast %2 : vector<1x1x144xf32> to vector<2x18x144xf32>
    %4 = arith.mulf %0, %3 : vector<2x18x144xf32>
    %c0_4 = arith.constant 0 : index
    %c0_5 = arith.constant 0 : index
    %5 = vector.load %arg3[%c0_4, %c0_5] : memref<1x144xf32, #tpu.memory_space<vmem>>, vector<1x144xf32>
    %6 = vector.shape_cast %5 : vector<1x144xf32> to vector<1x1x144xf32>
    %7 = vector.broadcast %6 : vector<1x1x144xf32> to vector<2x18x144xf32>
    %8 = arith.addf %4, %7 : vector<2x18x144xf32>
    %9 = arith.negf %8 : vector<2x18x144xf32>
    %10 = math.exp %9 : vector<2x18x144xf32>
    %cst = arith.constant 1.000000e+00 : f32
    %11 = vector.broadcast %cst : f32 to vector<2x18x144xf32>
    %12 = arith.addf %11, %10 : vector<2x18x144xf32>
    %13 = arith.divf %11, %12 : vector<2x18x144xf32>
    %14 = arith.mulf %8, %13 : vector<2x18x144xf32>
    %c0_6 = arith.constant 0 : index
    %c0_7 = arith.constant 0 : index
    %c0_8 = arith.constant 0 : index
    %15 = vector.load %arg4[%c0_6, %c0_7, %c0_8] : memref<1x18x144xf32, #tpu.memory_space<vmem>>, vector<1x18x144xf32>
    %16 = vector.broadcast %15 : vector<1x18x144xf32> to vector<2x18x144xf32>
    %17 = arith.mulf %14, %16 : vector<2x18x144xf32>
    %cst_9 = arith.constant 0.000000e+00 : f32
    %18 = vector.broadcast %cst_9 : f32 to vector<32x128xf32>
    %19 = vector.extract_strided_slice %17 {offsets = [0, 0, 0], sizes = [2, 16, 144], strides = [1, 1, 1]} : vector<2x18x144xf32> to vector<2x16x144xf32>
    %20 = vector.shape_cast %19 : vector<2x16x144xf32> to vector<32x144xf32>
    %c0_10 = arith.constant 0 : index
    %c0_11 = arith.constant 0 : index
    %c0_12 = arith.constant 0 : index
    %21 = vector.load %arg5[%c0_10, %c0_11, %c0_12] : memref<3x144x128xf32, #tpu.memory_space<vmem>>, vector<1x144x128xf32>
    %22 = vector.shape_cast %21 : vector<1x144x128xf32> to vector<144x128xf32>
    %cst_13 = arith.constant dense<0.000000e+00> : vector<32x128xf32>
    %23 = tpu.matmul %20, %22, %cst_13 {dimension_numbers = #tpu.dot_dimension_numbers<[1], [0], [0], [1], [0, 0, 1, 1], [], []>, precision = #tpu.contract_precision<fp32>} : vector<32x144xf32>, vector<144x128xf32>, vector<32x128xf32> -> vector<32x128xf32>
    %24 = arith.addf %18, %23 : vector<32x128xf32>
    %25 = vector.extract_strided_slice %17 {offsets = [0, 1, 0], sizes = [2, 16, 144], strides = [1, 1, 1]} : vector<2x18x144xf32> to vector<2x16x144xf32>
    %26 = vector.shape_cast %25 : vector<2x16x144xf32> to vector<32x144xf32>
    %c1 = arith.constant 1 : index
    %c0_14 = arith.constant 0 : index
    %c0_15 = arith.constant 0 : index
    %27 = vector.load %arg5[%c1, %c0_14, %c0_15] : memref<3x144x128xf32, #tpu.memory_space<vmem>>, vector<1x144x128xf32>
    %28 = vector.shape_cast %27 : vector<1x144x128xf32> to vector<144x128xf32>
    %cst_16 = arith.constant dense<0.000000e+00> : vector<32x128xf32>
    %29 = tpu.matmul %26, %28, %cst_16 {dimension_numbers = #tpu.dot_dimension_numbers<[1], [0], [0], [1], [0, 0, 1, 1], [], []>, precision = #tpu.contract_precision<fp32>} : vector<32x144xf32>, vector<144x128xf32>, vector<32x128xf32> -> vector<32x128xf32>
    %30 = arith.addf %24, %29 : vector<32x128xf32>
    %31 = vector.extract_strided_slice %17 {offsets = [0, 2, 0], sizes = [2, 16, 144], strides = [1, 1, 1]} : vector<2x18x144xf32> to vector<2x16x144xf32>
    %32 = vector.shape_cast %31 : vector<2x16x144xf32> to vector<32x144xf32>
    %c2 = arith.constant 2 : index
    %c0_17 = arith.constant 0 : index
    %c0_18 = arith.constant 0 : index
    %33 = vector.load %arg5[%c2, %c0_17, %c0_18] : memref<3x144x128xf32, #tpu.memory_space<vmem>>, vector<1x144x128xf32>
    %34 = vector.shape_cast %33 : vector<1x144x128xf32> to vector<144x128xf32>
    %cst_19 = arith.constant dense<0.000000e+00> : vector<32x128xf32>
    %35 = tpu.matmul %32, %34, %cst_19 {dimension_numbers = #tpu.dot_dimension_numbers<[1], [0], [0], [1], [0, 0, 1, 1], [], []>, precision = #tpu.contract_precision<fp32>} : vector<32x144xf32>, vector<144x128xf32>, vector<32x128xf32> -> vector<32x128xf32>
    %36 = arith.addf %30, %35 : vector<32x128xf32>
    %37 = vector.shape_cast %36 : vector<32x128xf32> to vector<2x16x128xf32>
    %c0_20 = arith.constant 0 : index
    %c0_21 = arith.constant 0 : index
    %c0_22 = arith.constant 0 : index
    %38 = vector.load %arg6[%c0_20, %c0_21, %c0_22] : memref<2x16x128xf32, #tpu.memory_space<vmem>>, vector<2x16x128xf32>
    tpu.vector_store %arg6[%c0_20, %c0_21, %c0_22], %37 {strides = array<i32>} : memref<2x16x128xf32, #tpu.memory_space<vmem>>, vector<2x16x128xf32>,
    %cst_23 = arith.constant dense<0.000000e+00> : vector<128xf32>
    %39 = vector.multi_reduction <add>, %36, %cst_23 [0] : vector<32x128xf32> to vector<128xf32>
    %40 = vector.shape_cast %39 : vector<128xf32> to vector<1x1x128xf32>
    %c0_24 = arith.constant 0 : index
    %c0_25 = arith.constant 0 : index
    %c0_26 = arith.constant 0 : index
    %41 = vector.load %arg7[%c0_24, %c0_25, %c0_26] : memref<1x1x128xf32, #tpu.memory_space<vmem>>, vector<1x1x128xf32>
    tpu.vector_store %arg7[%c0_24, %c0_25, %c0_26], %40 {strides = array<i32>} : memref<1x1x128xf32, #tpu.memory_space<vmem>>, vector<1x1x128xf32>,
    %42 = arith.mulf %36, %36 : vector<32x128xf32>
    %cst_27 = arith.constant dense<0.000000e+00> : vector<128xf32>
    %43 = vector.multi_reduction <add>, %42, %cst_27 [0] : vector<32x128xf32> to vector<128xf32>
    %44 = vector.shape_cast %43 : vector<128xf32> to vector<1x1x128xf32>
    %c0_28 = arith.constant 0 : index
    %c0_29 = arith.constant 0 : index
    %c0_30 = arith.constant 0 : index
    %45 = vector.load %arg8[%c0_28, %c0_29, %c0_30] : memref<1x1x128xf32, #tpu.memory_space<vmem>>, vector<1x1x128xf32>
    tpu.vector_store %arg8[%c0_28, %c0_29, %c0_30], %44 {strides = array<i32>} : memref<1x1x128xf32, #tpu.memory_space<vmem>>, vector<1x1x128xf32>,
    return
  }
  func.func @transform_0(%arg0: i32) -> (i32, i32, i32) {
    %c0_i32 = arith.constant 0 : i32
    %c0_i32_0 = arith.constant 0 : i32
    %c0_i32_1 = arith.constant 0 : i32
    return %arg0, %c0_i32, %c0_i32_0 : i32, i32, i32
  }
  func.func @transform_1(%arg0: i32) -> (i32, i32) {
    %c0_i32 = arith.constant 0 : i32
    %c0_i32_0 = arith.constant 0 : i32
    %c0_i32_1 = arith.constant 0 : i32
    return %c0_i32, %c0_i32_0 : i32, i32
  }
  func.func @transform_2(%arg0: i32) -> (i32, i32) {
    %c0_i32 = arith.constant 0 : i32
    %c0_i32_0 = arith.constant 0 : i32
    %c0_i32_1 = arith.constant 0 : i32
    return %c0_i32, %c0_i32_0 : i32, i32
  }
  func.func @transform_3(%arg0: i32) -> (i32, i32, i32) {
    %c0_i32 = arith.constant 0 : i32
    %c0_i32_0 = arith.constant 0 : i32
    %c0_i32_1 = arith.constant 0 : i32
    %c0_i32_2 = arith.constant 0 : i32
    return %c0_i32, %c0_i32_0, %c0_i32_1 : i32, i32, i32
  }
  func.func @transform_4(%arg0: i32) -> (i32, i32, i32) {
    %c0_i32 = arith.constant 0 : i32
    %c0_i32_0 = arith.constant 0 : i32
    %c0_i32_1 = arith.constant 0 : i32
    %c0_i32_2 = arith.constant 0 : i32
    return %c0_i32, %c0_i32_0, %c0_i32_1 : i32, i32, i32
  }
  func.func @transform_5(%arg0: i32) -> (i32, i32, i32) {
    %c0_i32 = arith.constant 0 : i32
    %c0_i32_0 = arith.constant 0 : i32
    %c0_i32_1 = arith.constant 0 : i32
    return %arg0, %c0_i32, %c0_i32_0 : i32, i32, i32
  }
  func.func @transform_6(%arg0: i32) -> (i32, i32, i32) {
    %c0_i32 = arith.constant 0 : i32
    %c0_i32_0 = arith.constant 0 : i32
    %c0_i32_1 = arith.constant 0 : i32
    return %arg0, %c0_i32, %c0_i32_0 : i32, i32, i32
  }
  func.func @transform_7(%arg0: i32) -> (i32, i32, i32) {
    %c0_i32 = arith.constant 0 : i32
    %c0_i32_0 = arith.constant 0 : i32
    %c0_i32_1 = arith.constant 0 : i32
    return %arg0, %c0_i32, %c0_i32_0 : i32, i32, i32
  }
}

module attributes {stable_mosaic.version = 11 : i64} {
  func.func @_residual_bn_silu_kernel(%arg0: i32, %arg1: memref<2x16x128xf32, #tpu.memory_space<vmem>>, %arg2: memref<2x16x128xf32, #tpu.memory_space<vmem>>, %arg3: memref<1x128xf32, #tpu.memory_space<vmem>>, %arg4: memref<1x128xf32, #tpu.memory_space<vmem>>, %arg5: memref<1x128xf32, #tpu.memory_space<vmem>>, %arg6: memref<1x128xf32, #tpu.memory_space<vmem>>, %arg7: memref<2x16x128xf32, #tpu.memory_space<vmem>>) attributes {dimension_semantics = [#tpu.dimension_semantics<parallel>], iteration_bounds = array<i64: 1>, scalar_prefetch = 0 : i64, scratch_operands = 0 : i64, tpu.core_type = #tpu.core_type<tc>, window_params = [{transform_indices = @transform_0, window_bounds = array<i64: 2, 16, 128>}, {transform_indices = @transform_1, window_bounds = array<i64: 2, 16, 128>}, {pipeline_mode = #tpu.pipeline_mode<synchronous>, transform_indices = @transform_2, window_bounds = array<i64: 1, 128>}, {pipeline_mode = #tpu.pipeline_mode<synchronous>, transform_indices = @transform_3, window_bounds = array<i64: 1, 128>}, {pipeline_mode = #tpu.pipeline_mode<synchronous>, transform_indices = @transform_4, window_bounds = array<i64: 1, 128>}, {pipeline_mode = #tpu.pipeline_mode<synchronous>, transform_indices = @transform_5, window_bounds = array<i64: 1, 128>}, {transform_indices = @transform_6, window_bounds = array<i64: 2, 16, 128>}]} {
    %c0 = arith.constant 0 : index
    %c0_0 = arith.constant 0 : index
    %c0_1 = arith.constant 0 : index
    %0 = vector.load %arg1[%c0, %c0_0, %c0_1] : memref<2x16x128xf32, #tpu.memory_space<vmem>>, vector<2x16x128xf32>
    %c0_2 = arith.constant 0 : index
    %c0_3 = arith.constant 0 : index
    %1 = vector.load %arg3[%c0_2, %c0_3] : memref<1x128xf32, #tpu.memory_space<vmem>>, vector<1x128xf32>
    %2 = vector.shape_cast %1 : vector<1x128xf32> to vector<1x1x128xf32>
    %3 = vector.broadcast %2 : vector<1x1x128xf32> to vector<2x16x128xf32>
    %4 = arith.mulf %0, %3 : vector<2x16x128xf32>
    %c0_4 = arith.constant 0 : index
    %c0_5 = arith.constant 0 : index
    %5 = vector.load %arg4[%c0_4, %c0_5] : memref<1x128xf32, #tpu.memory_space<vmem>>, vector<1x128xf32>
    %6 = vector.shape_cast %5 : vector<1x128xf32> to vector<1x1x128xf32>
    %7 = vector.broadcast %6 : vector<1x1x128xf32> to vector<2x16x128xf32>
    %8 = arith.addf %4, %7 : vector<2x16x128xf32>
    %9 = arith.negf %8 : vector<2x16x128xf32>
    %10 = math.exp %9 : vector<2x16x128xf32>
    %cst = arith.constant 1.000000e+00 : f32
    %11 = vector.broadcast %cst : f32 to vector<2x16x128xf32>
    %12 = arith.addf %11, %10 : vector<2x16x128xf32>
    %13 = arith.divf %11, %12 : vector<2x16x128xf32>
    %14 = arith.mulf %8, %13 : vector<2x16x128xf32>
    %c0_6 = arith.constant 0 : index
    %c0_7 = arith.constant 0 : index
    %c0_8 = arith.constant 0 : index
    %15 = vector.load %arg2[%c0_6, %c0_7, %c0_8] : memref<2x16x128xf32, #tpu.memory_space<vmem>>, vector<2x16x128xf32>
    %c0_9 = arith.constant 0 : index
    %c0_10 = arith.constant 0 : index
    %16 = vector.load %arg5[%c0_9, %c0_10] : memref<1x128xf32, #tpu.memory_space<vmem>>, vector<1x128xf32>
    %17 = vector.shape_cast %16 : vector<1x128xf32> to vector<1x1x128xf32>
    %18 = vector.broadcast %17 : vector<1x1x128xf32> to vector<2x16x128xf32>
    %19 = arith.mulf %15, %18 : vector<2x16x128xf32>
    %c0_11 = arith.constant 0 : index
    %c0_12 = arith.constant 0 : index
    %20 = vector.load %arg6[%c0_11, %c0_12] : memref<1x128xf32, #tpu.memory_space<vmem>>, vector<1x128xf32>
    %21 = vector.shape_cast %20 : vector<1x128xf32> to vector<1x1x128xf32>
    %22 = vector.broadcast %21 : vector<1x1x128xf32> to vector<2x16x128xf32>
    %23 = arith.addf %19, %22 : vector<2x16x128xf32>
    %24 = arith.negf %23 : vector<2x16x128xf32>
    %25 = math.exp %24 : vector<2x16x128xf32>
    %cst_13 = arith.constant 1.000000e+00 : f32
    %26 = vector.broadcast %cst_13 : f32 to vector<2x16x128xf32>
    %27 = arith.addf %26, %25 : vector<2x16x128xf32>
    %28 = arith.divf %26, %27 : vector<2x16x128xf32>
    %29 = arith.mulf %23, %28 : vector<2x16x128xf32>
    %30 = arith.addf %14, %29 : vector<2x16x128xf32>
    %c0_14 = arith.constant 0 : index
    %c0_15 = arith.constant 0 : index
    %c0_16 = arith.constant 0 : index
    %31 = vector.load %arg7[%c0_14, %c0_15, %c0_16] : memref<2x16x128xf32, #tpu.memory_space<vmem>>, vector<2x16x128xf32>
    tpu.vector_store %arg7[%c0_14, %c0_15, %c0_16], %30 {strides = array<i32>} : memref<2x16x128xf32, #tpu.memory_space<vmem>>, vector<2x16x128xf32>,
    return
  }
  func.func @transform_0(%arg0: i32) -> (i32, i32, i32) {
    %c0_i32 = arith.constant 0 : i32
    %c0_i32_0 = arith.constant 0 : i32
    %c0_i32_1 = arith.constant 0 : i32
    return %arg0, %c0_i32, %c0_i32_0 : i32, i32, i32
  }
  func.func @transform_1(%arg0: i32) -> (i32, i32, i32) {
    %c0_i32 = arith.constant 0 : i32
    %c0_i32_0 = arith.constant 0 : i32
    %c0_i32_1 = arith.constant 0 : i32
    return %arg0, %c0_i32, %c0_i32_0 : i32, i32, i32
  }
  func.func @transform_2(%arg0: i32) -> (i32, i32) {
    %c0_i32 = arith.constant 0 : i32
    %c0_i32_0 = arith.constant 0 : i32
    %c0_i32_1 = arith.constant 0 : i32
    return %c0_i32, %c0_i32_0 : i32, i32
  }
  func.func @transform_3(%arg0: i32) -> (i32, i32) {
    %c0_i32 = arith.constant 0 : i32
    %c0_i32_0 = arith.constant 0 : i32
    %c0_i32_1 = arith.constant 0 : i32
    return %c0_i32, %c0_i32_0 : i32, i32
  }
  func.func @transform_4(%arg0: i32) -> (i32, i32) {
    %c0_i32 = arith.constant 0 : i32
    %c0_i32_0 = arith.constant 0 : i32
    %c0_i32_1 = arith.constant 0 : i32
    return %c0_i32, %c0_i32_0 : i32, i32
  }
  func.func @transform_5(%arg0: i32) -> (i32, i32) {
    %c0_i32 = arith.constant 0 : i32
    %c0_i32_0 = arith.constant 0 : i32
    %c0_i32_1 = arith.constant 0 : i32
    return %c0_i32, %c0_i32_0 : i32, i32
  }
  func.func @transform_6(%arg0: i32) -> (i32, i32, i32) {
    %c0_i32 = arith.constant 0 : i32
    %c0_i32_0 = arith.constant 0 : i32
    %c0_i32_1 = arith.constant 0 : i32
    return %arg0, %c0_i32, %c0_i32_0 : i32, i32, i32
  }
}

</mosaic_0001>

<llo_original>
// kernel: double_conv.3
$region0: #{double_conv.3}
  #allocation0 [shape = 'u32[]', space=smem, size = 0x4, offset = 0x4, fixed_abs, tag = 'smem constant byte address 0x4 - core index']
  #allocation1 [shape = 'u32[144,128]{1,0:T(1,128)}', space=vmem, size = 0x12000, scoped, tag = 'internal scratch']
  %s0 = inlined_call_operand.vmem [shape: f32[2,18,72], index: 0, kind: input, shape index: {}]
  %s1 = inlined_call_operand.vmem [shape: f32[3,72,128], index: 1, kind: input, shape index: {}]
  %s2 = inlined_call_operand.vmem [shape: f32[2,16,128], index: 2, kind: output, shape index: {0}]
  %s3 = inlined_call_operand.vmem [shape: f32[1,1,128], index: 3, kind: output, shape index: {1}]
  %s4 = inlined_call_operand.vmem [shape: f32[1,1,128], index: 4, kind: output, shape index: {2}]
  %5 = xla_tuple %s2, %s3, %s4
  %s6 = sld [smem:[#allocation0]]
  $region34: #{double_conv.3} parent=0
    _
  %s8 = ssub.s32 1, %s6
  %s9 = scalar_select 0, %s8, %s6
  // Predicated region
  $region2: #{double_conv.3} parent=0 // pred_check
    _
  $region3: #{double_conv.3} parent=0 // pred_check_branch
    %11 = sbr.rel (0) target = $region5
  $region4: #{double_conv.3} parent=0 // pred_region
    _
  $region5: #{double_conv.3} parent=0 // pred_fallthru
    _
  // Predicated region
  $region6: #{double_conv.3} parent=0 // pred_check
    _
  $region7: #{double_conv.3} parent=0 // pred_check_branch
    %13 = sbr.rel (0) target = $region9
  $region8: #{double_conv.3} parent=0 // pred_region
    _
  $region9: #{double_conv.3} parent=0 // pred_fallthru
    _
  %v14 = vld [vmem:[%s0] sm:$0xff]
  %v15 = vld [vmem:[%s0 + $0x8] sm:$0xff]
  %v16 = vld [vmem:[%s0 + $0x10] sm:$0x3]
  %v17 = vld [vmem:[%s0 + $0x18] sm:$0xff]
  %v18 = vld [vmem:[%s0 + $0x20] sm:$0xff]
  %v19 = vld [vmem:[%s0 + $0x28] sm:$0x3]
  %v20 = vld [vmem:[%s1] sm:$0xff]
  %v21 = vld [vmem:[%s1 + $0x8] sm:$0xff]
  %v22 = vld [vmem:[%s1 + $0x10] sm:$0xff]
  %v23 = vld [vmem:[%s1 + $0x18] sm:$0xff]
  %v24 = vld [vmem:[%s1 + $0x20] sm:$0xff]
  %v25 = vld [vmem:[%s1 + $0x28] sm:$0xff]
  %v26 = vld [vmem:[%s1 + $0x30] sm:$0xff]
  %v27 = vld [vmem:[%s1 + $0x38] sm:$0xff]
  %v28 = vld [vmem:[%s1 + $0x40] sm:$0xff]
  %vm35 = vcmask 1046528
  %v36 = vrot.slane %v14, 1
  %v37 = vrot.slane %v15, 1
  %v38 = vsel %vm35, %v36, %v37
  %v39 = vrot.slane %v16, 1
  %v40 = vsel %vm35, %v37, %v39
  %v41 = vrot.slane %v17, 1
  %v42 = vrot.slane %v18, 1
  %v43 = vsel %vm35, %v41, %v42
  %v44 = vrot.slane %v19, 1
  %v45 = vsel %vm35, %v42, %v44
  %s46 = scalar_lea.vmem %s1, 72
  %v47 = vld [vmem:[%s46] sm:$0xff]
  %v48 = vld [vmem:[%s46 + $0x8] sm:$0xff]
  %v49 = vld [vmem:[%s46 + $0x10] sm:$0xff]
  %v50 = vld [vmem:[%s46 + $0x18] sm:$0xff]
  %v51 = vld [vmem:[%s46 + $0x20] sm:$0xff]
  %v52 = vld [vmem:[%s46 + $0x28] sm:$0xff]
  %v53 = vld [vmem:[%s46 + $0x30] sm:$0xff]
  %v54 = vld [vmem:[%s46 + $0x38] sm:$0xff]
  %v55 = vld [vmem:[%s46 + $0x40] sm:$0xff]
  %vm56 = vcmask 588800
  %v57 = vsel %vm56, %v38, 0
  %v59 = vsel %vm56, %v40, 0
  %v61 = vsel %vm56, %v43, 0
  %v63 = vsel %vm56, %v45, 0
  %65 = vmatprep.subr.mxu0 0.0
  %v66 = vand.u32 %v47, 4294901760
  %67 = vmatpush1.msra.mxu0 %v66
  %68 = vmatprep.subr.mxu0 0.0
  %v69 = vand.u32 %v48, 4294901760
  %70 = vmatpush1.msra.mxu0 %v69
  %71 = vmatprep.subr.mxu0 0.0
  %v72 = vand.u32 %v49, 4294901760
  %73 = vmatpush1.msra.mxu0 %v72
  %74 = vmatprep.subr.mxu0 0.0
  %v75 = vand.u32 %v50, 4294901760
  %76 = vmatpush1.msra.mxu0 %v75
  %77 = vmatprep.subr.mxu0 0.0
  %v78 = vand.u32 %v51, 4294901760
  %79 = vmatpush1.msra.mxu0 %v78
  %80 = vmatprep.subr.mxu0 0.0
  %v81 = vand.u32 %v52, 4294901760
  %82 = vmatpush1.msra.mxu0 %v81
  %83 = vmatprep.subr.mxu0 0.0
  %v84 = vand.u32 %v53, 4294901760
  %85 = vmatpush1.msra.mxu0 %v84
  %86 = vmatprep.subr.mxu0 0.0
  %v87 = vand.u32 %v54, 4294901760
  %88 = vmatpush1.msra.mxu0 %v87
  %89 = vmatprep.subr.mxu0 0.0
  %v90 = vand.u32 %v55, 4294901760
  %91 = vmatpush1.msra.mxu0 %v90
  %92 = vmatprep.subr.mxu0 0.0
  %93 = vmatpush1.msra.mxu0 0.0
  %94 = vmatprep.subr.mxu0 0.0
  %95 = vmatpush1.msra.mxu0 0.0
  %96 = vmatprep.subr.mxu0 0.0
  %97 = vmatpush1.msra.mxu0 0.0
  %98 = vmatprep.subr.mxu0 0.0
  %99 = vmatpush1.msra.mxu0 0.0
  %100 = vmatprep.subr.mxu0 0.0
  %101 = vmatpush1.msra.mxu0 0.0
  %102 = vmatprep.subr.mxu0 0.0
  %103 = vmatpush1.msra.mxu0 0.0
  %104 = vmatprep.subr.mxu0 0.0
  %105 = vmatpush1.msra.mxu0 0.0
  %106 = vmatprep.subr.mxu0 0.0
  %107 = vmatpush1.msra.mxu0 0.0
  %108 = vmatprep.subr.mxu0 0.0
  %109 = vmatpush1.msra.mxu0 0.0
  %110 = vmatprep.subr.mxu0 0.0
  %111 = vmatpush1.msra.mxu0 0.0
  %112 = vmatprep.subr.mxu0 0.0
  %113 = vmatpush1.msra.mxu0 0.0
  %114 = vmatprep.subr.mxu0 0.0
  %115 = vmatpush1.msra.mxu0 0.0
  %116 = vmatprep.subr.mxu0 0.0
  %117 = vmatpush1.msra.mxu0 0.0
  %118 = vmatprep.subr.mxu0 0.0
  %119 = vmatpush1.msra.mxu0 0.0
  %120 = vmatprep.subr.mxu0 0.0
  %121 = vmatpush1.msra.mxu0 0.0
  %122 = vmatprep.subr.mxu0 0.0
  %123 = vmatpush1.msra.mxu0 0.0
  %124 = vmatprep.subr.mxu0 0.0
  %125 = vmatpush1.msra.mxu0 0.0
  %126 = vmatprep.subr.mxu0 0.0
  %127 = vmatpush1.msra.mxu0 0.0
  %128 = vmatprep.subr.mxu0 0.0
  %129 = vmatpush1.msra.mxu0 0.0
  %130 = vmatprep.subr.mxu0 0.0
  %131 = vmatpush1.msra.mxu0 0.0
  %132 = vmatprep.subr.mxu0 0.0
  %133 = vmatpush1.msra.mxu0 0.0
  %134 = vmatprep.subr.mxu0 0.0
  %135 = vmatpush1.msra.mxu0 0.0
  %136 = vmatprep.subr.mxu0 0.0
  %137 = vmatpush1.msra.mxu0 0.0
  %138 = vmatprep.mubr.f32.mxu0 0.0
  %v139 = vand.u32 %v57, 4294901760
  %v140 = vsub.f32 %v57, %v139
  %v141 = vand.u32 %v140, 4294901760
  %v142 = vsub.f32 %v140, %v141
  %v143 = vand.u32 %v142, 4294901760
  %144 = vmatmul.mubr.f32.gmra.mrb[0].mxu0 %v143
  %v145 = vpop.f32.mrb[0].mxu0
  %v146 = vadd.f32 0.0, %v145
  %v147 = vpop.f32.mrb[0].mxu0
  %148 = vmatprep.mubr.f32.mxu0 0.0
  %v149 = vand.u32 %v59, 4294901760
  %v150 = vsub.f32 %v59, %v149
  %v151 = vand.u32 %v150, 4294901760
  %v152 = vsub.f32 %v150, %v151
  %v153 = vand.u32 %v152, 4294901760
  %154 = vmatmul.mubr.f32.gmra.mrb[0].mxu0 %v153
  %v155 = vpop.f32.mrb[0].mxu0
  %v156 = vadd.f32 0.0, %v155
  %v157 = vpop.f32.mrb[0].mxu0
  %158 = vmatprep.mubr.f32.mxu0 0.0
  %v159 = vand.u32 %v61, 4294901760
  %v160 = vsub.f32 %v61, %v159
  %v161 = vand.u32 %v160, 4294901760
  %v162 = vsub.f32 %v160, %v161
  %v163 = vand.u32 %v162, 4294901760
  %164 = vmatmul.mubr.f32.gmra.mrb[0].mxu0 %v163
  %v165 = vpop.f32.mrb[0].mxu0
  %v166 = vadd.f32 0.0, %v165
  %v167 = vpop.f32.mrb[0].mxu0
  %168 = vmatprep.mubr.f32.mxu0 0.0
  %v169 = vand.u32 %v63, 4294901760
  %v170 = vsub.f32 %v63, %v169
  %v171 = vand.u32 %v170, 4294901760
  %v172 = vsub.f32 %v170, %v171
  %v173 = vand.u32 %v172, 4294901760
  %174 = vmatmul.mubr.f32.gmra.mrb[0].mxu0 %v173
  %v175 = vpop.f32.mrb[0].mxu0
  %v176 = vadd.f32 0.0, %v175
  %v177 = vpop.f32.mrb[0].mxu0
  %178 = vdwg.mxu0
  %179 = vmatprep.subr.mxu0 0.0
  %v180 = vand.u32 %v47, 4294901760
  %v181 = vsub.f32 %v47, %v180
  %v182 = vand.u32 %v181, 4294901760
  %v183 = vsub.f32 %v181, %v182
  %v184 = vand.u32 %v183, 4294901760
  %185 = vmatpush1.msra.mxu0 %v184
  %186 = vmatprep.subr.mxu0 0.0
  %v187 = vand.u32 %v48, 4294901760
  %v188 = vsub.f32 %v48, %v187
  %v189 = vand.u32 %v188, 4294901760
  %v190 = vsub.f32 %v188, %v189
  %v191 = vand.u32 %v190, 4294901760
  %192 = vmatpush1.msra.mxu0 %v191
  %193 = vmatprep.subr.mxu0 0.0
  %v194 = vand.u32 %v49, 4294901760
  %v195 = vsub.f32 %v49, %v194
  %v196 = vand.u32 %v195, 4294901760
  %v197 = vsub.f32 %v195, %v196
  %v198 = vand.u32 %v197, 4294901760
  %199 = vmatpush1.msra.mxu0 %v198
  %200 = vmatprep.subr.mxu0 0.0
  %v201 = vand.u32 %v50, 4294901760
  %v202 = vsub.f32 %v50, %v201
  %v203 = vand.u32 %v202, 4294901760
  %v204 = vsub.f32 %v202, %v203
  %v205 = vand.u32 %v204, 4294901760
  %206 = vmatpush1.msra.mxu0 %v205
  %207 = vmatprep.subr.mxu0 0.0
  %v208 = vand.u32 %v51, 4294901760
  %v209 = vsub.f32 %v51, %v208
  %v210 = vand.u32 %v209, 4294901760
  %v211 = vsub.f32 %v209, %v210
  %v212 = vand.u32 %v211, 4294901760
  %213 = vmatpush1.msra.mxu0 %v212
  %214 = vmatprep.subr.mxu0 0.0
  %v215 = vand.u32 %v52, 4294901760
  %v216 = vsub.f32 %v52, %v215
  %v217 = vand.u32 %v216, 4294901760
  %v218 = vsub.f32 %v216, %v217
  %v219 = vand.u32 %v218, 4294901760
  %220 = vmatpush1.msra.mxu0 %v219
  %221 = vmatprep.subr.mxu0 0.0
  %v222 = vand.u32 %v53, 4294901760
  %v223 = vsub.f32 %v53, %v222
  %v224 = vand.u32 %v223, 4294901760
  %v225 = vsub.f32 %v223, %v224
  %v226 = vand.u32 %v225, 4294901760
  %227 = vmatpush1.msra.mxu0 %v226
  %228 = vmatprep.subr.mxu0 0.0
  %v229 = vand.u32 %v54, 4294901760
  %v230 = vsub.f32 %v54, %v229
  %v231 = vand.u32 %v230, 4294901760
  %v232 = vsub.f32 %v230, %v231
  %v233 = vand.u32 %v232, 4294901760
  %234 = vmatpush1.msra.mxu0 %v233
  %235 = vmatprep.subr.mxu0 0.0
  %v236 = vand.u32 %v55, 4294901760
  %v237 = vsub.f32 %v55, %v236
  %v238 = vand.u32 %v237, 4294901760
  %v239 = vsub.f32 %v237, %v238
  %v240 = vand.u32 %v239, 4294901760
  %241 = vmatpush1.msra.mxu0 %v240
  %242 = vmatprep.subr.mxu0 0.0
  %243 = vmatpush1.msra.mxu0 0.0
  %244 = vmatprep.subr.mxu0 0.0
  %245 = vmatpush1.msra.mxu0 0.0
  %246 = vmatprep.subr.mxu0 0.0
  %247 = vmatpush1.msra.mxu0 0.0
  %248 = vmatprep.subr.mxu0 0.0
  %249 = vmatpush1.msra.mxu0 0.0
  %250 = vmatprep.subr.mxu0 0.0
  %251 = vmatpush1.msra.mxu0 0.0
  %252 = vmatprep.subr.mxu0 0.0
  %253 = vmatpush1.msra.mxu0 0.0
  %254 = vmatprep.subr.mxu0 0.0
  %255 = vmatpush1.msra.mxu0 0.0
  %256 = vmatprep.subr.mxu0 0.0
  %257 = vmatpush1.msra.mxu0 0.0
  %258 = vmatprep.subr.mxu0 0.0
  %259 = vmatpush1.msra.mxu0 0.0
  %260 = vmatprep.subr.mxu0 0.0
  %261 = vmatpush1.msra.mxu0 0.0
  %262 = vmatprep.subr.mxu0 0.0
  %263 = vmatpush1.msra.mxu0 0.0
  %264 = vmatprep.subr.mxu0 0.0
  %265 = vmatpush1.msra.mxu0 0.0
  %266 = vmatprep.subr.mxu0 0.0
  %267 = vmatpush1.msra.mxu0 0.0
  %268 = vmatprep.subr.mxu0 0.0
  %269 = vmatpush1.msra.mxu0 0.0
  %270 = vmatprep.subr.mxu0 0.0
  %271 = vmatpush1.msra.mxu0 0.0
  %272 = vmatprep.subr.mxu0 0.0
  %273 = vmatpush1.msra.mxu0 0.0
  %274 = vmatprep.subr.mxu0 0.0
  %275 = vmatpush1.msra.mxu0 0.0
  %276 = vmatprep.subr.mxu0 0.0
  %277 = vmatpush1.msra.mxu0 0.0
  %278 = vmatprep.subr.mxu0 0.0
  %279 = vmatpush1.msra.mxu0 0.0
  %280 = vmatprep.subr.mxu0 0.0
  %281 = vmatpush1.msra.mxu0 0.0
  %282 = vmatprep.subr.mxu0 0.0
  %283 = vmatpush1.msra.mxu0 0.0
  %284 = vmatprep.subr.mxu0 0.0
  %285 = vmatpush1.msra.mxu0 0.0
  %286 = vmatprep.subr.mxu0 0.0
  %287 = vmatpush1.msra.mxu0 0.0
  %288 = vmatprep.mubr.f32.mxu0 0.0
  %v289 = vand.u32 %v57, 4294901760
  %290 = vmatmul.mubr.f32.gmra.mrb[0].mxu0 %v289
  %v291 = vpop.f32.mrb[0].mxu0
  %v292 = vadd.f32 %v146, %v291
  %v293 = vpop.f32.mrb[0].mxu0
  %294 = vmatprep.mubr.f32.mxu0 0.0
  %v295 = vand.u32 %v59, 4294901760
  %296 = vmatmul.mubr.f32.gmra.mrb[0].mxu0 %v295
  %v297 = vpop.f32.mrb[0].mxu0
  %v298 = vadd.f32 %v156, %v297
  %v299 = vpop.f32.mrb[0].mxu0
  %300 = vmatprep.mubr.f32.mxu0 0.0
  %v301 = vand.u32 %v61, 4294901760
  %302 = vmatmul.mubr.f32.gmra.mrb[0].mxu0 %v301
  %v303 = vpop.f32.mrb[0].mxu0
  %v304 = vadd.f32 %v166, %v303
  %v305 = vpop.f32.mrb[0].mxu0
  %306 = vmatprep.mubr.f32.mxu0 0.0
  %v307 = vand.u32 %v63, 4294901760
  %308 = vmatmul.mubr.f32.gmra.mrb[0].mxu0 %v307
  %v309 = vpop.f32.mrb[0].mxu0
  %v310 = vadd.f32 %v176, %v309
  %v311 = vpop.f32.mrb[0].mxu0
  %312 = vdwg.mxu0
  %313 = vmatprep.subr.mxu0 0.0
  %v314 = vand.u32 %v47, 4294901760
  %v315 = vsub.f32 %v47, %v314
  %316 = vmatpush1.msra.mxu0 %v315
  %317 = vmatprep.subr.mxu0 0.0
  %v318 = vand.u32 %v48, 4294901760
  %v319 = vsub.f32 %v48, %v318
  %320 = vmatpush1.msra.mxu0 %v319
  %321 = vmatprep.subr.mxu0 0.0
  %v322 = vand.u32 %v49, 4294901760
  %v323 = vsub.f32 %v49, %v322
  %324 = vmatpush1.msra.mxu0 %v323
  %325 = vmatprep.subr.mxu0 0.0
  %v326 = vand.u32 %v50, 4294901760
  %v327 = vsub.f32 %v50, %v326
  %328 = vmatpush1.msra.mxu0 %v327
  %329 = vmatprep.subr.mxu0 0.0
  %v330 = vand.u32 %v51, 4294901760
  %v331 = vsub.f32 %v51, %v330
  %332 = vmatpush1.msra.mxu0 %v331
  %333 = vmatprep.subr.mxu0 0.0
  %v334 = vand.u32 %v52, 4294901760
  %v335 = vsub.f32 %v52, %v334
  %336 = vmatpush1.msra.mxu0 %v335
  %337 = vmatprep.subr.mxu0 0.0
  %v338 = vand.u32 %v53, 4294901760
  %v339 = vsub.f32 %v53, %v338
  %340 = vmatpush1.msra.mxu0 %v339
  %341 = vmatprep.subr.mxu0 0.0
  %v342 = vand.u32 %v54, 4294901760
  %v343 = vsub.f32 %v54, %v342
  %344 = vmatpush1.msra.mxu0 %v343
  %345 = vmatprep.subr.mxu0 0.0
  %v346 = vand.u32 %v55, 4294901760
  %v347 = vsub.f32 %v55, %v346
  %348 = vmatpush1.msra.mxu0 %v347
  %349 = vmatprep.subr.mxu0 0.0
  %350 = vmatpush1.msra.mxu0 0.0
  %351 = vmatprep.subr.mxu0 0.0
  %352 = vmatpush1.msra.mxu0 0.0
  %353 = vmatprep.subr.mxu0 0.0
  %354 = vmatpush1.msra.mxu0 0.0
  %355 = vmatprep.subr.mxu0 0.0
  %356 = vmatpush1.msra.mxu0 0.0
  %357 = vmatprep.subr.mxu0 0.0
  %358 = vmatpush1.msra.mxu0 0.0
  %359 = vmatprep.subr.mxu0 0.0
  %360 = vmatpush1.msra.mxu0 0.0
  %361 = vmatprep.subr.mxu0 0.0
  %362 = vmatpush1.msra.mxu0 0.0
  %363 = vmatprep.subr.mxu0 0.0
  %364 = vmatpush1.msra.mxu0 0.0
  %365 = vmatprep.subr.mxu0 0.0
  %366 = vmatpush1.msra.mxu0 0.0
  %367 = vmatprep.subr.mxu0 0.0
  %368 = vmatpush1.msra.mxu0 0.0
  %369 = vmatprep.subr.mxu0 0.0
  %370 = vmatpush1.msra.mxu0 0.0
  %371 = vmatprep.subr.mxu0 0.0
  %372 = vmatpush1.msra.mxu0 0.0
  %373 = vmatprep.subr.mxu0 0.0
  %374 = vmatpush1.msra.mxu0 0.0
  %375 = vmatprep.subr.mxu0 0.0
  %376 = vmatpush1.msra.mxu0 0.0
  %377 = vmatprep.subr.mxu0 0.0
  %378 = vmatpush1.msra.mxu0 0.0
  %379 = vmatprep.subr.mxu0 0.0
  %380 = vmatpush1.msra.mxu0 0.0
  %381 = vmatprep.subr.mxu0 0.0
  %382 = vmatpush1.msra.mxu0 0.0
  %383 = vmatprep.subr.mxu0 0.0
  %384 = vmatpush1.msra.mxu0 0.0
  %385 = vmatprep.subr.mxu0 0.0
  %386 = vmatpush1.msra.mxu0 0.0
  %387 = vmatprep.subr.mxu0 0.0
  %388 = vmatpush1.msra.mxu0 0.0
  %389 = vmatprep.subr.mxu0 0.0
  %390 = vmatpush1.msra.mxu0 0.0
  %391 = vmatprep.subr.mxu0 0.0
  %392 = vmatpush1.msra.mxu0 0.0
  %393 = vmatprep.subr.mxu0 0.0
  %394 = vmatpush1.msra.mxu0 0.0
  %395 = vmatprep.mubr.f32.mxu0 0.0
  %v396 = vand.u32 %v57, 4294901760
  %v397 = vsub.f32 %v57, %v396
  %398 = vmatmul.mubr.f32.gmra.mrb[0].mxu0 %v397
  %v399 = vpop.f32.mrb[0].mxu0
  %v400 = vadd.f32 %v292, %v399
  %v401 = vpop.f32.mrb[0].mxu0
  %402 = vmatprep.mubr.f32.mxu0 0.0
  %v403 = vand.u32 %v59, 4294901760
  %v404 = vsub.f32 %v59, %v403
  %405 = vmatmul.mubr.f32.gmra.mrb[0].mxu0 %v404
  %v406 = vpop.f32.mrb[0].mxu0
  %v407 = vadd.f32 %v298, %v406
  %v408 = vpop.f32.mrb[0].mxu0
  %409 = vmatprep.mubr.f32.mxu0 0.0
  %v410 = vand.u32 %v61, 4294901760
  %v411 = vsub.f32 %v61, %v410
  %412 = vmatmul.mubr.f32.gmra.mrb[0].mxu0 %v411
  %v413 = vpop.f32.mrb[0].mxu0
  %v414 = vadd.f32 %v304, %v413
  %v415 = vpop.f32.mrb[0].mxu0
  %416 = vmatprep.mubr.f32.mxu0 0.0
  %v417 = vand.u32 %v63, 4294901760
  %v418 = vsub.f32 %v63, %v417
  %419 = vmatmul.mubr.f32.gmra.mrb[0].mxu0 %v418
  %v420 = vpop.f32.mrb[0].mxu0
  %v421 = vadd.f32 %v310, %v420
  %v422 = vpop.f32.mrb[0].mxu0
  %423 = vdwg.mxu0
  %424 = vmatprep.subr.mxu0 0.0
  %v425 = vand.u32 %v47, 4294901760
  %426 = vmatpush1.msra.mxu0 %v425
  %427 = vmatprep.subr.mxu0 0.0
  %v428 = vand.u32 %v48, 4294901760
  %429 = vmatpush1.msra.mxu0 %v428
  %430 = vmatprep.subr.mxu0 0.0
  %v431 = vand.u32 %v49, 4294901760
  %432 = vmatpush1.msra.mxu0 %v431
  %433 = vmatprep.subr.mxu0 0.0
  %v434 = vand.u32 %v50, 4294901760
  %435 = vmatpush1.msra.mxu0 %v434
  %436 = vmatprep.subr.mxu0 0.0
  %v437 = vand.u32 %v51, 4294901760
  %438 = vmatpush1.msra.mxu0 %v437
  %439 = vmatprep.subr.mxu0 0.0
  %v440 = vand.u32 %v52, 4294901760
  %441 = vmatpush1.msra.mxu0 %v440
  %442 = vmatprep.subr.mxu0 0.0
  %v443 = vand.u32 %v53, 4294901760
  %444 = vmatpush1.msra.mxu0 %v443
  %445 = vmatprep.subr.mxu0 0.0
  %v446 = vand.u32 %v54, 4294901760
  %447 = vmatpush1.msra.mxu0 %v446
  %448 = vmatprep.subr.mxu0 0.0
  %v449 = vand.u32 %v55, 4294901760
  %450 = vmatpush1.msra.mxu0 %v449
  %451 = vmatprep.subr.mxu0 0.0
  %452 = vmatpush1.msra.mxu0 0.0
  %453 = vmatprep.subr.mxu0 0.0
  %454 = vmatpush1.msra.mxu0 0.0
  %455 = vmatprep.subr.mxu0 0.0
  %456 = vmatpush1.msra.mxu0 0.0
  %457 = vmatprep.subr.mxu0 0.0
  %458 = vmatpush1.msra.mxu0 0.0
  %459 = vmatprep.subr.mxu0 0.0
  %460 = vmatpush1.msra.mxu0 0.0
  %461 = vmatprep.subr.mxu0 0.0
  %462 = vmatpush1.msra.mxu0 0.0
  %463 = vmatprep.subr.mxu0 0.0
  %464 = vmatpush1.msra.mxu0 0.0
  %465 = vmatprep.subr.mxu0 0.0
  %466 = vmatpush1.msra.mxu0 0.0
  %467 = vmatprep.subr.mxu0 0.0
  %468 = vmatpush1.msra.mxu0 0.0
  %469 = vmatprep.subr.mxu0 0.0
  %470 = vmatpush1.msra.mxu0 0.0
  %471 = vmatprep.subr.mxu0 0.0
  %472 = vmatpush1.msra.mxu0 0.0
  %473 = vmatprep.subr.mxu0 0.0
  %474 = vmatpush1.msra.mxu0 0.0
  %475 = vmatprep.subr.mxu0 0.0
  %476 = vmatpush1.msra.mxu0 0.0
  %477 = vmatprep.subr.mxu0 0.0
  %478 = vmatpush1.msra.mxu0 0.0
  %479 = vmatprep.subr.mxu0 0.0
  %480 = vmatpush1.msra.mxu0 0.0
  %481 = vmatprep.subr.mxu0 0.0
  %482 = vmatpush1.msra.mxu0 0.0
  %483 = vmatprep.subr.mxu0 0.0
  %484 = vmatpush1.msra.mxu0 0.0
  %485 = vmatprep.subr.mxu0 0.0
  %486 = vmatpush1.msra.mxu0 0.0
  %487 = vmatprep.subr.mxu0 0.0
  %488 = vmatpush1.msra.mxu0 0.0
  %489 = vmatprep.subr.mxu0 0.0
  %490 = vmatpush1.msra.mxu0 0.0
  %491 = vmatprep.subr.mxu0 0.0
  %492 = vmatpush1.msra.mxu0 0.0
  %493 = vmatprep.subr.mxu0 0.0
  %494 = vmatpush1.msra.mxu0 0.0
  %495 = vmatprep.subr.mxu0 0.0
  %496 = vmatpush1.msra.mxu0 0.0
  %497 = vmatprep.mubr.f32.mxu0 0.0
  %v498 = vand.u32 %v57, 4294901760
  %v499 = vsub.f32 %v57, %v498
  %v500 = vand.u32 %v499, 4294901760
  %501 = vmatmul.mubr.f32.gmra.mrb[0].mxu0 %v500
  %v502 = vpop.f32.mrb[0].mxu0
  %v503 = vadd.f32 %v400, %v502
  %v504 = vpop.f32.mrb[0].mxu0
  %505 = vmatprep.mubr.f32.mxu0 0.0
  %v506 = vand.u32 %v59, 4294901760
  %v507 = vsub.f32 %v59, %v506
  %v508 = vand.u32 %v507, 4294901760
  %509 = vmatmul.mubr.f32.gmra.mrb[0].mxu0 %v508
  %v510 = vpop.f32.mrb[0].mxu0
  %v511 = vadd.f32 %v407, %v510
  %v512 = vpop.f32.mrb[0].mxu0
  %513 = vmatprep.mubr.f32.mxu0 0.0
  %v514 = vand.u32 %v61, 4294901760
  %v515 = vsub.f32 %v61, %v514
  %v516 = vand.u32 %v515, 4294901760
  %517 = vmatmul.mubr.f32.gmra.mrb[0].mxu0 %v516
  %v518 = vpop.f32.mrb[0].mxu0
  %v519 = vadd.f32 %v414, %v518
  %v520 = vpop.f32.mrb[0].mxu0
  %521 = vmatprep.mubr.f32.mxu0 0.0
  %v522 = vand.u32 %v63, 4294901760
  %v523 = vsub.f32 %v63, %v522
  %v524 = vand.u32 %v523, 4294901760
  %525 = vmatmul.mubr.f32.gmra.mrb[0].mxu0 %v524
  %v526 = vpop.f32.mrb[0].mxu0
  %v527 = vadd.f32 %v421, %v526
  %v528 = vpop.f32.mrb[0].mxu0
  %529 = vdwg.mxu0
  %530 = vmatprep.subr.mxu0 0.0
  %v531 = vand.u32 %v47, 4294901760
  %v532 = vsub.f32 %v47, %v531
  %v533 = vand.u32 %v532, 4294901760
  %534 = vmatpush1.msra.mxu0 %v533
  %535 = vmatprep.subr.mxu0 0.0
  %v536 = vand.u32 %v48, 4294901760
  %v537 = vsub.f32 %v48, %v536
  %v538 = vand.u32 %v537, 4294901760
  %539 = vmatpush1.msra.mxu0 %v538
  %540 = vmatprep.subr.mxu0 0.0
  %v541 = vand.u32 %v49, 4294901760
  %v542 = vsub.f32 %v49, %v541
  %v543 = vand.u32 %v542, 4294901760
  %544 = vmatpush1.msra.mxu0 %v543
  %545 = vmatprep.subr.mxu0 0.0
  %v546 = vand.u32 %v50, 4294901760
  %v547 = vsub.f32 %v50, %v546
  %v548 = vand.u32 %v547, 4294901760
  %549 = vmatpush1.msra.mxu0 %v548
  %550 = vmatprep.subr.mxu0 0.0
  %v551 = vand.u32 %v51, 4294901760
  %v552 = vsub.f32 %v51, %v551
  %v553 = vand.u32 %v552, 4294901760
  %554 = vmatpush1.msra.mxu0 %v553
  %555 = vmatprep.subr.mxu0 0.0
  %v556 = vand.u32 %v52, 4294901760
  %v557 = vsub.f32 %v52, %v556
  %v558 = vand.u32 %v557, 4294901760
  %559 = vmatpush1.msra.mxu0 %v558
  %560 = vmatprep.subr.mxu0 0.0
  %v561 = vand.u32 %v53, 4294901760
  %v562 = vsub.f32 %v53, %v561
  %v563 = vand.u32 %v562, 4294901760
  %564 = vmatpush1.msra.mxu0 %v563
  %565 = vmatprep.subr.mxu0 0.0
  %v566 = vand.u32 %v54, 4294901760
  %v567 = vsub.f32 %v54, %v566
  %v568 = vand.u32 %v567, 4294901760
  %569 = vmatpush1.msra.mxu0 %v568
  %570 = vmatprep.subr.mxu0 0.0
  %v571 = vand.u32 %v55, 4294901760
  %v572 = vsub.f32 %v55, %v571
  %v573 = vand.u32 %v572, 4294901760
  %574 = vmatpush1.msra.mxu0 %v573
  %575 = vmatprep.subr.mxu0 0.0
  %576 = vmatpush1.msra.mxu0 0.0
  %577 = vmatprep.subr.mxu0 0.0
  %578 = vmatpush1.msra.mxu0 0.0
  %579 = vmatprep.subr.mxu0 0.0
  %580 = vmatpush1.msra.mxu0 0.0
  %581 = vmatprep.subr.mxu0 0.0
  %582 = vmatpush1.msra.mxu0 0.0
  %583 = vmatprep.subr.mxu0 0.0
  %584 = vmatpush1.msra.mxu0 0.0
  %585 = vmatprep.subr.mxu0 0.0
  %586 = vmatpush1.msra.mxu0 0.0
  %587 = vmatprep.subr.mxu0 0.0
  %588 = vmatpush1.msra.mxu0 0.0
  %589 = vmatprep.subr.mxu0 0.0
  %590 = vmatpush1.msra.mxu0 0.0
  %591 = vmatprep.subr.mxu0 0.0
  %592 = vmatpush1.msra.mxu0 0.0
  %593 = vmatprep.subr.mxu0 0.0
  %594 = vmatpush1.msra.mxu0 0.0
  %595 = vmatprep.subr.mxu0 0.0
  %596 = vmatpush1.msra.mxu0 0.0
  %597 = vmatprep.subr.mxu0 0.0
  %598 = vmatpush1.msra.mxu0 0.0
  %599 = vmatprep.subr.mxu0 0.0
  %600 = vmatpush1.msra.mxu0 0.0
  %601 = vmatprep.subr.mxu0 0.0
  %602 = vmatpush1.msra.mxu0 0.0
  %603 = vmatprep.subr.mxu0 0.0
  %604 = vmatpush1.msra.mxu0 0.0
  %605 = vmatprep.subr.mxu0 0.0
  %606 = vmatpush1.msra.mxu0 0.0
  %607 = vmatprep.subr.mxu0 0.0
  %608 = vmatpush1.msra.mxu0 0.0
  %609 = vmatprep.subr.mxu0 0.0
  %610 = vmatpush1.msra.mxu0 0.0
  %611 = vmatprep.subr.mxu0 0.0
  %612 = vmatpush1.msra.mxu0 0.0
  %613 = vmatprep.subr.mxu0 0.0
  %614 = vmatpush1.msra.mxu0 0.0
  %615 = vmatprep.subr.mxu0 0.0
  %616 = vmatpush1.msra.mxu0 0.0
  %617 = vmatprep.subr.mxu0 0.0
  %618 = vmatpush1.msra.mxu0 0.0
  %619 = vmatprep.subr.mxu0 0.0
  %620 = vmatpush1.msra.mxu0 0.0
  %621 = vmatprep.mubr.f32.mxu0 0.0
  %v622 = vand.u32 %v57, 4294901760
  %623 = vmatmul.mubr.f32.gmra.mrb[0].mxu0 %v622
  %v624 = vpop.f32.mrb[0].mxu0
  %v625 = vadd.f32 %v503, %v624
  %v626 = vpop.f32.mrb[0].mxu0
  %627 = vmatprep.mubr.f32.mxu0 0.0
  %v628 = vand.u32 %v59, 4294901760
  %629 = vmatmul.mubr.f32.gmra.mrb[0].mxu0 %v628
  %v630 = vpop.f32.mrb[0].mxu0
  %v631 = vadd.f32 %v511, %v630
  %v632 = vpop.f32.mrb[0].mxu0
  %633 = vmatprep.mubr.f32.mxu0 0.0
  %v634 = vand.u32 %v61, 4294901760
  %635 = vmatmul.mubr.f32.gmra.mrb[0].mxu0 %v634
  %v636 = vpop.f32.mrb[0].mxu0
  %v637 = vadd.f32 %v519, %v636
  %v638 = vpop.f32.mrb[0].mxu0
  %639 = vmatprep.mubr.f32.mxu0 0.0
  %v640 = vand.u32 %v63, 4294901760
  %641 = vmatmul.mubr.f32.gmra.mrb[0].mxu0 %v640
  %v642 = vpop.f32.mrb[0].mxu0
  %v643 = vadd.f32 %v527, %v642
  %v644 = vpop.f32.mrb[0].mxu0
  %645 = vdwg.mxu0
  %646 = vmatprep.subr.mxu0 0.0
  %v647 = vand.u32 %v47, 4294901760
  %648 = vmatpush1.msra.mxu0 %v647
  %649 = vmatprep.subr.mxu0 0.0
  %v650 = vand.u32 %v48, 4294901760
  %651 = vmatpush1.msra.mxu0 %v650
  %652 = vmatprep.subr.mxu0 0.0
  %v653 = vand.u32 %v49, 4294901760
  %654 = vmatpush1.msra.mxu0 %v653
  %655 = vmatprep.subr.mxu0 0.0
  %v656 = vand.u32 %v50, 4294901760
  %657 = vmatpush1.msra.mxu0 %v656
  %658 = vmatprep.subr.mxu0 0.0
  %v659 = vand.u32 %v51, 4294901760
  %660 = vmatpush1.msra.mxu0 %v659
  %661 = vmatprep.subr.mxu0 0.0
  %v662 = vand.u32 %v52, 4294901760
  %663 = vmatpush1.msra.mxu0 %v662
  %664 = vmatprep.subr.mxu0 0.0
  %v665 = vand.u32 %v53, 4294901760
  %666 = vmatpush1.msra.mxu0 %v665
  %667 = vmatprep.subr.mxu0 0.0
  %v668 = vand.u32 %v54, 4294901760
  %669 = vmatpush1.msra.mxu0 %v668
  %670 = vmatprep.subr.mxu0 0.0
  %v671 = vand.u32 %v55, 4294901760
  %672 = vmatpush1.msra.mxu0 %v671
  %673 = vmatprep.subr.mxu0 0.0
  %674 = vmatpush1.msra.mxu0 0.0
  %675 = vmatprep.subr.mxu0 0.0
  %676 = vmatpush1.msra.mxu0 0.0
  %677 = vmatprep.subr.mxu0 0.0
  %678 = vmatpush1.msra.mxu0 0.0
  %679 = vmatprep.subr.mxu0 0.0
  %680 = vmatpush1.msra.mxu0 0.0
  %681 = vmatprep.subr.mxu0 0.0
  %682 = vmatpush1.msra.mxu0 0.0
  %683 = vmatprep.subr.mxu0 0.0
  %684 = vmatpush1.msra.mxu0 0.0
  %685 = vmatprep.subr.mxu0 0.0
  %686 = vmatpush1.msra.mxu0 0.0
  %687 = vmatprep.subr.mxu0 0.0
  %688 = vmatpush1.msra.mxu0 0.0
  %689 = vmatprep.subr.mxu0 0.0
  %690 = vmatpush1.msra.mxu0 0.0
  %691 = vmatprep.subr.mxu0 0.0
  %692 = vmatpush1.msra.mxu0 0.0
  %693 = vmatprep.subr.mxu0 0.0
  %694 = vmatpush1.msra.mxu0 0.0
  %695 = vmatprep.subr.mxu0 0.0
  %696 = vmatpush1.msra.mxu0 0.0
  %697 = vmatprep.subr.mxu0 0.0
  %698 = vmatpush1.msra.mxu0 0.0
  %699 = vmatprep.subr.mxu0 0.0
  %700 = vmatpush1.msra.mxu0 0.0
  %701 = vmatprep.subr.mxu0 0.0
  %702 = vmatpush1.msra.mxu0 0.0
  %703 = vmatprep.subr.mxu0 0.0
  %704 = vmatpush1.msra.mxu0 0.0
  %705 = vmatprep.subr.mxu0 0.0
  %706 = vmatpush1.msra.mxu0 0.0
  %707 = vmatprep.subr.mxu0 0.0
  %708 = vmatpush1.msra.mxu0 0.0
  %709 = vmatprep.subr.mxu0 0.0
  %710 = vmatpush1.msra.mxu0 0.0
  %711 = vmatprep.subr.mxu0 0.0
  %712 = vmatpush1.msra.mxu0 0.0
  %713 = vmatprep.subr.mxu0 0.0
  %714 = vmatpush1.msra.mxu0 0.0
  %715 = vmatprep.subr.mxu0 0.0
  %716 = vmatpush1.msra.mxu0 0.0
  %717 = vmatprep.subr.mxu0 0.0
  %718 = vmatpush1.msra.mxu0 0.0
  %719 = vmatprep.mubr.f32.mxu0 0.0
  %v720 = vand.u32 %v57, 4294901760
  %721 = vmatmul.mubr.f32.gmra.mrb[0].mxu0 %v720
  %v722 = vpop.f32.mrb[0].mxu0
  %v723 = vadd.f32 %v625, %v722
  %v724 = vpop.f32.mrb[0].mxu0
  %725 = vmatprep.mubr.f32.mxu0 0.0
  %v726 = vand.u32 %v59, 4294901760
  %727 = vmatmul.mubr.f32.gmra.mrb[0].mxu0 %v726
  %v728 = vpop.f32.mrb[0].mxu0
  %v729 = vadd.f32 %v631, %v728
  %v730 = vpop.f32.mrb[0].mxu0
  %731 = vmatprep.mubr.f32.mxu0 0.0
  %v732 = vand.u32 %v61, 4294901760
  %733 = vmatmul.mubr.f32.gmra.mrb[0].mxu0 %v732
  %v734 = vpop.f32.mrb[0].mxu0
  %v735 = vadd.f32 %v637, %v734
  %v736 = vpop.f32.mrb[0].mxu0
  %737 = vmatprep.mubr.f32.mxu0 0.0
  %v738 = vand.u32 %v63, 4294901760
  %739 = vmatmul.mubr.f32.gmra.mrb[0].mxu0 %v738
  %v740 = vpop.f32.mrb[0].mxu0
  %v741 = vadd.f32 %v643, %v740
  %v742 = vpop.f32.mrb[0].mxu0
  %743 = vdwg.mxu0
  %v744 = vsel %vm56, %v14, 0
  %v746 = vsel %vm56, %v15, 0
  %v748 = vsel %vm56, %v17, 0
  %v750 = vsel %vm56, %v18, 0
  %752 = vmatprep.subr.mxu0 0.0
  %v753 = vand.u32 %v20, 4294901760
  %754 = vmatpush1.msra.mxu0 %v753
  %755 = vmatprep.subr.mxu0 0.0
  %v756 = vand.u32 %v21, 4294901760
  %757 = vmatpush1.msra.mxu0 %v756
  %758 = vmatprep.subr.mxu0 0.0
  %v759 = vand.u32 %v22, 4294901760
  %760 = vmatpush1.msra.mxu0 %v759
  %761 = vmatprep.subr.mxu0 0.0
  %v762 = vand.u32 %v23, 4294901760
  %763 = vmatpush1.msra.mxu0 %v762
  %764 = vmatprep.subr.mxu0 0.0
  %v765 = vand.u32 %v24, 4294901760
  %766 = vmatpush1.msra.mxu0 %v765
  %767 = vmatprep.subr.mxu0 0.0
  %v768 = vand.u32 %v25, 4294901760
  %769 = vmatpush1.msra.mxu0 %v768
  %770 = vmatprep.subr.mxu0 0.0
  %v771 = vand.u32 %v26, 4294901760
  %772 = vmatpush1.msra.mxu0 %v771
  %773 = vmatprep.subr.mxu0 0.0
  %v774 = vand.u32 %v27, 4294901760
  %775 = vmatpush1.msra.mxu0 %v774
  %776 = vmatprep.subr.mxu0 0.0
  %v777 = vand.u32 %v28, 4294901760
  %778 = vmatpush1.msra.mxu0 %v777
  %779 = vmatprep.subr.mxu0 0.0
  %780 = vmatpush1.msra.mxu0 0.0
  %781 = vmatprep.subr.mxu0 0.0
  %782 = vmatpush1.msra.mxu0 0.0
  %783 = vmatprep.subr.mxu0 0.0
  %784 = vmatpush1.msra.mxu0 0.0
  %785 = vmatprep.subr.mxu0 0.0
  %786 = vmatpush1.msra.mxu0 0.0
  %787 = vmatprep.subr.mxu0 0.0
  %788 = vmatpush1.msra.mxu0 0.0
  %789 = vmatprep.subr.mxu0 0.0
  %790 = vmatpush1.msra.mxu0 0.0
  %791 = vmatprep.subr.mxu0 0.0
  %792 = vmatpush1.msra.mxu0 0.0
  %793 = vmatprep.subr.mxu0 0.0
  %794 = vmatpush1.msra.mxu0 0.0
  %795 = vmatprep.subr.mxu0 0.0
  %796 = vmatpush1.msra.mxu0 0.0
  %797 = vmatprep.subr.mxu0 0.0
  %798 = vmatpush1.msra.mxu0 0.0
  %799 = vmatprep.subr.mxu0 0.0
  %800 = vmatpush1.msra.mxu0 0.0
  %801 = vmatprep.subr.mxu0 0.0
  %802 = vmatpush1.msra.mxu0 0.0
  %803 = vmatprep.subr.mxu0 0.0
  %804 = vmatpush1.msra.mxu0 0.0
  %805 = vmatprep.subr.mxu0 0.0
  %806 = vmatpush1.msra.mxu0 0.0
  %807 = vmatprep.subr.mxu0 0.0
  %808 = vmatpush1.msra.mxu0 0.0
  %809 = vmatprep.subr.mxu0 0.0
  %810 = vmatpush1.msra.mxu0 0.0
  %811 = vmatprep.subr.mxu0 0.0
  %812 = vmatpush1.msra.mxu0 0.0
  %813 = vmatprep.subr.mxu0 0.0
  %814 = vmatpush1.msra.mxu0 0.0
  %815 = vmatprep.subr.mxu0 0.0
  %816 = vmatpush1.msra.mxu0 0.0
  %817 = vmatprep.subr.mxu0 0.0
  %818 = vmatpush1.msra.mxu0 0.0
  %819 = vmatprep.subr.mxu0 0.0
  %820 = vmatpush1.msra.mxu0 0.0
  %821 = vmatprep.subr.mxu0 0.0
  %822 = vmatpush1.msra.mxu0 0.0
  %823 = vmatprep.subr.mxu0 0.0
  %824 = vmatpush1.msra.mxu0 0.0
  %825 = vmatprep.mubr.f32.mxu0 0.0
  %v826 = vand.u32 %v744, 4294901760
  %v827 = vsub.f32 %v744, %v826
  %v828 = vand.u32 %v827, 4294901760
  %v829 = vsub.f32 %v827, %v828
  %v830 = vand.u32 %v829, 4294901760
  %831 = vmatmul.mubr.f32.gmra.mrb[0].mxu0 %v830
  %v832 = vpop.f32.mrb[0].mxu0
  %v833 = vadd.f32 %v723, %v832
  %v834 = vpop.f32.mrb[0].mxu0
  %835 = vmatprep.mubr.f32.mxu0 0.0
  %v836 = vand.u32 %v746, 4294901760
  %v837 = vsub.f32 %v746, %v836
  %v838 = vand.u32 %v837, 4294901760
  %v839 = vsub.f32 %v837, %v838
  %v840 = vand.u32 %v839, 4294901760
  %841 = vmatmul.mubr.f32.gmra.mrb[0].mxu0 %v840
  %v842 = vpop.f32.mrb[0].mxu0
  %v843 = vadd.f32 %v729, %v842
  %v844 = vpop.f32.mrb[0].mxu0
  %845 = vmatprep.mubr.f32.mxu0 0.0
  %v846 = vand.u32 %v748, 4294901760
  %v847 = vsub.f32 %v748, %v846
  %v848 = vand.u32 %v847, 4294901760
  %v849 = vsub.f32 %v847, %v848
  %v850 = vand.u32 %v849, 4294901760
  %851 = vmatmul.mubr.f32.gmra.mrb[0].mxu0 %v850
  %v852 = vpop.f32.mrb[0].mxu0
  %v853 = vadd.f32 %v735, %v852
  %v854 = vpop.f32.mrb[0].mxu0
  %855 = vmatprep.mubr.f32.mxu0 0.0
  %v856 = vand.u32 %v750, 4294901760
  %v857 = vsub.f32 %v750, %v856
  %v858 = vand.u32 %v857, 4294901760
  %v859 = vsub.f32 %v857, %v858
  %v860 = vand.u32 %v859, 4294901760
  %861 = vmatmul.mubr.f32.gmra.mrb[0].mxu0 %v860
  %v862 = vpop.f32.mrb[0].mxu0
  %v863 = vadd.f32 %v741, %v862
  %v864 = vpop.f32.mrb[0].mxu0
  %865 = vdwg.mxu0
  %866 = vmatprep.subr.mxu0 0.0
  %v867 = vand.u32 %v20, 4294901760
  %v868 = vsub.f32 %v20, %v867
  %v869 = vand.u32 %v868, 4294901760
  %v870 = vsub.f32 %v868, %v869
  %v871 = vand.u32 %v870, 4294901760
  %872 = vmatpush1.msra.mxu0 %v871
  %873 = vmatprep.subr.mxu0 0.0
  %v874 = vand.u32 %v21, 4294901760
  %v875 = vsub.f32 %v21, %v874
  %v876 = vand.u32 %v875, 4294901760
  %v877 = vsub.f32 %v875, %v876
  %v878 = vand.u32 %v877, 4294901760
  %879 = vmatpush1.msra.mxu0 %v878
  %880 = vmatprep.subr.mxu0 0.0
  %v881 = vand.u32 %v22, 4294901760
  %v882 = vsub.f32 %v22, %v881
  %v883 = vand.u32 %v882, 4294901760
  %v884 = vsub.f32 %v882, %v883
  %v885 = vand.u32 %v884, 4294901760
  %886 = vmatpush1.msra.mxu0 %v885
  %887 = vmatprep.subr.mxu0 0.0
  %v888 = vand.u32 %v23, 4294901760
  %v889 = vsub.f32 %v23, %v888
  %v890 = vand.u32 %v889, 4294901760
  %v891 = vsub.f32 %v889, %v890
  %v892 = vand.u32 %v891, 4294901760
  %893 = vmatpush1.msra.mxu0 %v892
  %894 = vmatprep.subr.mxu0 0.0
  %v895 = vand.u32 %v24, 4294901760
  %v896 = vsub.f32 %v24, %v895
  %v897 = vand.u32 %v896, 4294901760
  %v898 = vsub.f32 %v896, %v897
  %v899 = vand.u32 %v898, 4294901760
  %900 = vmatpush1.msra.mxu0 %v899
  %901 = vmatprep.subr.mxu0 0.0
  %v902 = vand.u32 %v25, 4294901760
  %v903 = vsub.f32 %v25, %v902
  %v904 = vand.u32 %v903, 4294901760
  %v905 = vsub.f32 %v903, %v904
  %v906 = vand.u32 %v905, 4294901760
  %907 = vmatpush1.msra.mxu0 %v906
  %908 = vmatprep.subr.mxu0 0.0
  %v909 = vand.u32 %v26, 4294901760
  %v910 = vsub.f32 %v26, %v909
  %v911 = vand.u32 %v910, 4294901760
  %v912 = vsub.f32 %v910, %v911
  %v913 = vand.u32 %v912, 4294901760
  %914 = vmatpush1.msra.mxu0 %v913
  %915 = vmatprep.subr.mxu0 0.0
  %v916 = vand.u32 %v27, 4294901760
  %v917 = vsub.f32 %v27, %v916
  %v918 = vand.u32 %v917, 4294901760
  %v919 = vsub.f32 %v917, %v918
  %v920 = vand.u32 %v919, 4294901760
  %921 = vmatpush1.msra.mxu0 %v920
  %922 = vmatprep.subr.mxu0 0.0
  %v923 = vand.u32 %v28, 4294901760
  %v924 = vsub.f32 %v28, %v923
  %v925 = vand.u32 %v924, 4294901760
  %v926 = vsub.f32 %v924, %v925
  %v927 = vand.u32 %v926, 4294901760
  %928 = vmatpush1.msra.mxu0 %v927
  %929 = vmatprep.subr.mxu0 0.0
  %930 = vmatpush1.msra.mxu0 0.0
  %931 = vmatprep.subr.mxu0 0.0
  %932 = vmatpush1.msra.mxu0 0.0
  %933 = vmatprep.subr.mxu0 0.0
  %934 = vmatpush1.msra.mxu0 0.0
  %935 = vmatprep.subr.mxu0 0.0
  %936 = vmatpush1.msra.mxu0 0.0
  %937 = vmatprep.subr.mxu0 0.0
  %938 = vmatpush1.msra.mxu0 0.0
  %939 = vmatprep.subr.mxu0 0.0
  %940 = vmatpush1.msra.mxu0 0.0
  %941 = vmatprep.subr.mxu0 0.0
  %942 = vmatpush1.msra.mxu0 0.0
  %943 = vmatprep.subr.mxu0 0.0
  %944 = vmatpush1.msra.mxu0 0.0
  %945 = vmatprep.subr.mxu0 0.0
  %946 = vmatpush1.msra.mxu0 0.0
  %947 = vmatprep.subr.mxu0 0.0
  %948 = vmatpush1.msra.mxu0 0.0
  %949 = vmatprep.subr.mxu0 0.0
  %950 = vmatpush1.msra.mxu0 0.0
  %951 = vmatprep.subr.mxu0 0.0
  %952 = vmatpush1.msra.mxu0 0.0
  %953 = vmatprep.subr.mxu0 0.0
  %954 = vmatpush1.msra.mxu0 0.0
  %955 = vmatprep.subr.mxu0 0.0
  %956 = vmatpush1.msra.mxu0 0.0
  %957 = vmatprep.subr.mxu0 0.0
  %958 = vmatpush1.msra.mxu0 0.0
  %959 = vmatprep.subr.mxu0 0.0
  %960 = vmatpush1.msra.mxu0 0.0
  %961 = vmatprep.subr.mxu0 0.0
  %962 = vmatpush1.msra.mxu0 0.0
  %963 = vmatprep.subr.mxu0 0.0
  %964 = vmatpush1.msra.mxu0 0.0
  %965 = vmatprep.subr.mxu0 0.0
  %966 = vmatpush1.msra.mxu0 0.0
  %967 = vmatprep.subr.mxu0 0.0
  %968 = vmatpush1.msra.mxu0 0.0
  %969 = vmatprep.subr.mxu0 0.0
  %970 = vmatpush1.msra.mxu0 0.0
  %971 = vmatprep.subr.mxu0 0.0
  %972 = vmatpush1.msra.mxu0 0.0
  %973 = vmatprep.subr.mxu0 0.0
  %974 = vmatpush1.msra.mxu0 0.0
  %975 = vmatprep.mubr.f32.mxu0 0.0
  %v976 = vand.u32 %v744, 4294901760
  %977 = vmatmul.mubr.f32.gmra.mrb[0].mxu0 %v976
  %v978 = vpop.f32.mrb[0].mxu0
  %v979 = vadd.f32 %v833, %v978
  %v980 = vpop.f32.mrb[0].mxu0
  %981 = vmatprep.mubr.f32.mxu0 0.0
  %v982 = vand.u32 %v746, 4294901760
  %983 = vmatmul.mubr.f32.gmra.mrb[0].mxu0 %v982
  %v984 = vpop.f32.mrb[0].mxu0
  %v985 = vadd.f32 %v843, %v984
  %v986 = vpop.f32.mrb[0].mxu0
  %987 = vmatprep.mubr.f32.mxu0 0.0
  %v988 = vand.u32 %v748, 4294901760
  %989 = vmatmul.mubr.f32.gmra.mrb[0].mxu0 %v988
  %v990 = vpop.f32.mrb[0].mxu0
  %v991 = vadd.f32 %v853, %v990
  %v992 = vpop.f32.mrb[0].mxu0
  %993 = vmatprep.mubr.f32.mxu0 0.0
  %v994 = vand.u32 %v750, 4294901760
  %995 = vmatmul.mubr.f32.gmra.mrb[0].mxu0 %v994
  %v996 = vpop.f32.mrb[0].mxu0
  %v997 = vadd.f32 %v863, %v996
  %v998 = vpop.f32.mrb[0].mxu0
  %999 = vdwg.mxu0
  %1000 = vmatprep.subr.mxu0 0.0
  %v1001 = vand.u32 %v20, 4294901760
  %v1002 = vsub.f32 %v20, %v1001
  %1003 = vmatpush1.msra.mxu0 %v1002
  %1004 = vmatprep.subr.mxu0 0.0
  %v1005 = vand.u32 %v21, 4294901760
  %v1006 = vsub.f32 %v21, %v1005
  %1007 = vmatpush1.msra.mxu0 %v1006
  %1008 = vmatprep.subr.mxu0 0.0
  %v1009 = vand.u32 %v22, 4294901760
  %v1010 = vsub.f32 %v22, %v1009
  %1011 = vmatpush1.msra.mxu0 %v1010
  %1012 = vmatprep.subr.mxu0 0.0
  %v1013 = vand.u32 %v23, 4294901760
  %v1014 = vsub.f32 %v23, %v1013
  %1015 = vmatpush1.msra.mxu0 %v1014
  %1016 = vmatprep.subr.mxu0 0.0
  %v1017 = vand.u32 %v24, 4294901760
  %v1018 = vsub.f32 %v24, %v1017
  %1019 = vmatpush1.msra.mxu0 %v1018
  %1020 = vmatprep.subr.mxu0 0.0
  %v1021 = vand.u32 %v25, 4294901760
  %v1022 = vsub.f32 %v25, %v1021
  %1023 = vmatpush1.msra.mxu0 %v1022
  %1024 = vmatprep.subr.mxu0 0.0
  %v1025 = vand.u32 %v26, 4294901760
  %v1026 = vsub.f32 %v26, %v1025
  %1027 = vmatpush1.msra.mxu0 %v1026
  %1028 = vmatprep.subr.mxu0 0.0
  %v1029 = vand.u32 %v27, 4294901760
  %v1030 = vsub.f32 %v27, %v1029
  %1031 = vmatpush1.msra.mxu0 %v1030
  %1032 = vmatprep.subr.mxu0 0.0
  %v1033 = vand.u32 %v28, 4294901760
  %v1034 = vsub.f32 %v28, %v1033
  %1035 = vmatpush1.msra.mxu0 %v1034
  %1036 = vmatprep.subr.mxu0 0.0
  %1037 = vmatpush1.msra.mxu0 0.0
  %1038 = vmatprep.subr.mxu0 0.0
  %1039 = vmatpush1.msra.mxu0 0.0
  %1040 = vmatprep.subr.mxu0 0.0
  %1041 = vmatpush1.msra.mxu0 0.0
  %1042 = vmatprep.subr.mxu0 0.0
  %1043 = vmatpush1.msra.mxu0 0.0
  %1044 = vmatprep.subr.mxu0 0.0
  %1045 = vmatpush1.msra.mxu0 0.0
  %1046 = vmatprep.subr.mxu0 0.0
  %1047 = vmatpush1.msra.mxu0 0.0
  %1048 = vmatprep.subr.mxu0 0.0
  %1049 = vmatpush1.msra.mxu0 0.0
  %1050 = vmatprep.subr.mxu0 0.0
  %1051 = vmatpush1.msra.mxu0 0.0
  %1052 = vmatprep.subr.mxu0 0.0
  %1053 = vmatpush1.msra.mxu0 0.0
  %1054 = vmatprep.subr.mxu0 0.0
  %1055 = vmatpush1.msra.mxu0 0.0
  %1056 = vmatprep.subr.mxu0 0.0
  %1057 = vmatpush1.msra.mxu0 0.0
  %1058 = vmatprep.subr.mxu0 0.0
  %1059 = vmatpush1.msra.mxu0 0.0
  %1060 = vmatprep.subr.mxu0 0.0
  %1061 = vmatpush1.msra.mxu0 0.0
  %1062 = vmatprep.subr.mxu0 0.0
  %1063 = vmatpush1.msra.mxu0 0.0
  %1064 = vmatprep.subr.mxu0 0.0
  %1065 = vmatpush1.msra.mxu0 0.0
  %1066 = vmatprep.subr.mxu0 0.0
  %1067 = vmatpush1.msra.mxu0 0.0
  %1068 = vmatprep.subr.mxu0 0.0
  %1069 = vmatpush1.msra.mxu0 0.0
  %1070 = vmatprep.subr.mxu0 0.0
  %1071 = vmatpush1.msra.mxu0 0.0
  %1072 = vmatprep.subr.mxu0 0.0
  %1073 = vmatpush1.msra.mxu0 0.0
  %1074 = vmatprep.subr.mxu0 0.0
  %1075 = vmatpush1.msra.mxu0 0.0
  %1076 = vmatprep.subr.mxu0 0.0
  %1077 = vmatpush1.msra.mxu0 0.0
  %1078 = vmatprep.subr.mxu0 0.0
  %1079 = vmatpush1.msra.mxu0 0.0
  %1080 = vmatprep.subr.mxu0 0.0
  %1081 = vmatpush1.msra.mxu0 0.0
  %1082 = vmatprep.mubr.f32.mxu0 0.0
  %v1083 = vand.u32 %v744, 4294901760
  %v1084 = vsub.f32 %v744, %v1083
  %1085 = vmatmul.mubr.f32.gmra.mrb[0].mxu0 %v1084
  %v1086 = vpop.f32.mrb[0].mxu0
  %v1087 = vadd.f32 %v979, %v1086
  %v1088 = vpop.f32.mrb[0].mxu0
  %1089 = vmatprep.mubr.f32.mxu0 0.0
  %v1090 = vand.u32 %v746, 4294901760
  %v1091 = vsub.f32 %v746, %v1090
  %1092 = vmatmul.mubr.f32.gmra.mrb[0].mxu0 %v1091
  %v1093 = vpop.f32.mrb[0].mxu0
  %v1094 = vadd.f32 %v985, %v1093
  %v1095 = vpop.f32.mrb[0].mxu0
  %1096 = vmatprep.mubr.f32.mxu0 0.0
  %v1097 = vand.u32 %v748, 4294901760
  %v1098 = vsub.f32 %v748, %v1097
  %1099 = vmatmul.mubr.f32.gmra.mrb[0].mxu0 %v1098
  %v1100 = vpop.f32.mrb[0].mxu0
  %v1101 = vadd.f32 %v991, %v1100
  %v1102 = vpop.f32.mrb[0].mxu0
  %1103 = vmatprep.mubr.f32.mxu0 0.0
  %v1104 = vand.u32 %v750, 4294901760
  %v1105 = vsub.f32 %v750, %v1104
  %1106 = vmatmul.mubr.f32.gmra.mrb[0].mxu0 %v1105
  %v1107 = vpop.f32.mrb[0].mxu0
  %v1108 = vadd.f32 %v997, %v1107
  %v1109 = vpop.f32.mrb[0].mxu0
  %1110 = vdwg.mxu0
  %1111 = vmatprep.subr.mxu0 0.0
  %v1112 = vand.u32 %v20, 4294901760
  %1113 = vmatpush1.msra.mxu0 %v1112
  %1114 = vmatprep.subr.mxu0 0.0
  %v1115 = vand.u32 %v21, 4294901760
  %1116 = vmatpush1.msra.mxu0 %v1115
  %1117 = vmatprep.subr.mxu0 0.0
  %v1118 = vand.u32 %v22, 4294901760
  %1119 = vmatpush1.msra.mxu0 %v1118
  %1120 = vmatprep.subr.mxu0 0.0
  %v1121 = vand.u32 %v23, 4294901760
  %1122 = vmatpush1.msra.mxu0 %v1121
  %1123 = vmatprep.subr.mxu0 0.0
  %v1124 = vand.u32 %v24, 4294901760
  %1125 = vmatpush1.msra.mxu0 %v1124
  %1126 = vmatprep.subr.mxu0 0.0
  %v1127 = vand.u32 %v25, 4294901760
  %1128 = vmatpush1.msra.mxu0 %v1127
  %1129 = vmatprep.subr.mxu0 0.0
  %v1130 = vand.u32 %v26, 4294901760
  %1131 = vmatpush1.msra.mxu0 %v1130
  %1132 = vmatprep.subr.mxu0 0.0
  %v1133 = vand.u32 %v27, 4294901760
  %1134 = vmatpush1.msra.mxu0 %v1133
  %1135 = vmatprep.subr.mxu0 0.0
  %v1136 = vand.u32 %v28, 4294901760
  %1137 = vmatpush1.msra.mxu0 %v1136
  %1138 = vmatprep.subr.mxu0 0.0
  %1139 = vmatpush1.msra.mxu0 0.0
  %1140 = vmatprep.subr.mxu0 0.0
  %1141 = vmatpush1.msra.mxu0 0.0
  %1142 = vmatprep.subr.mxu0 0.0
  %1143 = vmatpush1.msra.mxu0 0.0
  %1144 = vmatprep.subr.mxu0 0.0
  %1145 = vmatpush1.msra.mxu0 0.0
  %1146 = vmatprep.subr.mxu0 0.0
  %1147 = vmatpush1.msra.mxu0 0.0
  %1148 = vmatprep.subr.mxu0 0.0
  %1149 = vmatpush1.msra.mxu0 0.0
  %1150 = vmatprep.subr.mxu0 0.0
  %1151 = vmatpush1.msra.mxu0 0.0
  %1152 = vmatprep.subr.mxu0 0.0
  %1153 = vmatpush1.msra.mxu0 0.0
  %1154 = vmatprep.subr.mxu0 0.0
  %1155 = vmatpush1.msra.mxu0 0.0
  %1156 = vmatprep.subr.mxu0 0.0
  %1157 = vmatpush1.msra.mxu0 0.0
  %1158 = vmatprep.subr.mxu0 0.0
  %1159 = vmatpush1.msra.mxu0 0.0
  %1160 = vmatprep.subr.mxu0 0.0
  %1161 = vmatpush1.msra.mxu0 0.0
  %1162 = vmatprep.subr.mxu0 0.0
  %1163 = vmatpush1.msra.mxu0 0.0
  %1164 = vmatprep.subr.mxu0 0.0
  %1165 = vmatpush1.msra.mxu0 0.0
  %1166 = vmatprep.subr.mxu0 0.0
  %1167 = vmatpush1.msra.mxu0 0.0
  %1168 = vmatprep.subr.mxu0 0.0
  %1169 = vmatpush1.msra.mxu0 0.0
  %1170 = vmatprep.subr.mxu0 0.0
  %1171 = vmatpush1.msra.mxu0 0.0
  %1172 = vmatprep.subr.mxu0 0.0
  %1173 = vmatpush1.msra.mxu0 0.0
  %1174 = vmatprep.subr.mxu0 0.0
  %1175 = vmatpush1.msra.mxu0 0.0
  %1176 = vmatprep.subr.mxu0 0.0
  %1177 = vmatpush1.msra.mxu0 0.0
  %1178 = vmatprep.subr.mxu0 0.0
  %1179 = vmatpush1.msra.mxu0 0.0
  %1180 = vmatprep.subr.mxu0 0.0
  %1181 = vmatpush1.msra.mxu0 0.0
  %1182 = vmatprep.subr.mxu0 0.0
  %1183 = vmatpush1.msra.mxu0 0.0
  %1184 = vmatprep.mubr.f32.mxu0 0.0
  %v1185 = vand.u32 %v744, 4294901760
  %v1186 = vsub.f32 %v744, %v1185
  %v1187 = vand.u32 %v1186, 4294901760
  %1188 = vmatmul.mubr.f32.gmra.mrb[0].mxu0 %v1187
  %v1189 = vpop.f32.mrb[0].mxu0
  %v1190 = vadd.f32 %v1087, %v1189
  %v1191 = vpop.f32.mrb[0].mxu0
  %1192 = vmatprep.mubr.f32.mxu0 0.0
  %v1193 = vand.u32 %v746, 4294901760
  %v1194 = vsub.f32 %v746, %v1193
  %v1195 = vand.u32 %v1194, 4294901760
  %1196 = vmatmul.mubr.f32.gmra.mrb[0].mxu0 %v1195
  %v1197 = vpop.f32.mrb[0].mxu0
  %v1198 = vadd.f32 %v1094, %v1197
  %v1199 = vpop.f32.mrb[0].mxu0
  %1200 = vmatprep.mubr.f32.mxu0 0.0
  %v1201 = vand.u32 %v748, 4294901760
  %v1202 = vsub.f32 %v748, %v1201
  %v1203 = vand.u32 %v1202, 4294901760
  %1204 = vmatmul.mubr.f32.gmra.mrb[0].mxu0 %v1203
  %v1205 = vpop.f32.mrb[0].mxu0
  %v1206 = vadd.f32 %v1101, %v1205
  %v1207 = vpop.f32.mrb[0].mxu0
  %1208 = vmatprep.mubr.f32.mxu0 0.0
  %v1209 = vand.u32 %v750, 4294901760
  %v1210 = vsub.f32 %v750, %v1209
  %v1211 = vand.u32 %v1210, 4294901760
  %1212 = vmatmul.mubr.f32.gmra.mrb[0].mxu0 %v1211
  %v1213 = vpop.f32.mrb[0].mxu0
  %v1214 = vadd.f32 %v1108, %v1213
  %v1215 = vpop.f32.mrb[0].mxu0
  %1216 = vdwg.mxu0
  %1217 = vmatprep.subr.mxu0 0.0
  %v1218 = vand.u32 %v20, 4294901760
  %v1219 = vsub.f32 %v20, %v1218
  %v1220 = vand.u32 %v1219, 4294901760
  %1221 = vmatpush1.msra.mxu0 %v1220
  %1222 = vmatprep.subr.mxu0 0.0
  %v1223 = vand.u32 %v21, 4294901760
  %v1224 = vsub.f32 %v21, %v1223
  %v1225 = vand.u32 %v1224, 4294901760
  %1226 = vmatpush1.msra.mxu0 %v1225
  %1227 = vmatprep.subr.mxu0 0.0
  %v1228 = vand.u32 %v22, 4294901760
  %v1229 = vsub.f32 %v22, %v1228
  %v1230 = vand.u32 %v1229, 4294901760
  %1231 = vmatpush1.msra.mxu0 %v1230
  %1232 = vmatprep.subr.mxu0 0.0
  %v1233 = vand.u32 %v23, 4294901760
  %v1234 = vsub.f32 %v23, %v1233
  %v1235 = vand.u32 %v1234, 4294901760
  %1236 = vmatpush1.msra.mxu0 %v1235
  %1237 = vmatprep.subr.mxu0 0.0
  %v1238 = vand.u32 %v24, 4294901760
  %v1239 = vsub.f32 %v24, %v1238
  %v1240 = vand.u32 %v1239, 4294901760
  %1241 = vmatpush1.msra.mxu0 %v1240
  %1242 = vmatprep.subr.mxu0 0.0
  %v1243 = vand.u32 %v25, 4294901760
  %v1244 = vsub.f32 %v25, %v1243
  %v1245 = vand.u32 %v1244, 4294901760
  %1246 = vmatpush1.msra.mxu0 %v1245
  %1247 = vmatprep.subr.mxu0 0.0
  %v1248 = vand.u32 %v26, 4294901760
  %v1249 = vsub.f32 %v26, %v1248
  %v1250 = vand.u32 %v1249, 4294901760
  %1251 = vmatpush1.msra.mxu0 %v1250
  %1252 = vmatprep.subr.mxu0 0.0
  %v1253 = vand.u32 %v27, 4294901760
  %v1254 = vsub.f32 %v27, %v1253
  %v1255 = vand.u32 %v1254, 4294901760
  %1256 = vmatpush1.msra.mxu0 %v1255
  %1257 = vmatprep.subr.mxu0 0.0
  %v1258 = vand.u32 %v28, 4294901760
  %v1259 = vsub.f32 %v28, %v1258
  %v1260 = vand.u32 %v1259, 4294901760
  %1261 = vmatpush1.msra.mxu0 %v1260
  %1262 = vmatprep.subr.mxu0 0.0
  %1263 = vmatpush1.msra.mxu0 0.0
  %1264 = vmatprep.subr.mxu0 0.0
  %1265 = vmatpush1.msra.mxu0 0.0
  %1266 = vmatprep.subr.mxu0 0.0
  %1267 = vmatpush1.msra.mxu0 0.0
  %1268 = vmatprep.subr.mxu0 0.0
  %1269 = vmatpush1.msra.mxu0 0.0
  %1270 = vmatprep.subr.mxu0 0.0
  %1271 = vmatpush1.msra.mxu0 0.0
  %1272 = vmatprep.subr.mxu0 0.0
  %1273 = vmatpush1.msra.mxu0 0.0
  %1274 = vmatprep.subr.mxu0 0.0
  %1275 = vmatpush1.msra.mxu0 0.0
  %1276 = vmatprep.subr.mxu0 0.0
  %1277 = vmatpush1.msra.mxu0 0.0
  %1278 = vmatprep.subr.mxu0 0.0
  %1279 = vmatpush1.msra.mxu0 0.0
  %1280 = vmatprep.subr.mxu0 0.0
  %1281 = vmatpush1.msra.mxu0 0.0
  %1282 = vmatprep.subr.mxu0 0.0
  %1283 = vmatpush1.msra.mxu0 0.0
  %1284 = vmatprep.subr.mxu0 0.0
  %1285 = vmatpush1.msra.mxu0 0.0
  %1286 = vmatprep.subr.mxu0 0.0
  %1287 = vmatpush1.msra.mxu0 0.0
  %1288 = vmatprep.subr.mxu0 0.0
  %1289 = vmatpush1.msra.mxu0 0.0
  %1290 = vmatprep.subr.mxu0 0.0
  %1291 = vmatpush1.msra.mxu0 0.0
  %1292 = vmatprep.subr.mxu0 0.0
  %1293 = vmatpush1.msra.mxu0 0.0
  %1294 = vmatprep.subr.mxu0 0.0
  %1295 = vmatpush1.msra.mxu0 0.0
  %1296 = vmatprep.subr.mxu0 0.0
  %1297 = vmatpush1.msra.mxu0 0.0
  %1298 = vmatprep.subr.mxu0 0.0
  %1299 = vmatpush1.msra.mxu0 0.0
  %1300 = vmatprep.subr.mxu0 0.0
  %1301 = vmatpush1.msra.mxu0 0.0
  %1302 = vmatprep.subr.mxu0 0.0
  %1303 = vmatpush1.msra.mxu0 0.0
  %1304 = vmatprep.subr.mxu0 0.0
  %1305 = vmatpush1.msra.mxu0 0.0
  %1306 = vmatprep.subr.mxu0 0.0
  %1307 = vmatpush1.msra.mxu0 0.0
  %1308 = vmatprep.mubr.f32.mxu0 0.0
  %v1309 = vand.u32 %v744, 4294901760
  %1310 = vmatmul.mubr.f32.gmra.mrb[0].mxu0 %v1309
  %v1311 = vpop.f32.mrb[0].mxu0
  %v1312 = vadd.f32 %v1190, %v1311
  %v1313 = vpop.f32.mrb[0].mxu0
  %1314 = vmatprep.mubr.f32.mxu0 0.0
  %v1315 = vand.u32 %v746, 4294901760
  %1316 = vmatmul.mubr.f32.gmra.mrb[0].mxu0 %v1315
  %v1317 = vpop.f32.mrb[0].mxu0
  %v1318 = vadd.f32 %v1198, %v1317
  %v1319 = vpop.f32.mrb[0].mxu0
  %1320 = vmatprep.mubr.f32.mxu0 0.0
  %v1321 = vand.u32 %v748, 4294901760
  %1322 = vmatmul.mubr.f32.gmra.mrb[0].mxu0 %v1321
  %v1323 = vpop.f32.mrb[0].mxu0
  %v1324 = vadd.f32 %v1206, %v1323
  %v1325 = vpop.f32.mrb[0].mxu0
  %1326 = vmatprep.mubr.f32.mxu0 0.0
  %v1327 = vand.u32 %v750, 4294901760
  %1328 = vmatmul.mubr.f32.gmra.mrb[0].mxu0 %v1327
  %v1329 = vpop.f32.mrb[0].mxu0
  %v1330 = vadd.f32 %v1214, %v1329
  %v1331 = vpop.f32.mrb[0].mxu0
  %1332 = vdwg.mxu0
  %1333 = vmatprep.subr.mxu0 0.0
  %v1334 = vand.u32 %v20, 4294901760
  %1335 = vmatpush1.msra.mxu0 %v1334
  %1336 = vmatprep.subr.mxu0 0.0
  %v1337 = vand.u32 %v21, 4294901760
  %1338 = vmatpush1.msra.mxu0 %v1337
  %1339 = vmatprep.subr.mxu0 0.0
  %v1340 = vand.u32 %v22, 4294901760
  %1341 = vmatpush1.msra.mxu0 %v1340
  %1342 = vmatprep.subr.mxu0 0.0
  %v1343 = vand.u32 %v23, 4294901760
  %1344 = vmatpush1.msra.mxu0 %v1343
  %1345 = vmatprep.subr.mxu0 0.0
  %v1346 = vand.u32 %v24, 4294901760
  %1347 = vmatpush1.msra.mxu0 %v1346
  %1348 = vmatprep.subr.mxu0 0.0
  %v1349 = vand.u32 %v25, 4294901760
  %1350 = vmatpush1.msra.mxu0 %v1349
  %1351 = vmatprep.subr.mxu0 0.0
  %v1352 = vand.u32 %v26, 4294901760
  %1353 = vmatpush1.msra.mxu0 %v1352
  %1354 = vmatprep.subr.mxu0 0.0
  %v1355 = vand.u32 %v27, 4294901760
  %1356 = vmatpush1.msra.mxu0 %v1355
  %1357 = vmatprep.subr.mxu0 0.0
  %v1358 = vand.u32 %v28, 4294901760
  %1359 = vmatpush1.msra.mxu0 %v1358
  %1360 = vmatprep.subr.mxu0 0.0
  %1361 = vmatpush1.msra.mxu0 0.0
  %1362 = vmatprep.subr.mxu0 0.0
  %1363 = vmatpush1.msra.mxu0 0.0
  %1364 = vmatprep.subr.mxu0 0.0
  %1365 = vmatpush1.msra.mxu0 0.0
  %1366 = vmatprep.subr.mxu0 0.0
  %1367 = vmatpush1.msra.mxu0 0.0
  %1368 = vmatprep.subr.mxu0 0.0
  %1369 = vmatpush1.msra.mxu0 0.0
  %1370 = vmatprep.subr.mxu0 0.0
  %1371 = vmatpush1.msra.mxu0 0.0
  %1372 = vmatprep.subr.mxu0 0.0
  %1373 = vmatpush1.msra.mxu0 0.0
  %1374 = vmatprep.subr.mxu0 0.0
  %1375 = vmatpush1.msra.mxu0 0.0
  %1376 = vmatprep.subr.mxu0 0.0
  %1377 = vmatpush1.msra.mxu0 0.0
  %1378 = vmatprep.subr.mxu0 0.0
  %1379 = vmatpush1.msra.mxu0 0.0
  %1380 = vmatprep.subr.mxu0 0.0
  %1381 = vmatpush1.msra.mxu0 0.0
  %1382 = vmatprep.subr.mxu0 0.0
  %1383 = vmatpush1.msra.mxu0 0.0
  %1384 = vmatprep.subr.mxu0 0.0
  %1385 = vmatpush1.msra.mxu0 0.0
  %1386 = vmatprep.subr.mxu0 0.0
  %1387 = vmatpush1.msra.mxu0 0.0
  %1388 = vmatprep.subr.mxu0 0.0
  %1389 = vmatpush1.msra.mxu0 0.0
  %1390 = vmatprep.subr.mxu0 0.0
  %1391 = vmatpush1.msra.mxu0 0.0
  %1392 = vmatprep.subr.mxu0 0.0
  %1393 = vmatpush1.msra.mxu0 0.0
  %1394 = vmatprep.subr.mxu0 0.0
  %1395 = vmatpush1.msra.mxu0 0.0
  %1396 = vmatprep.subr.mxu0 0.0
  %1397 = vmatpush1.msra.mxu0 0.0
  %1398 = vmatprep.subr.mxu0 0.0
  %1399 = vmatpush1.msra.mxu0 0.0
  %1400 = vmatprep.subr.mxu0 0.0
  %1401 = vmatpush1.msra.mxu0 0.0
  %1402 = vmatprep.subr.mxu0 0.0
  %1403 = vmatpush1.msra.mxu0 0.0
  %1404 = vmatprep.subr.mxu0 0.0
  %1405 = vmatpush1.msra.mxu0 0.0
  %1406 = vmatprep.mubr.f32.mxu0 0.0
  %v1407 = vand.u32 %v744, 4294901760
  %1408 = vmatmul.mubr.f32.gmra.mrb[0].mxu0 %v1407
  %v1409 = vpop.f32.mrb[0].mxu0
  %v1410 = vadd.f32 %v1312, %v1409
  %v1411 = vpop.f32.mrb[0].mxu0
  %1412 = vmatprep.mubr.f32.mxu0 0.0
  %v1413 = vand.u32 %v746, 4294901760
  %1414 = vmatmul.mubr.f32.gmra.mrb[0].mxu0 %v1413
  %v1415 = vpop.f32.mrb[0].mxu0
  %v1416 = vadd.f32 %v1318, %v1415
  %v1417 = vpop.f32.mrb[0].mxu0
  %1418 = vmatprep.mubr.f32.mxu0 0.0
  %v1419 = vand.u32 %v748, 4294901760
  %1420 = vmatmul.mubr.f32.gmra.mrb[0].mxu0 %v1419
  %v1421 = vpop.f32.mrb[0].mxu0
  %v1422 = vadd.f32 %v1324, %v1421
  %v1423 = vpop.f32.mrb[0].mxu0
  %1424 = vmatprep.mubr.f32.mxu0 0.0
  %v1425 = vand.u32 %v750, 4294901760
  %1426 = vmatmul.mubr.f32.gmra.mrb[0].mxu0 %v1425
  %v1427 = vpop.f32.mrb[0].mxu0
  %v1428 = vadd.f32 %v1330, %v1427
  %v1429 = vpop.f32.mrb[0].mxu0
  %1430 = vdwg.mxu0
  %vm1431 = vcmask 1045504
  %v1432 = vrot.slane %v14, 2
  %v1433 = vrot.slane %v15, 2
  %v1434 = vsel %vm1431, %v1432, %v1433
  %v1435 = vrot.slane %v16, 2
  %v1436 = vsel %vm1431, %v1433, %v1435
  %v1437 = vrot.slane %v17, 2
  %v1438 = vrot.slane %v18, 2
  %v1439 = vsel %vm1431, %v1437, %v1438
  %v1440 = vrot.slane %v19, 2
  %v1441 = vsel %vm1431, %v1438, %v1440
  %s1442 = scalar_lea.vmem %s1, 144
  %v1443 = vld [vmem:[%s1442] sm:$0xff]
  %v1444 = vld [vmem:[%s1442 + $0x8] sm:$0xff]
  %v1445 = vld [vmem:[%s1442 + $0x10] sm:$0xff]
  %v1446 = vld [vmem:[%s1442 + $0x18] sm:$0xff]
  %v1447 = vld [vmem:[%s1442 + $0x20] sm:$0xff]
  %v1448 = vld [vmem:[%s1442 + $0x28] sm:$0xff]
  %v1449 = vld [vmem:[%s1442 + $0x30] sm:$0xff]
  %v1450 = vld [vmem:[%s1442 + $0x38] sm:$0xff]
  %v1451 = vld [vmem:[%s1442 + $0x40] sm:$0xff]
  %v1452 = vsel %vm56, %v1434, 0
  %v1454 = vsel %vm56, %v1436, 0
  %v1456 = vsel %vm56, %v1439, 0
  %v1458 = vsel %vm56, %v1441, 0
  %1460 = vmatprep.subr.mxu0 0.0
  %v1461 = vand.u32 %v1443, 4294901760
  %1462 = vmatpush1.msra.mxu0 %v1461
  %1463 = vmatprep.subr.mxu0 0.0
  %v1464 = vand.u32 %v1444, 4294901760
  %1465 = vmatpush1.msra.mxu0 %v1464
  %1466 = vmatprep.subr.mxu0 0.0
  %v1467 = vand.u32 %v1445, 4294901760
  %1468 = vmatpush1.msra.mxu0 %v1467
  %1469 = vmatprep.subr.mxu0 0.0
  %v1470 = vand.u32 %v1446, 4294901760
  %1471 = vmatpush1.msra.mxu0 %v1470
  %1472 = vmatprep.subr.mxu0 0.0
  %v1473 = vand.u32 %v1447, 4294901760
  %1474 = vmatpush1.msra.mxu0 %v1473
  %1475 = vmatprep.subr.mxu0 0.0
  %v1476 = vand.u32 %v1448, 4294901760
  %1477 = vmatpush1.msra.mxu0 %v1476
  %1478 = vmatprep.subr.mxu0 0.0
  %v1479 = vand.u32 %v1449, 4294901760
  %1480 = vmatpush1.msra.mxu0 %v1479
  %1481 = vmatprep.subr.mxu0 0.0
  %v1482 = vand.u32 %v1450, 4294901760
  %1483 = vmatpush1.msra.mxu0 %v1482
  %1484 = vmatprep.subr.mxu0 0.0
  %v1485 = vand.u32 %v1451, 4294901760
  %1486 = vmatpush1.msra.mxu0 %v1485
  %1487 = vmatprep.subr.mxu0 0.0
  %1488 = vmatpush1.msra.mxu0 0.0
  %1489 = vmatprep.subr.mxu0 0.0
  %1490 = vmatpush1.msra.mxu0 0.0
  %1491 = vmatprep.subr.mxu0 0.0
  %1492 = vmatpush1.msra.mxu0 0.0
  %1493 = vmatprep.subr.mxu0 0.0
  %1494 = vmatpush1.msra.mxu0 0.0
  %1495 = vmatprep.subr.mxu0 0.0
  %1496 = vmatpush1.msra.mxu0 0.0
  %1497 = vmatprep.subr.mxu0 0.0
  %1498 = vmatpush1.msra.mxu0 0.0
  %1499 = vmatprep.subr.mxu0 0.0
  %1500 = vmatpush1.msra.mxu0 0.0
  %1501 = vmatprep.subr.mxu0 0.0
  %1502 = vmatpush1.msra.mxu0 0.0
  %1503 = vmatprep.subr.mxu0 0.0
  %1504 = vmatpush1.msra.mxu0 0.0
  %1505 = vmatprep.subr.mxu0 0.0
  %1506 = vmatpush1.msra.mxu0 0.0
  %1507 = vmatprep.subr.mxu0 0.0
  %1508 = vmatpush1.msra.mxu0 0.0
  %1509 = vmatprep.subr.mxu0 0.0
  %1510 = vmatpush1.msra.mxu0 0.0
  %1511 = vmatprep.subr.mxu0 0.0
  %1512 = vmatpush1.msra.mxu0 0.0
  %1513 = vmatprep.subr.mxu0 0.0
  %1514 = vmatpush1.msra.mxu0 0.0
  %1515 = vmatprep.subr.mxu0 0.0
  %1516 = vmatpush1.msra.mxu0 0.0
  %1517 = vmatprep.subr.mxu0 0.0
  %1518 = vmatpush1.msra.mxu0 0.0
  %1519 = vmatprep.subr.mxu0 0.0
  %1520 = vmatpush1.msra.mxu0 0.0
  %1521 = vmatprep.subr.mxu0 0.0
  %1522 = vmatpush1.msra.mxu0 0.0
  %1523 = vmatprep.subr.mxu0 0.0
  %1524 = vmatpush1.msra.mxu0 0.0
  %1525 = vmatprep.subr.mxu0 0.0
  %1526 = vmatpush1.msra.mxu0 0.0
  %1527 = vmatprep.subr.mxu0 0.0
  %1528 = vmatpush1.msra.mxu0 0.0
  %1529 = vmatprep.subr.mxu0 0.0
  %1530 = vmatpush1.msra.mxu0 0.0
  %1531 = vmatprep.subr.mxu0 0.0
  %1532 = vmatpush1.msra.mxu0 0.0
  %1533 = vmatprep.mubr.f32.mxu0 0.0
  %v1534 = vand.u32 %v1452, 4294901760
  %v1535 = vsub.f32 %v1452, %v1534
  %v1536 = vand.u32 %v1535, 4294901760
  %v1537 = vsub.f32 %v1535, %v1536
  %v1538 = vand.u32 %v1537, 4294901760
  %1539 = vmatmul.mubr.f32.gmra.mrb[0].mxu0 %v1538
  %v1540 = vpop.f32.mrb[0].mxu0
  %v1541 = vadd.f32 0.0, %v1540
  %v1542 = vpop.f32.mrb[0].mxu0
  %1543 = vmatprep.mubr.f32.mxu0 0.0
  %v1544 = vand.u32 %v1454, 4294901760
  %v1545 = vsub.f32 %v1454, %v1544
  %v1546 = vand.u32 %v1545, 4294901760
  %v1547 = vsub.f32 %v1545, %v1546
  %v1548 = vand.u32 %v1547, 4294901760
  %1549 = vmatmul.mubr.f32.gmra.mrb[0].mxu0 %v1548
  %v1550 = vpop.f32.mrb[0].mxu0
  %v1551 = vadd.f32 0.0, %v1550
  %v1552 = vpop.f32.mrb[0].mxu0
  %1553 = vmatprep.mubr.f32.mxu0 0.0
  %v1554 = vand.u32 %v1456, 4294901760
  %v1555 = vsub.f32 %v1456, %v1554
  %v1556 = vand.u32 %v1555, 4294901760
  %v1557 = vsub.f32 %v1555, %v1556
  %v1558 = vand.u32 %v1557, 4294901760
  %1559 = vmatmul.mubr.f32.gmra.mrb[0].mxu0 %v1558
  %v1560 = vpop.f32.mrb[0].mxu0
  %v1561 = vadd.f32 0.0, %v1560
  %v1562 = vpop.f32.mrb[0].mxu0
  %1563 = vmatprep.mubr.f32.mxu0 0.0
  %v1564 = vand.u32 %v1458, 4294901760
  %v1565 = vsub.f32 %v1458, %v1564
  %v1566 = vand.u32 %v1565, 4294901760
  %v1567 = vsub.f32 %v1565, %v1566
  %v1568 = vand.u32 %v1567, 4294901760
  %1569 = vmatmul.mubr.f32.gmra.mrb[0].mxu0 %v1568
  %v1570 = vpop.f32.mrb[0].mxu0
  %v1571 = vadd.f32 0.0, %v1570
  %v1572 = vpop.f32.mrb[0].mxu0
  %1573 = vdwg.mxu0
  %1574 = vmatprep.subr.mxu0 0.0
  %v1575 = vand.u32 %v1443, 4294901760
  %v1576 = vsub.f32 %v1443, %v1575
  %v1577 = vand.u32 %v1576, 4294901760
  %v1578 = vsub.f32 %v1576, %v1577
  %v1579 = vand.u32 %v1578, 4294901760
  %1580 = vmatpush1.msra.mxu0 %v1579
  %1581 = vmatprep.subr.mxu0 0.0
  %v1582 = vand.u32 %v1444, 4294901760
  %v1583 = vsub.f32 %v1444, %v1582
  %v1584 = vand.u32 %v1583, 4294901760
  %v1585 = vsub.f32 %v1583, %v1584
  %v1586 = vand.u32 %v1585, 4294901760
  %1587 = vmatpush1.msra.mxu0 %v1586
  %1588 = vmatprep.subr.mxu0 0.0
  %v1589 = vand.u32 %v1445, 4294901760
  %v1590 = vsub.f32 %v1445, %v1589
  %v1591 = vand.u32 %v1590, 4294901760
  %v1592 = vsub.f32 %v1590, %v1591
  %v1593 = vand.u32 %v1592, 4294901760
  %1594 = vmatpush1.msra.mxu0 %v1593
  %1595 = vmatprep.subr.mxu0 0.0
  %v1596 = vand.u32 %v1446, 4294901760
  %v1597 = vsub.f32 %v1446, %v1596
  %v1598 = vand.u32 %v1597, 4294901760
  %v1599 = vsub.f32 %v1597, %v1598
  %v1600 = vand.u32 %v1599, 4294901760
  %1601 = vmatpush1.msra.mxu0 %v1600
  %1602 = vmatprep.subr.mxu0 0.0
  %v1603 = vand.u32 %v1447, 4294901760
  %v1604 = vsub.f32 %v1447, %v1603
  %v1605 = vand.u32 %v1604, 4294901760
  %v1606 = vsub.f32 %v1604, %v1605
  %v1607 = vand.u32 %v1606, 4294901760
  %1608 = vmatpush1.msra.mxu0 %v1607
  %1609 = vmatprep.subr.mxu0 0.0
  %v1610 = vand.u32 %v1448, 4294901760
  %v1611 = vsub.f32 %v1448, %v1610
  %v1612 = vand.u32 %v1611, 4294901760
  %v1613 = vsub.f32 %v1611, %v1612
  %v1614 = vand.u32 %v1613, 4294901760
  %1615 = vmatpush1.msra.mxu0 %v1614
  %1616 = vmatprep.subr.mxu0 0.0
  %v1617 = vand.u32 %v1449, 4294901760
  %v1618 = vsub.f32 %v1449, %v1617
  %v1619 = vand.u32 %v1618, 4294901760
  %v1620 = vsub.f32 %v1618, %v1619
  %v1621 = vand.u32 %v1620, 4294901760
  %1622 = vmatpush1.msra.mxu0 %v1621
  %1623 = vmatprep.subr.mxu0 0.0
  %v1624 = vand.u32 %v1450, 4294901760
  %v1625 = vsub.f32 %v1450, %v1624
  %v1626 = vand.u32 %v1625, 4294901760
  %v1627 = vsub.f32 %v1625, %v1626
  %v1628 = vand.u32 %v1627, 4294901760
  %1629 = vmatpush1.msra.mxu0 %v1628
  %1630 = vmatprep.subr.mxu0 0.0
  %v1631 = vand.u32 %v1451, 4294901760
  %v1632 = vsub.f32 %v1451, %v1631
  %v1633 = vand.u32 %v1632, 4294901760
  %v1634 = vsub.f32 %v1632, %v1633
  %v1635 = vand.u32 %v1634, 4294901760
  %1636 = vmatpush1.msra.mxu0 %v1635
  %1637 = vmatprep.subr.mxu0 0.0
  %1638 = vmatpush1.msra.mxu0 0.0
  %1639 = vmatprep.subr.mxu0 0.0
  %1640 = vmatpush1.msra.mxu0 0.0
  %1641 = vmatprep.subr.mxu0 0.0
  %1642 = vmatpush1.msra.mxu0 0.0
  %1643 = vmatprep.subr.mxu0 0.0
  %1644 = vmatpush1.msra.mxu0 0.0
  %1645 = vmatprep.subr.mxu0 0.0
  %1646 = vmatpush1.msra.mxu0 0.0
  %1647 = vmatprep.subr.mxu0 0.0
  %1648 = vmatpush1.msra.mxu0 0.0
  %1649 = vmatprep.subr.mxu0 0.0
  %1650 = vmatpush1.msra.mxu0 0.0
  %1651 = vmatprep.subr.mxu0 0.0
  %1652 = vmatpush1.msra.mxu0 0.0
  %1653 = vmatprep.subr.mxu0 0.0
  %1654 = vmatpush1.msra.mxu0 0.0
  %1655 = vmatprep.subr.mxu0 0.0
  %1656 = vmatpush1.msra.mxu0 0.0
  %1657 = vmatprep.subr.mxu0 0.0
  %1658 = vmatpush1.msra.mxu0 0.0
  %1659 = vmatprep.subr.mxu0 0.0
  %1660 = vmatpush1.msra.mxu0 0.0
  %1661 = vmatprep.subr.mxu0 0.0
  %1662 = vmatpush1.msra.mxu0 0.0
  %1663 = vmatprep.subr.mxu0 0.0
  %1664 = vmatpush1.msra.mxu0 0.0
  %1665 = vmatprep.subr.mxu0 0.0
  %1666 = vmatpush1.msra.mxu0 0.0
  %1667 = vmatprep.subr.mxu0 0.0
  %1668 = vmatpush1.msra.mxu0 0.0
  %1669 = vmatprep.subr.mxu0 0.0
  %1670 = vmatpush1.msra.mxu0 0.0
  %1671 = vmatprep.subr.mxu0 0.0
  %1672 = vmatpush1.msra.mxu0 0.0
  %1673 = vmatprep.subr.mxu0 0.0
  %1674 = vmatpush1.msra.mxu0 0.0
  %1675 = vmatprep.subr.mxu0 0.0
  %1676 = vmatpush1.msra.mxu0 0.0
  %1677 = vmatprep.subr.mxu0 0.0
  %1678 = vmatpush1.msra.mxu0 0.0
  %1679 = vmatprep.subr.mxu0 0.0
  %1680 = vmatpush1.msra.mxu0 0.0
  %1681 = vmatprep.subr.mxu0 0.0
  %1682 = vmatpush1.msra.mxu0 0.0
  %1683 = vmatprep.mubr.f32.mxu0 0.0
  %v1684 = vand.u32 %v1452, 4294901760
  %1685 = vmatmul.mubr.f32.gmra.mrb[0].mxu0 %v1684
  %v1686 = vpop.f32.mrb[0].mxu0
  %v1687 = vadd.f32 %v1541, %v1686
  %v1688 = vpop.f32.mrb[0].mxu0
  %1689 = vmatprep.mubr.f32.mxu0 0.0
  %v1690 = vand.u32 %v1454, 4294901760
  %1691 = vmatmul.mubr.f32.gmra.mrb[0].mxu0 %v1690
  %v1692 = vpop.f32.mrb[0].mxu0
  %v1693 = vadd.f32 %v1551, %v1692
  %v1694 = vpop.f32.mrb[0].mxu0
  %1695 = vmatprep.mubr.f32.mxu0 0.0
  %v1696 = vand.u32 %v1456, 4294901760
  %1697 = vmatmul.mubr.f32.gmra.mrb[0].mxu0 %v1696
  %v1698 = vpop.f32.mrb[0].mxu0
  %v1699 = vadd.f32 %v1561, %v1698
  %v1700 = vpop.f32.mrb[0].mxu0
  %1701 = vmatprep.mubr.f32.mxu0 0.0
  %v1702 = vand.u32 %v1458, 4294901760
  %1703 = vmatmul.mubr.f32.gmra.mrb[0].mxu0 %v1702
  %v1704 = vpop.f32.mrb[0].mxu0
  %v1705 = vadd.f32 %v1571, %v1704
  %v1706 = vpop.f32.mrb[0].mxu0
  %1707 = vdwg.mxu0
  %1708 = vmatprep.subr.mxu0 0.0
  %v1709 = vand.u32 %v1443, 4294901760
  %v1710 = vsub.f32 %v1443, %v1709
  %1711 = vmatpush1.msra.mxu0 %v1710
  %1712 = vmatprep.subr.mxu0 0.0
  %v1713 = vand.u32 %v1444, 4294901760
  %v1714 = vsub.f32 %v1444, %v1713
  %1715 = vmatpush1.msra.mxu0 %v1714
  %1716 = vmatprep.subr.mxu0 0.0
  %v1717 = vand.u32 %v1445, 4294901760
  %v1718 = vsub.f32 %v1445, %v1717
  %1719 = vmatpush1.msra.mxu0 %v1718
  %1720 = vmatprep.subr.mxu0 0.0
  %v1721 = vand.u32 %v1446, 4294901760
  %v1722 = vsub.f32 %v1446, %v1721
  %1723 = vmatpush1.msra.mxu0 %v1722
  %1724 = vmatprep.subr.mxu0 0.0
  %v1725 = vand.u32 %v1447, 4294901760
  %v1726 = vsub.f32 %v1447, %v1725
  %1727 = vmatpush1.msra.mxu0 %v1726
  %1728 = vmatprep.subr.mxu0 0.0
  %v1729 = vand.u32 %v1448, 4294901760
  %v1730 = vsub.f32 %v1448, %v1729
  %1731 = vmatpush1.msra.mxu0 %v1730
  %1732 = vmatprep.subr.mxu0 0.0
  %v1733 = vand.u32 %v1449, 4294901760
  %v1734 = vsub.f32 %v1449, %v1733
  %1735 = vmatpush1.msra.mxu0 %v1734
  %1736 = vmatprep.subr.mxu0 0.0
  %v1737 = vand.u32 %v1450, 4294901760
  %v1738 = vsub.f32 %v1450, %v1737
  %1739 = vmatpush1.msra.mxu0 %v1738
  %1740 = vmatprep.subr.mxu0 0.0
  %v1741 = vand.u32 %v1451, 4294901760
  %v1742 = vsub.f32 %v1451, %v1741
  %1743 = vmatpush1.msra.mxu0 %v1742
  %1744 = vmatprep.subr.mxu0 0.0
  %1745 = vmatpush1.msra.mxu0 0.0
  %1746 = vmatprep.subr.mxu0 0.0
  %1747 = vmatpush1.msra.mxu0 0.0
  %1748 = vmatprep.subr.mxu0 0.0
  %1749 = vmatpush1.msra.mxu0 0.0
  %1750 = vmatprep.subr.mxu0 0.0
  %1751 = vmatpush1.msra.mxu0 0.0
  %1752 = vmatprep.subr.mxu0 0.0
  %1753 = vmatpush1.msra.mxu0 0.0
  %1754 = vmatprep.subr.mxu0 0.0
  %1755 = vmatpush1.msra.mxu0 0.0
  %1756 = vmatprep.subr.mxu0 0.0
  %1757 = vmatpush1.msra.mxu0 0.0
  %1758 = vmatprep.subr.mxu0 0.0
  %1759 = vmatpush1.msra.mxu0 0.0
  %1760 = vmatprep.subr.mxu0 0.0
  %1761 = vmatpush1.msra.mxu0 0.0
  %1762 = vmatprep.subr.mxu0 0.0
  %1763 = vmatpush1.msra.mxu0 0.0
  %1764 = vmatprep.subr.mxu0 0.0
  %1765 = vmatpush1.msra.mxu0 0.0
  %1766 = vmatprep.subr.mxu0 0.0
  %1767 = vmatpush1.msra.mxu0 0.0
  %1768 = vmatprep.subr.mxu0 0.0
  %1769 = vmatpush1.msra.mxu0 0.0
  %1770 = vmatprep.subr.mxu0 0.0
  %1771 = vmatpush1.msra.mxu0 0.0
  %1772 = vmatprep.subr.mxu0 0.0
  %1773 = vmatpush1.msra.mxu0 0.0
  %1774 = vmatprep.subr.mxu0 0.0
  %1775 = vmatpush1.msra.mxu0 0.0
  %1776 = vmatprep.subr.mxu0 0.0
  %1777 = vmatpush1.msra.mxu0 0.0
  %1778 = vmatprep.subr.mxu0 0.0
  %1779 = vmatpush1.msra.mxu0 0.0
  %1780 = vmatprep.subr.mxu0 0.0
  %1781 = vmatpush1.msra.mxu0 0.0
  %1782 = vmatprep.subr.mxu0 0.0
  %1783 = vmatpush1.msra.mxu0 0.0
  %1784 = vmatprep.subr.mxu0 0.0
  %1785 = vmatpush1.msra.mxu0 0.0
  %1786 = vmatprep.subr.mxu0 0.0
  %1787 = vmatpush1.msra.mxu0 0.0
  %1788 = vmatprep.subr.mxu0 0.0
  %1789 = vmatpush1.msra.mxu0 0.0
  %1790 = vmatprep.mubr.f32.mxu0 0.0
  %v1791 = vand.u32 %v1452, 4294901760
  %v1792 = vsub.f32 %v1452, %v1791
  %1793 = vmatmul.mubr.f32.gmra.mrb[0].mxu0 %v1792
  %v1794 = vpop.f32.mrb[0].mxu0
  %v1795 = vadd.f32 %v1687, %v1794
  %v1796 = vpop.f32.mrb[0].mxu0
  %1797 = vmatprep.mubr.f32.mxu0 0.0
  %v1798 = vand.u32 %v1454, 4294901760
  %v1799 = vsub.f32 %v1454, %v1798
  %1800 = vmatmul.mubr.f32.gmra.mrb[0].mxu0 %v1799
  %v1801 = vpop.f32.mrb[0].mxu0
  %v1802 = vadd.f32 %v1693, %v1801
  %v1803 = vpop.f32.mrb[0].mxu0
  %1804 = vmatprep.mubr.f32.mxu0 0.0
  %v1805 = vand.u32 %v1456, 4294901760
  %v1806 = vsub.f32 %v1456, %v1805
  %1807 = vmatmul.mubr.f32.gmra.mrb[0].mxu0 %v1806
  %v1808 = vpop.f32.mrb[0].mxu0
  %v1809 = vadd.f32 %v1699, %v1808
  %v1810 = vpop.f32.mrb[0].mxu0
  %1811 = vmatprep.mubr.f32.mxu0 0.0
  %v1812 = vand.u32 %v1458, 4294901760
  %v1813 = vsub.f32 %v1458, %v1812
  %1814 = vmatmul.mubr.f32.gmra.mrb[0].mxu0 %v1813
  %v1815 = vpop.f32.mrb[0].mxu0
  %v1816 = vadd.f32 %v1705, %v1815
  %v1817 = vpop.f32.mrb[0].mxu0
  %1818 = vdwg.mxu0
  %1819 = vmatprep.subr.mxu0 0.0
  %v1820 = vand.u32 %v1443, 4294901760
  %1821 = vmatpush1.msra.mxu0 %v1820
  %1822 = vmatprep.subr.mxu0 0.0
  %v1823 = vand.u32 %v1444, 4294901760
  %1824 = vmatpush1.msra.mxu0 %v1823
  %1825 = vmatprep.subr.mxu0 0.0
  %v1826 = vand.u32 %v1445, 4294901760
  %1827 = vmatpush1.msra.mxu0 %v1826
  %1828 = vmatprep.subr.mxu0 0.0
  %v1829 = vand.u32 %v1446, 4294901760
  %1830 = vmatpush1.msra.mxu0 %v1829
  %1831 = vmatprep.subr.mxu0 0.0
  %v1832 = vand.u32 %v1447, 4294901760
  %1833 = vmatpush1.msra.mxu0 %v1832
  %1834 = vmatprep.subr.mxu0 0.0
  %v1835 = vand.u32 %v1448, 4294901760
  %1836 = vmatpush1.msra.mxu0 %v1835
  %1837 = vmatprep.subr.mxu0 0.0
  %v1838 = vand.u32 %v1449, 4294901760
  %1839 = vmatpush1.msra.mxu0 %v1838
  %1840 = vmatprep.subr.mxu0 0.0
  %v1841 = vand.u32 %v1450, 4294901760
  %1842 = vmatpush1.msra.mxu0 %v1841
  %1843 = vmatprep.subr.mxu0 0.0
  %v1844 = vand.u32 %v1451, 4294901760
  %1845 = vmatpush1.msra.mxu0 %v1844
  %1846 = vmatprep.subr.mxu0 0.0
  %1847 = vmatpush1.msra.mxu0 0.0
  %1848 = vmatprep.subr.mxu0 0.0
  %1849 = vmatpush1.msra.mxu0 0.0
  %1850 = vmatprep.subr.mxu0 0.0
  %1851 = vmatpush1.msra.mxu0 0.0
  %1852 = vmatprep.subr.mxu0 0.0
  %1853 = vmatpush1.msra.mxu0 0.0
  %1854 = vmatprep.subr.mxu0 0.0
  %1855 = vmatpush1.msra.mxu0 0.0
  %1856 = vmatprep.subr.mxu0 0.0
  %1857 = vmatpush1.msra.mxu0 0.0
  %1858 = vmatprep.subr.mxu0 0.0
  %1859 = vmatpush1.msra.mxu0 0.0
  %1860 = vmatprep.subr.mxu0 0.0
  %1861 = vmatpush1.msra.mxu0 0.0
  %1862 = vmatprep.subr.mxu0 0.0
  %1863 = vmatpush1.msra.mxu0 0.0
  %1864 = vmatprep.subr.mxu0 0.0
  %1865 = vmatpush1.msra.mxu0 0.0
  %1866 = vmatprep.subr.mxu0 0.0
  %1867 = vmatpush1.msra.mxu0 0.0
  %1868 = vmatprep.subr.mxu0 0.0
  %1869 = vmatpush1.msra.mxu0 0.0
  %1870 = vmatprep.subr.mxu0 0.0
  %1871 = vmatpush1.msra.mxu0 0.0
  %1872 = vmatprep.subr.mxu0 0.0
  %1873 = vmatpush1.msra.mxu0 0.0
  %1874 = vmatprep.subr.mxu0 0.0
  %1875 = vmatpush1.msra.mxu0 0.0
  %1876 = vmatprep.subr.mxu0 0.0
  %1877 = vmatpush1.msra.mxu0 0.0
  %1878 = vmatprep.subr.mxu0 0.0
  %1879 = vmatpush1.msra.mxu0 0.0
  %1880 = vmatprep.subr.mxu0 0.0
  %1881 = vmatpush1.msra.mxu0 0.0
  %1882 = vmatprep.subr.mxu0 0.0
  %1883 = vmatpush1.msra.mxu0 0.0
  %1884 = vmatprep.subr.mxu0 0.0
  %1885 = vmatpush1.msra.mxu0 0.0
  %1886 = vmatprep.subr.mxu0 0.0
  %1887 = vmatpush1.msra.mxu0 0.0
  %1888 = vmatprep.subr.mxu0 0.0
  %1889 = vmatpush1.msra.mxu0 0.0
  %1890 = vmatprep.subr.mxu0 0.0
  %1891 = vmatpush1.msra.mxu0 0.0
  %1892 = vmatprep.mubr.f32.mxu0 0.0
  %v1893 = vand.u32 %v1452, 4294901760
  %v1894 = vsub.f32 %v1452, %v1893
  %v1895 = vand.u32 %v1894, 4294901760
  %1896 = vmatmul.mubr.f32.gmra.mrb[0].mxu0 %v1895
  %v1897 = vpop.f32.mrb[0].mxu0
  %v1898 = vadd.f32 %v1795, %v1897
  %v1899 = vpop.f32.mrb[0].mxu0
  %1900 = vmatprep.mubr.f32.mxu0 0.0
  %v1901 = vand.u32 %v1454, 4294901760
  %v1902 = vsub.f32 %v1454, %v1901
  %v1903 = vand.u32 %v1902, 4294901760
  %1904 = vmatmul.mubr.f32.gmra.mrb[0].mxu0 %v1903
  %v1905 = vpop.f32.mrb[0].mxu0
  %v1906 = vadd.f32 %v1802, %v1905
  %v1907 = vpop.f32.mrb[0].mxu0
  %1908 = vmatprep.mubr.f32.mxu0 0.0
  %v1909 = vand.u32 %v1456, 4294901760
  %v1910 = vsub.f32 %v1456, %v1909
  %v1911 = vand.u32 %v1910, 4294901760
  %1912 = vmatmul.mubr.f32.gmra.mrb[0].mxu0 %v1911
  %v1913 = vpop.f32.mrb[0].mxu0
  %v1914 = vadd.f32 %v1809, %v1913
  %v1915 = vpop.f32.mrb[0].mxu0
  %1916 = vmatprep.mubr.f32.mxu0 0.0
  %v1917 = vand.u32 %v1458, 4294901760
  %v1918 = vsub.f32 %v1458, %v1917
  %v1919 = vand.u32 %v1918, 4294901760
  %1920 = vmatmul.mubr.f32.gmra.mrb[0].mxu0 %v1919
  %v1921 = vpop.f32.mrb[0].mxu0
  %v1922 = vadd.f32 %v1816, %v1921
  %v1923 = vpop.f32.mrb[0].mxu0
  %1924 = vdwg.mxu0
  %1925 = vmatprep.subr.mxu0 0.0
  %v1926 = vand.u32 %v1443, 4294901760
  %v1927 = vsub.f32 %v1443, %v1926
  %v1928 = vand.u32 %v1927, 4294901760
  %1929 = vmatpush1.msra.mxu0 %v1928
  %1930 = vmatprep.subr.mxu0 0.0
  %v1931 = vand.u32 %v1444, 4294901760
  %v1932 = vsub.f32 %v1444, %v1931
  %v1933 = vand.u32 %v1932, 4294901760
  %1934 = vmatpush1.msra.mxu0 %v1933
  %1935 = vmatprep.subr.mxu0 0.0
  %v1936 = vand.u32 %v1445, 4294901760
  %v1937 = vsub.f32 %v1445, %v1936
  %v1938 = vand.u32 %v1937, 4294901760
  %1939 = vmatpush1.msra.mxu0 %v1938
  %1940 = vmatprep.subr.mxu0 0.0
  %v1941 = vand.u32 %v1446, 4294901760
  %v1942 = vsub.f32 %v1446, %v1941
  %v1943 = vand.u32 %v1942, 4294901760
  %1944 = vmatpush1.msra.mxu0 %v1943
  %1945 = vmatprep.subr.mxu0 0.0
  %v1946 = vand.u32 %v1447, 4294901760
  %v1947 = vsub.f32 %v1447, %v1946
  %v1948 = vand.u32 %v1947, 4294901760
  %1949 = vmatpush1.msra.mxu0 %v1948
  %1950 = vmatprep.subr.mxu0 0.0
  %v1951 = vand.u32 %v1448, 4294901760
  %v1952 = vsub.f32 %v1448, %v1951
  %v1953 = vand.u32 %v1952, 4294901760
  %1954 = vmatpush1.msra.mxu0 %v1953
  %1955 = vmatprep.subr.mxu0 0.0
  %v1956 = vand.u32 %v1449, 4294901760
  %v1957 = vsub.f32 %v1449, %v1956
  %v1958 = vand.u32 %v1957, 4294901760
  %1959 = vmatpush1.msra.mxu0 %v1958
  %1960 = vmatprep.subr.mxu0 0.0
  %v1961 = vand.u32 %v1450, 4294901760
  %v1962 = vsub.f32 %v1450, %v1961
  %v1963 = vand.u32 %v1962, 4294901760
  %1964 = vmatpush1.msra.mxu0 %v1963
  %1965 = vmatprep.subr.mxu0 0.0
  %v1966 = vand.u32 %v1451, 4294901760
  %v1967 = vsub.f32 %v1451, %v1966
  %v1968 = vand.u32 %v1967, 4294901760
  %1969 = vmatpush1.msra.mxu0 %v1968
  %1970 = vmatprep.subr.mxu0 0.0
  %1971 = vmatpush1.msra.mxu0 0.0
  %1972 = vmatprep.subr.mxu0 0.0
  %1973 = vmatpush1.msra.mxu0 0.0
  %1974 = vmatprep.subr.mxu0 0.0
  %1975 = vmatpush1.msra.mxu0 0.0
  %1976 = vmatprep.subr.mxu0 0.0
  %1977 = vmatpush1.msra.mxu0 0.0
  %1978 = vmatprep.subr.mxu0 0.0
  %1979 = vmatpush1.msra.mxu0 0.0
  %1980 = vmatprep.subr.mxu0 0.0
  %1981 = vmatpush1.msra.mxu0 0.0
  %1982 = vmatprep.subr.mxu0 0.0
  %1983 = vmatpush1.msra.mxu0 0.0
  %1984 = vmatprep.subr.mxu0 0.0
  %1985 = vmatpush1.msra.mxu0 0.0
  %1986 = vmatprep.subr.mxu0 0.0
  %1987 = vmatpush1.msra.mxu0 0.0
  %1988 = vmatprep.subr.mxu0 0.0
  %1989 = vmatpush1.msra.mxu0 0.0
  %1990 = vmatprep.subr.mxu0 0.0
  %1991 = vmatpush1.msra.mxu0 0.0
  %1992 = vmatprep.subr.mxu0 0.0
  %1993 = vmatpush1.msra.mxu0 0.0
  %1994 = vmatprep.subr.mxu0 0.0
  %1995 = vmatpush1.msra.mxu0 0.0
  %1996 = vmatprep.subr.mxu0 0.0
  %1997 = vmatpush1.msra.mxu0 0.0
  %1998 = vmatprep.subr.mxu0 0.0
  %1999 = vmatpush1.msra.mxu0 0.0
  %2000 = vmatprep.subr.mxu0 0.0
  %2001 = vmatpush1.msra.mxu0 0.0
  %2002 = vmatprep.subr.mxu0 0.0
  %2003 = vmatpush1.msra.mxu0 0.0
  %2004 = vmatprep.subr.mxu0 0.0
  %2005 = vmatpush1.msra.mxu0 0.0
  %2006 = vmatprep.subr.mxu0 0.0
  %2007 = vmatpush1.msra.mxu0 0.0
  %2008 = vmatprep.subr.mxu0 0.0
  %2009 = vmatpush1.msra.mxu0 0.0
  %2010 = vmatprep.subr.mxu0 0.0
  %2011 = vmatpush1.msra.mxu0 0.0
  %2012 = vmatprep.subr.mxu0 0.0
  %2013 = vmatpush1.msra.mxu0 0.0
  %2014 = vmatprep.subr.mxu0 0.0
  %2015 = vmatpush1.msra.mxu0 0.0
  %2016 = vmatprep.mubr.f32.mxu0 0.0
  %v2017 = vand.u32 %v1452, 4294901760
  %2018 = vmatmul.mubr.f32.gmra.mrb[0].mxu0 %v2017
  %v2019 = vpop.f32.mrb[0].mxu0
  %v2020 = vadd.f32 %v1898, %v2019
  %v2021 = vpop.f32.mrb[0].mxu0
  %2022 = vmatprep.mubr.f32.mxu0 0.0
  %v2023 = vand.u32 %v1454, 4294901760
  %2024 = vmatmul.mubr.f32.gmra.mrb[0].mxu0 %v2023
  %v2025 = vpop.f32.mrb[0].mxu0
  %v2026 = vadd.f32 %v1906, %v2025
  %v2027 = vpop.f32.mrb[0].mxu0
  %2028 = vmatprep.mubr.f32.mxu0 0.0
  %v2029 = vand.u32 %v1456, 4294901760
  %2030 = vmatmul.mubr.f32.gmra.mrb[0].mxu0 %v2029
  %v2031 = vpop.f32.mrb[0].mxu0
  %v2032 = vadd.f32 %v1914, %v2031
  %v2033 = vpop.f32.mrb[0].mxu0
  %2034 = vmatprep.mubr.f32.mxu0 0.0
  %v2035 = vand.u32 %v1458, 4294901760
  %2036 = vmatmul.mubr.f32.gmra.mrb[0].mxu0 %v2035
  %v2037 = vpop.f32.mrb[0].mxu0
  %v2038 = vadd.f32 %v1922, %v2037
  %v2039 = vpop.f32.mrb[0].mxu0
  %2040 = vdwg.mxu0
  %2041 = vmatprep.subr.mxu0 0.0
  %v2042 = vand.u32 %v1443, 4294901760
  %2043 = vmatpush1.msra.mxu0 %v2042
  %2044 = vmatprep.subr.mxu0 0.0
  %v2045 = vand.u32 %v1444, 4294901760
  %2046 = vmatpush1.msra.mxu0 %v2045
  %2047 = vmatprep.subr.mxu0 0.0
  %v2048 = vand.u32 %v1445, 4294901760
  %2049 = vmatpush1.msra.mxu0 %v2048
  %2050 = vmatprep.subr.mxu0 0.0
  %v2051 = vand.u32 %v1446, 4294901760
  %2052 = vmatpush1.msra.mxu0 %v2051
  %2053 = vmatprep.subr.mxu0 0.0
  %v2054 = vand.u32 %v1447, 4294901760
  %2055 = vmatpush1.msra.mxu0 %v2054
  %2056 = vmatprep.subr.mxu0 0.0
  %v2057 = vand.u32 %v1448, 4294901760
  %2058 = vmatpush1.msra.mxu0 %v2057
  %2059 = vmatprep.subr.mxu0 0.0
  %v2060 = vand.u32 %v1449, 4294901760
  %2061 = vmatpush1.msra.mxu0 %v2060
  %2062 = vmatprep.subr.mxu0 0.0
  %v2063 = vand.u32 %v1450, 4294901760
  %2064 = vmatpush1.msra.mxu0 %v2063
  %2065 = vmatprep.subr.mxu0 0.0
  %v2066 = vand.u32 %v1451, 4294901760
  %2067 = vmatpush1.msra.mxu0 %v2066
  %2068 = vmatprep.subr.mxu0 0.0
  %2069 = vmatpush1.msra.mxu0 0.0
  %2070 = vmatprep.subr.mxu0 0.0
  %2071 = vmatpush1.msra.mxu0 0.0
  %2072 = vmatprep.subr.mxu0 0.0
  %2073 = vmatpush1.msra.mxu0 0.0
  %2074 = vmatprep.subr.mxu0 0.0
  %2075 = vmatpush1.msra.mxu0 0.0
  %2076 = vmatprep.subr.mxu0 0.0
  %2077 = vmatpush1.msra.mxu0 0.0
  %2078 = vmatprep.subr.mxu0 0.0
  %2079 = vmatpush1.msra.mxu0 0.0
  %2080 = vmatprep.subr.mxu0 0.0
  %2081 = vmatpush1.msra.mxu0 0.0
  %2082 = vmatprep.subr.mxu0 0.0
  %2083 = vmatpush1.msra.mxu0 0.0
  %2084 = vmatprep.subr.mxu0 0.0
  %2085 = vmatpush1.msra.mxu0 0.0
  %2086 = vmatprep.subr.mxu0 0.0
  %2087 = vmatpush1.msra.mxu0 0.0
  %2088 = vmatprep.subr.mxu0 0.0
  %2089 = vmatpush1.msra.mxu0 0.0
  %2090 = vmatprep.subr.mxu0 0.0
  %2091 = vmatpush1.msra.mxu0 0.0
  %2092 = vmatprep.subr.mxu0 0.0
  %2093 = vmatpush1.msra.mxu0 0.0
  %2094 = vmatprep.subr.mxu0 0.0
  %2095 = vmatpush1.msra.mxu0 0.0
  %2096 = vmatprep.subr.mxu0 0.0
  %2097 = vmatpush1.msra.mxu0 0.0
  %2098 = vmatprep.subr.mxu0 0.0
  %2099 = vmatpush1.msra.mxu0 0.0
  %2100 = vmatprep.subr.mxu0 0.0
  %2101 = vmatpush1.msra.mxu0 0.0
  %2102 = vmatprep.subr.mxu0 0.0
  %2103 = vmatpush1.msra.mxu0 0.0
  %2104 = vmatprep.subr.mxu0 0.0
  %2105 = vmatpush1.msra.mxu0 0.0
  %2106 = vmatprep.subr.mxu0 0.0
  %2107 = vmatpush1.msra.mxu0 0.0
  %2108 = vmatprep.subr.mxu0 0.0
  %2109 = vmatpush1.msra.mxu0 0.0
  %2110 = vmatprep.subr.mxu0 0.0
  %2111 = vmatpush1.msra.mxu0 0.0
  %2112 = vmatprep.subr.mxu0 0.0
  %2113 = vmatpush1.msra.mxu0 0.0
  %2114 = vmatprep.mubr.f32.mxu0 0.0
  %v2115 = vand.u32 %v1452, 4294901760
  %2116 = vmatmul.mubr.f32.gmra.mrb[0].mxu0 %v2115
  %v2117 = vpop.f32.mrb[0].mxu0
  %v2118 = vadd.f32 %v2020, %v2117
  %v2119 = vpop.f32.mrb[0].mxu0
  %2120 = vmatprep.mubr.f32.mxu0 0.0
  %v2121 = vand.u32 %v1454, 4294901760
  %2122 = vmatmul.mubr.f32.gmra.mrb[0].mxu0 %v2121
  %v2123 = vpop.f32.mrb[0].mxu0
  %v2124 = vadd.f32 %v2026, %v2123
  %v2125 = vpop.f32.mrb[0].mxu0
  %2126 = vmatprep.mubr.f32.mxu0 0.0
  %v2127 = vand.u32 %v1456, 4294901760
  %2128 = vmatmul.mubr.f32.gmra.mrb[0].mxu0 %v2127
  %v2129 = vpop.f32.mrb[0].mxu0
  %v2130 = vadd.f32 %v2032, %v2129
  %v2131 = vpop.f32.mrb[0].mxu0
  %2132 = vmatprep.mubr.f32.mxu0 0.0
  %v2133 = vand.u32 %v1458, 4294901760
  %2134 = vmatmul.mubr.f32.gmra.mrb[0].mxu0 %v2133
  %v2135 = vpop.f32.mrb[0].mxu0
  %v2136 = vadd.f32 %v2038, %v2135
  %v2137 = vpop.f32.mrb[0].mxu0
  %2138 = vdwg.mxu0
  %v2139 = vadd.f32 %v1410, %v2118
  %v2140 = vadd.f32 %v1416, %v2124
  %v2141 = vadd.f32 %v1422, %v2130
  %v2142 = vadd.f32 %v1428, %v2136
  %2143 = vst [vmem:[%s2] sm:$0xff] %v2139
  %2144 = vst [vmem:[%s2 + $0x8] sm:$0xff] %v2140
  %2145 = vst [vmem:[%s2 + $0x10] sm:$0xff] %v2141
  %2146 = vst [vmem:[%s2 + $0x18] sm:$0xff] %v2142
  %v2147 = vadd.f32 %v2139, %v2140
  %v2148 = vadd.f32 %v2147, %v2141
  %v2149 = vadd.f32 %v2148, %v2142
  %v2150 = vrot.slane %v2149, 4
  %v2151 = vadd.f32 %v2149, %v2150
  %v2152 = vrot.slane %v2151, 2
  %v2153 = vadd.f32 %v2151, %v2152
  %v2154 = vrot.slane %v2153, 1
  %v2155 = vadd.f32 %v2153, %v2154
  %2156 = vst [vmem:[%s3] sm:$0x1] %v2155
  %v2157 = vmul.f32 %v2139, %v2139
  %v2158 = vmul.f32 %v2140, %v2140
  %v2159 = vmul.f32 %v2141, %v2141
  %v2160 = vmul.f32 %v2142, %v2142
  %v2161 = vadd.f32 %v2157, %v2158
  %v2162 = vadd.f32 %v2161, %v2159
  %v2163 = vadd.f32 %v2162, %v2160
  %v2164 = vrot.slane %v2163, 4
  %v2165 = vadd.f32 %v2163, %v2164
  %v2166 = vrot.slane %v2165, 2
  %v2167 = vadd.f32 %v2165, %v2166
  %v2168 = vrot.slane %v2167, 1
  %v2169 = vadd.f32 %v2167, %v2168
  %2170 = vst [vmem:[%s4] sm:$0x1] %v2169
  // Predicated region
  $region10: #{double_conv.3} parent=0 // pred_check
    _
  $region11: #{double_conv.3} parent=0 // pred_check_branch
    %2172 = sbr.rel (0) target = $region13
  $region12: #{double_conv.3} parent=0 // pred_region
    _
  $region13: #{double_conv.3} parent=0 // pred_fallthru
    _
  // Predicated region
  $region14: #{double_conv.3} parent=0 // pred_check
    _
  $region15: #{double_conv.3} parent=0 // pred_check_branch
    %2174 = sbr.rel (0) target = $region17
  $region16: #{double_conv.3} parent=0 // pred_region
    _
  $region17: #{double_conv.3} parent=0 // pred_fallthru
    _
  // Predicated region
  $region18: #{double_conv.3} parent=0 // pred_check
    _
  $region19: #{double_conv.3} parent=0 // pred_check_branch
    %2176 = sbr.rel (0) target = $region21
  $region20: #{double_conv.3} parent=0 // pred_region
    _
  $region21: #{double_conv.3} parent=0 // pred_fallthru
    _
  // Predicated region
  $region22: #{double_conv.3} parent=0 // pred_check
    _
  $region23: #{double_conv.3} parent=0 // pred_check_branch
    %2178 = sbr.rel (0) target = $region25
  $region24: #{double_conv.3} parent=0 // pred_region
    _
  $region25: #{double_conv.3} parent=0 // pred_fallthru
    _
  // Predicated region
  $region26: #{double_conv.3} parent=0 // pred_check
    _
  $region27: #{double_conv.3} parent=0 // pred_check_branch
    %2180 = sbr.rel (0) target = $region29
  $region28: #{double_conv.3} parent=0 // pred_region
    _
  $region29: #{double_conv.3} parent=0 // pred_fallthru
    _
  // Predicated region
  $region30: #{double_conv.3} parent=0 // pred_check
    _
  $region31: #{double_conv.3} parent=0 // pred_check_branch
    %2182 = sbr.rel (0) target = $region33
  $region32: #{double_conv.3} parent=0 // pred_region
    _
  $region33: #{double_conv.3} parent=0 // pred_fallthru
    _

// kernel: double_conv.4
$region0: #{double_conv.4}
  #allocation0 [shape = 'u32[]', space=smem, size = 0x4, offset = 0x4, fixed_abs, tag = 'smem constant byte address 0x4 - core index']
  #allocation1 [shape = 'u32[144,128]{1,0:T(1,128)}', space=vmem, size = 0x12000, scoped, tag = 'internal scratch']
  %s0 = inlined_call_operand.vmem [shape: f32[2,18,144], index: 0, kind: input, shape index: {}]
  %s1 = inlined_call_operand.vmem [shape: f32[1,144], index: 1, kind: input, shape index: {}]
  %s2 = inlined_call_operand.vmem [shape: f32[1,144], index: 2, kind: input, shape index: {}]
  %s3 = inlined_call_operand.vmem [shape: f32[1,18,144], index: 3, kind: input, shape index: {}]
  %s4 = inlined_call_operand.vmem [shape: f32[3,144,128], index: 4, kind: input, shape index: {}]
  %s5 = inlined_call_operand.vmem [shape: f32[2,16,128], index: 5, kind: output, shape index: {0}]
  %s6 = inlined_call_operand.vmem [shape: f32[1,1,128], index: 6, kind: output, shape index: {1}]
  %s7 = inlined_call_operand.vmem [shape: f32[1,1,128], index: 7, kind: output, shape index: {2}]
  %8 = xla_tuple %s5, %s6, %s7
  %s9 = sld [smem:[#allocation0]]
  $region46: #{double_conv.4} parent=0
    _
  %s11 = ssub.s32 1, %s9
  %s12 = scalar_select 0, %s11, %s9
  // Predicated region
  $region2: #{double_conv.4} parent=0 // pred_check
    _
  $region3: #{double_conv.4} parent=0 // pred_check_branch
    %14 = sbr.rel (0) target = $region5
  $region4: #{double_conv.4} parent=0 // pred_region
    _
  $region5: #{double_conv.4} parent=0 // pred_fallthru
    _
  // Predicated region
  $region6: #{double_conv.4} parent=0 // pred_check
    _
  $region7: #{double_conv.4} parent=0 // pred_check_branch
    %16 = sbr.rel (0) target = $region9
  $region8: #{double_conv.4} parent=0 // pred_region
    _
  $region9: #{double_conv.4} parent=0 // pred_fallthru
    _
  // Predicated region
  $region10: #{double_conv.4} parent=0 // pred_check
    _
  $region11: #{double_conv.4} parent=0 // pred_check_branch
    %18 = sbr.rel (0) target = $region13
  $region12: #{double_conv.4} parent=0 // pred_region
    _
  $region13: #{double_conv.4} parent=0 // pred_fallthru
    _
  // Predicated region
  $region14: #{double_conv.4} parent=0 // pred_check
    _
  $region15: #{double_conv.4} parent=0 // pred_check_branch
    %20 = sbr.rel (0) target = $region17
  $region16: #{double_conv.4} parent=0 // pred_region
    _
  $region17: #{double_conv.4} parent=0 // pred_fallthru
    _
  // Predicated region
  $region18: #{double_conv.4} parent=0 // pred_check
    _
  $region19: #{double_conv.4} parent=0 // pred_check_branch
    %22 = sbr.rel (0) target = $region21
  $region20: #{double_conv.4} parent=0 // pred_region
    _
  $region21: #{double_conv.4} parent=0 // pred_fallthru
    _
  %v23 = vld [vmem:[%s0] sm:$0xff]
  %v24 = vld [vmem:[%s0 + $0x8] sm:$0xff]
  %v25 = vld [vmem:[%s0 + $0x10] sm:$0xff]
  %v26 = vld [vmem:[%s0 + $0x18] sm:$0xff]
  %v27 = vld [vmem:[%s0 + $0x20] sm:$0x3]
  %v28 = vld [vmem:[%s0 + $0x28] sm:$0x3]
  %v29 = vld [vmem:[%s0 + $0x30] sm:$0xff]
  %v30 = vld [vmem:[%s0 + $0x38] sm:$0xff]
  %v31 = vld [vmem:[%s0 + $0x40] sm:$0xff]
  %v32 = vld [vmem:[%s0 + $0x48] sm:$0xff]
  %v33 = vld [vmem:[%s0 + $0x50] sm:$0x3]
  %v34 = vld [vmem:[%s0 + $0x58] sm:$0x3]
  %v35 = vld [vmem:[%s1] sm:$0x3]
  %v37 = vlaneseq
  %v38 = vshrl.u32 %v37, 7
  %v39 = vsub.s32 0, %v38
  %v40 = vrot.slane %v35, %v39
  %v41 = vlaneseq
  %v42 = vshrl.u32 %v41, 7
  %v43 = vsub.s32 1, %v42
  %v44 = vrot.slane %v35, %v43
  %v47 = vmul.f32 %v23, %v40
  %v48 = vmul.f32 %v24, %v44
  %v49 = vmul.f32 %v25, %v40
  %v50 = vmul.f32 %v26, %v44
  %v51 = vmul.f32 %v27, %v40
  %v52 = vmul.f32 %v28, %v44
  %v53 = vmul.f32 %v29, %v40
  %v54 = vmul.f32 %v30, %v44
  %v55 = vmul.f32 %v31, %v40
  %v56 = vmul.f32 %v32, %v44
  %v57 = vmul.f32 %v33, %v40
  %v58 = vmul.f32 %v34, %v44
  %v59 = vld [vmem:[%s2] sm:$0x3]
  %v61 = vlaneseq
  %v62 = vshrl.u32 %v61, 7
  %v63 = vsub.s32 0, %v62
  %v64 = vrot.slane %v59, %v63
  %v65 = vlaneseq
  %v66 = vshrl.u32 %v65, 7
  %v67 = vsub.s32 1, %v66
  %v68 = vrot.slane %v59, %v67
  %v71 = vadd.f32 %v47, %v64
  %v72 = vadd.f32 %v48, %v68
  %v73 = vadd.f32 %v49, %v64
  %v74 = vadd.f32 %v50, %v68
  %v75 = vadd.f32 %v51, %v64
  %v76 = vadd.f32 %v52, %v68
  %v77 = vadd.f32 %v53, %v64
  %v78 = vadd.f32 %v54, %v68
  %v79 = vadd.f32 %v55, %v64
  %v80 = vadd.f32 %v56, %v68
  %v81 = vadd.f32 %v57, %v64
  %v82 = vadd.f32 %v58, %v68
  %v83 = vxor.u32 %v71, 2147483648
  %v84 = vxor.u32 %v72, 2147483648
  %v85 = vxor.u32 %v73, 2147483648
  %v86 = vxor.u32 %v74, 2147483648
  %v87 = vxor.u32 %v75, 2147483648
  %v88 = vxor.u32 %v76, 2147483648
  %v89 = vxor.u32 %v77, 2147483648
  %v90 = vxor.u32 %v78, 2147483648
  %v91 = vxor.u32 %v79, 2147483648
  %v92 = vxor.u32 %v80, 2147483648
  %v93 = vxor.u32 %v81, 2147483648
  %v94 = vxor.u32 %v82, 2147483648
  %v95 = vmul.f32 %v83, 1.442695
  %v96 = vpow.pop %v95
  %v97 = vmul.f32 %v84, 1.442695
  %v98 = vpow.pop %v97
  %v99 = vmul.f32 %v85, 1.442695
  %v100 = vpow.pop %v99
  %v101 = vmul.f32 %v86, 1.442695
  %v102 = vpow.pop %v101
  %v103 = vmul.f32 %v87, 1.442695
  %v104 = vpow.pop %v103
  %v105 = vmul.f32 %v88, 1.442695
  %v106 = vpow.pop %v105
  %v107 = vmul.f32 %v89, 1.442695
  %v108 = vpow.pop %v107
  %v109 = vmul.f32 %v90, 1.442695
  %v110 = vpow.pop %v109
  %v111 = vmul.f32 %v91, 1.442695
  %v112 = vpow.pop %v111
  %v113 = vmul.f32 %v92, 1.442695
  %v114 = vpow.pop %v113
  %v115 = vmul.f32 %v93, 1.442695
  %v116 = vpow.pop %v115
  %v117 = vmul.f32 %v94, 1.442695
  %v118 = vpow.pop %v117
  %v119 = vadd.f32 %v96, 1.0
  %v120 = vadd.f32 %v98, 1.0
  %v121 = vadd.f32 %v100, 1.0
  %v122 = vadd.f32 %v102, 1.0
  %v123 = vadd.f32 %v104, 1.0
  %v124 = vadd.f32 %v106, 1.0
  %v125 = vadd.f32 %v108, 1.0
  %v126 = vadd.f32 %v110, 1.0
  %v127 = vadd.f32 %v112, 1.0
  %v128 = vadd.f32 %v114, 1.0
  %v129 = vadd.f32 %v116, 1.0
  %v130 = vadd.f32 %v118, 1.0
  %v131 = vrcp.pop %v119
  %v132 = vmul.f32 1.0, %v131
  %v133 = vrcp.pop %v120
  %v134 = vmul.f32 1.0, %v133
  %v135 = vrcp.pop %v121
  %v136 = vmul.f32 1.0, %v135
  %v137 = vrcp.pop %v122
  %v138 = vmul.f32 1.0, %v137
  %v139 = vrcp.pop %v123
  %v140 = vmul.f32 1.0, %v139
  %v141 = vrcp.pop %v124
  %v142 = vmul.f32 1.0, %v141
  %v143 = vrcp.pop %v125
  %v144 = vmul.f32 1.0, %v143
  %v145 = vrcp.pop %v126
  %v146 = vmul.f32 1.0, %v145
  %v147 = vrcp.pop %v127
  %v148 = vmul.f32 1.0, %v147
  %v149 = vrcp.pop %v128
  %v150 = vmul.f32 1.0, %v149
  %v151 = vrcp.pop %v129
  %v152 = vmul.f32 1.0, %v151
  %v153 = vrcp.pop %v130
  %v154 = vmul.f32 1.0, %v153
  %v155 = vmul.f32 %v71, %v132
  %v156 = vmul.f32 %v72, %v134
  %v157 = vmul.f32 %v73, %v136
  %v158 = vmul.f32 %v74, %v138
  %v159 = vmul.f32 %v75, %v140
  %v160 = vmul.f32 %v76, %v142
  %v161 = vmul.f32 %v77, %v144
  %v162 = vmul.f32 %v78, %v146
  %v163 = vmul.f32 %v79, %v148
  %v164 = vmul.f32 %v80, %v150
  %v165 = vmul.f32 %v81, %v152
  %v166 = vmul.f32 %v82, %v154
  %v167 = vld [vmem:[%s3] sm:$0xff]
  %v168 = vld [vmem:[%s3 + $0x8] sm:$0xff]
  %v169 = vld [vmem:[%s3 + $0x10] sm:$0xff]
  %v170 = vld [vmem:[%s3 + $0x18] sm:$0xff]
  %v171 = vld [vmem:[%s3 + $0x20] sm:$0x3]
  %v172 = vld [vmem:[%s3 + $0x28] sm:$0x3]
  %v173 = vmul.f32 %v155, %v167
  %v174 = vmul.f32 %v156, %v168
  %v175 = vmul.f32 %v157, %v169
  %v176 = vmul.f32 %v158, %v170
  %v177 = vmul.f32 %v159, %v171
  %v178 = vmul.f32 %v160, %v172
  %v179 = vmul.f32 %v161, %v167
  %v180 = vmul.f32 %v162, %v168
  %v181 = vmul.f32 %v163, %v169
  %v182 = vmul.f32 %v164, %v170
  %v183 = vmul.f32 %v165, %v171
  %v184 = vmul.f32 %v166, %v172
  %v185 = vld [vmem:[%s4] sm:$0xff]
  %v186 = vld [vmem:[%s4 + $0x8] sm:$0xff]
  %v187 = vld [vmem:[%s4 + $0x10] sm:$0xff]
  %v188 = vld [vmem:[%s4 + $0x18] sm:$0xff]
  %v189 = vld [vmem:[%s4 + $0x20] sm:$0xff]
  %v190 = vld [vmem:[%s4 + $0x28] sm:$0xff]
  %v191 = vld [vmem:[%s4 + $0x30] sm:$0xff]
  %v192 = vld [vmem:[%s4 + $0x38] sm:$0xff]
  %v193 = vld [vmem:[%s4 + $0x40] sm:$0xff]
  %v194 = vld [vmem:[%s4 + $0x48] sm:$0xff]
  %v195 = vld [vmem:[%s4 + $0x50] sm:$0xff]
  %v196 = vld [vmem:[%s4 + $0x58] sm:$0xff]
  %v197 = vld [vmem:[%s4 + $0x60] sm:$0xff]
  %v198 = vld [vmem:[%s4 + $0x68] sm:$0xff]
  %v199 = vld [vmem:[%s4 + $0x70] sm:$0xff]
  %v200 = vld [vmem:[%s4 + $0x78] sm:$0xff]
  %v201 = vld [vmem:[%s4 + $0x80] sm:$0xff]
  %v202 = vld [vmem:[%s4 + $0x88] sm:$0xff]
  %vm215 = vcmask 1046528
  %v216 = vrot.slane %v173, 1
  %v217 = vrot.slane %v175, 1
  %v218 = vsel %vm215, %v216, %v217
  %v219 = vrot.slane %v174, 1
  %v220 = vrot.slane %v176, 1
  %v221 = vsel %vm215, %v219, %v220
  %v222 = vrot.slane %v177, 1
  %v223 = vsel %vm215, %v217, %v222
  %v224 = vrot.slane %v178, 1
  %v225 = vsel %vm215, %v220, %v224
  %v226 = vrot.slane %v179, 1
  %v227 = vrot.slane %v181, 1
  %v228 = vsel %vm215, %v226, %v227
  %v229 = vrot.slane %v180, 1
  %v230 = vrot.slane %v182, 1
  %v231 = vsel %vm215, %v229, %v230
  %v232 = vrot.slane %v183, 1
  %v233 = vsel %vm215, %v227, %v232
  %v234 = vrot.slane %v184, 1
  %v235 = vsel %vm215, %v230, %v234
  %s240 = scalar_lea.vmem %s4, 144
  %v241 = vld [vmem:[%s240] sm:$0xff]
  %v242 = vld [vmem:[%s240 + $0x8] sm:$0xff]
  %v243 = vld [vmem:[%s240 + $0x10] sm:$0xff]
  %v244 = vld [vmem:[%s240 + $0x18] sm:$0xff]
  %v245 = vld [vmem:[%s240 + $0x20] sm:$0xff]
  %v246 = vld [vmem:[%s240 + $0x28] sm:$0xff]
  %v247 = vld [vmem:[%s240 + $0x30] sm:$0xff]
  %v248 = vld [vmem:[%s240 + $0x38] sm:$0xff]
  %v249 = vld [vmem:[%s240 + $0x40] sm:$0xff]
  %v250 = vld [vmem:[%s240 + $0x48] sm:$0xff]
  %v251 = vld [vmem:[%s240 + $0x50] sm:$0xff]
  %v252 = vld [vmem:[%s240 + $0x58] sm:$0xff]
  %v253 = vld [vmem:[%s240 + $0x60] sm:$0xff]
  %v254 = vld [vmem:[%s240 + $0x68] sm:$0xff]
  %v255 = vld [vmem:[%s240 + $0x70] sm:$0xff]
  %v256 = vld [vmem:[%s240 + $0x78] sm:$0xff]
  %v257 = vld [vmem:[%s240 + $0x80] sm:$0xff]
  %v258 = vld [vmem:[%s240 + $0x88] sm:$0xff]
  %vm259 = vcmask 130048
  %v260 = vsel %vm259, %v221, 0
  %v262 = vsel %vm259, %v225, 0
  %v264 = vsel %vm259, %v231, 0
  %v266 = vsel %vm259, %v235, 0
  %268 = vmatprep.subr.mxu0 0.0
  %v269 = vand.u32 %v241, 4294901760
  %270 = vmatpush1.msra.mxu0 %v269
  %271 = vmatprep.subr.mxu0 0.0
  %v272 = vand.u32 %v242, 4294901760
  %273 = vmatpush1.msra.mxu0 %v272
  %274 = vmatprep.subr.mxu0 0.0
  %v275 = vand.u32 %v243, 4294901760
  %276 = vmatpush1.msra.mxu0 %v275
  %277 = vmatprep.subr.mxu0 0.0
  %v278 = vand.u32 %v244, 4294901760
  %279 = vmatpush1.msra.mxu0 %v278
  %280 = vmatprep.subr.mxu0 0.0
  %v281 = vand.u32 %v245, 4294901760
  %282 = vmatpush1.msra.mxu0 %v281
  %283 = vmatprep.subr.mxu0 0.0
  %v284 = vand.u32 %v246, 4294901760
  %285 = vmatpush1.msra.mxu0 %v284
  %286 = vmatprep.subr.mxu0 0.0
  %v287 = vand.u32 %v247, 4294901760
  %288 = vmatpush1.msra.mxu0 %v287
  %289 = vmatprep.subr.mxu0 0.0
  %v290 = vand.u32 %v248, 4294901760
  %291 = vmatpush1.msra.mxu0 %v290
  %292 = vmatprep.subr.mxu0 0.0
  %v293 = vand.u32 %v249, 4294901760
  %294 = vmatpush1.msra.mxu0 %v293
  %295 = vmatprep.subr.mxu0 0.0
  %v296 = vand.u32 %v250, 4294901760
  %297 = vmatpush1.msra.mxu0 %v296
  %298 = vmatprep.subr.mxu0 0.0
  %v299 = vand.u32 %v251, 4294901760
  %300 = vmatpush1.msra.mxu0 %v299
  %301 = vmatprep.subr.mxu0 0.0
  %v302 = vand.u32 %v252, 4294901760
  %303 = vmatpush1.msra.mxu0 %v302
  %304 = vmatprep.subr.mxu0 0.0
  %v305 = vand.u32 %v253, 4294901760
  %306 = vmatpush1.msra.mxu0 %v305
  %307 = vmatprep.subr.mxu0 0.0
  %v308 = vand.u32 %v254, 4294901760
  %309 = vmatpush1.msra.mxu0 %v308
  %310 = vmatprep.subr.mxu0 0.0
  %v311 = vand.u32 %v255, 4294901760
  %312 = vmatpush1.msra.mxu0 %v311
  %313 = vmatprep.subr.mxu0 0.0
  %v314 = vand.u32 %v256, 4294901760
  %315 = vmatpush1.msra.mxu0 %v314
  %316 = vmatprep.subr.mxu0 0.0
  %v317 = vand.u32 %v257, 4294901760
  %318 = vmatpush1.msra.mxu0 %v317
  %319 = vmatprep.subr.mxu0 0.0
  %v320 = vand.u32 %v258, 4294901760
  %321 = vmatpush1.msra.mxu0 %v320
  %322 = vmatprep.subr.mxu0 0.0
  %323 = vmatpush1.msra.mxu0 0.0
  %324 = vmatprep.subr.mxu0 0.0
  %325 = vmatpush1.msra.mxu0 0.0
  %326 = vmatprep.subr.mxu0 0.0
  %327 = vmatpush1.msra.mxu0 0.0
  %328 = vmatprep.subr.mxu0 0.0
  %329 = vmatpush1.msra.mxu0 0.0
  %330 = vmatprep.subr.mxu0 0.0
  %331 = vmatpush1.msra.mxu0 0.0
  %332 = vmatprep.subr.mxu0 0.0
  %333 = vmatpush1.msra.mxu0 0.0
  %334 = vmatprep.subr.mxu0 0.0
  %335 = vmatpush1.msra.mxu0 0.0
  %336 = vmatprep.subr.mxu0 0.0
  %337 = vmatpush1.msra.mxu0 0.0
  %338 = vmatprep.subr.mxu0 0.0
  %339 = vmatpush1.msra.mxu0 0.0
  %340 = vmatprep.subr.mxu0 0.0
  %341 = vmatpush1.msra.mxu0 0.0
  %342 = vmatprep.subr.mxu0 0.0
  %343 = vmatpush1.msra.mxu0 0.0
  %344 = vmatprep.subr.mxu0 0.0
  %345 = vmatpush1.msra.mxu0 0.0
  %346 = vmatprep.subr.mxu0 0.0
  %347 = vmatpush1.msra.mxu0 0.0
  %348 = vmatprep.subr.mxu0 0.0
  %349 = vmatpush1.msra.mxu0 0.0
  %v350 = vand.u32 %v260, 4294901760
  %v351 = vsub.f32 %v260, %v350
  %v352 = vand.u32 %v351, 4294901760
  %v353 = vsub.f32 %v351, %v352
  %v354 = vand.u32 %v353, 4294901760
  %355 = vmatprep.mubr.f32.mxu0 %v354
  %v356 = vand.u32 %v218, 4294901760
  %v357 = vsub.f32 %v218, %v356
  %v358 = vand.u32 %v357, 4294901760
  %v359 = vsub.f32 %v357, %v358
  %v360 = vand.u32 %v359, 4294901760
  %361 = vmatmul.mubr.f32.gmra.mrb[0].mxu0 %v360
  %v362 = vpop.f32.mrb[0].mxu0
  %v363 = vadd.f32 0.0, %v362
  %v364 = vpop.f32.mrb[0].mxu0
  %v365 = vand.u32 %v262, 4294901760
  %v366 = vsub.f32 %v262, %v365
  %v367 = vand.u32 %v366, 4294901760
  %v368 = vsub.f32 %v366, %v367
  %v369 = vand.u32 %v368, 4294901760
  %370 = vmatprep.mubr.f32.mxu0 %v369
  %v371 = vand.u32 %v223, 4294901760
  %v372 = vsub.f32 %v223, %v371
  %v373 = vand.u32 %v372, 4294901760
  %v374 = vsub.f32 %v372, %v373
  %v375 = vand.u32 %v374, 4294901760
  %376 = vmatmul.mubr.f32.gmra.mrb[0].mxu0 %v375
  %v377 = vpop.f32.mrb[0].mxu0
  %v378 = vadd.f32 0.0, %v377
  %v379 = vpop.f32.mrb[0].mxu0
  %v380 = vand.u32 %v264, 4294901760
  %v381 = vsub.f32 %v264, %v380
  %v382 = vand.u32 %v381, 4294901760
  %v383 = vsub.f32 %v381, %v382
  %v384 = vand.u32 %v383, 4294901760
  %385 = vmatprep.mubr.f32.mxu0 %v384
  %v386 = vand.u32 %v228, 4294901760
  %v387 = vsub.f32 %v228, %v386
  %v388 = vand.u32 %v387, 4294901760
  %v389 = vsub.f32 %v387, %v388
  %v390 = vand.u32 %v389, 4294901760
  %391 = vmatmul.mubr.f32.gmra.mrb[0].mxu0 %v390
  %v392 = vpop.f32.mrb[0].mxu0
  %v393 = vadd.f32 0.0, %v392
  %v394 = vpop.f32.mrb[0].mxu0
  %v395 = vand.u32 %v266, 4294901760
  %v396 = vsub.f32 %v266, %v395
  %v397 = vand.u32 %v396, 4294901760
  %v398 = vsub.f32 %v396, %v397
  %v399 = vand.u32 %v398, 4294901760
  %400 = vmatprep.mubr.f32.mxu0 %v399
  %v401 = vand.u32 %v233, 4294901760
  %v402 = vsub.f32 %v233, %v401
  %v403 = vand.u32 %v402, 4294901760
  %v404 = vsub.f32 %v402, %v403
  %v405 = vand.u32 %v404, 4294901760
  %406 = vmatmul.mubr.f32.gmra.mrb[0].mxu0 %v405
  %v407 = vpop.f32.mrb[0].mxu0
  %v408 = vadd.f32 0.0, %v407
  %v409 = vpop.f32.mrb[0].mxu0
  %410 = vdwg.mxu0
  %411 = vmatprep.subr.mxu0 0.0
  %v412 = vand.u32 %v241, 4294901760
  %v413 = vsub.f32 %v241, %v412
  %v414 = vand.u32 %v413, 4294901760
  %v415 = vsub.f32 %v413, %v414
  %v416 = vand.u32 %v415, 4294901760
  %417 = vmatpush1.msra.mxu0 %v416
  %418 = vmatprep.subr.mxu0 0.0
  %v419 = vand.u32 %v242, 4294901760
  %v420 = vsub.f32 %v242, %v419
  %v421 = vand.u32 %v420, 4294901760
  %v422 = vsub.f32 %v420, %v421
  %v423 = vand.u32 %v422, 4294901760
  %424 = vmatpush1.msra.mxu0 %v423
  %425 = vmatprep.subr.mxu0 0.0
  %v426 = vand.u32 %v243, 4294901760
  %v427 = vsub.f32 %v243, %v426
  %v428 = vand.u32 %v427, 4294901760
  %v429 = vsub.f32 %v427, %v428
  %v430 = vand.u32 %v429, 4294901760
  %431 = vmatpush1.msra.mxu0 %v430
  %432 = vmatprep.subr.mxu0 0.0
  %v433 = vand.u32 %v244, 4294901760
  %v434 = vsub.f32 %v244, %v433
  %v435 = vand.u32 %v434, 4294901760
  %v436 = vsub.f32 %v434, %v435
  %v437 = vand.u32 %v436, 4294901760
  %438 = vmatpush1.msra.mxu0 %v437
  %439 = vmatprep.subr.mxu0 0.0
  %v440 = vand.u32 %v245, 4294901760
  %v441 = vsub.f32 %v245, %v440
  %v442 = vand.u32 %v441, 4294901760
  %v443 = vsub.f32 %v441, %v442
  %v444 = vand.u32 %v443, 4294901760
  %445 = vmatpush1.msra.mxu0 %v444
  %446 = vmatprep.subr.mxu0 0.0
  %v447 = vand.u32 %v246, 4294901760
  %v448 = vsub.f32 %v246, %v447
  %v449 = vand.u32 %v448, 4294901760
  %v450 = vsub.f32 %v448, %v449
  %v451 = vand.u32 %v450, 4294901760
  %452 = vmatpush1.msra.mxu0 %v451
  %453 = vmatprep.subr.mxu0 0.0
  %v454 = vand.u32 %v247, 4294901760
  %v455 = vsub.f32 %v247, %v454
  %v456 = vand.u32 %v455, 4294901760
  %v457 = vsub.f32 %v455, %v456
  %v458 = vand.u32 %v457, 4294901760
  %459 = vmatpush1.msra.mxu0 %v458
  %460 = vmatprep.subr.mxu0 0.0
  %v461 = vand.u32 %v248, 4294901760
  %v462 = vsub.f32 %v248, %v461
  %v463 = vand.u32 %v462, 4294901760
  %v464 = vsub.f32 %v462, %v463
  %v465 = vand.u32 %v464, 4294901760
  %466 = vmatpush1.msra.mxu0 %v465
  %467 = vmatprep.subr.mxu0 0.0
  %v468 = vand.u32 %v249, 4294901760
  %v469 = vsub.f32 %v249, %v468
  %v470 = vand.u32 %v469, 4294901760
  %v471 = vsub.f32 %v469, %v470
  %v472 = vand.u32 %v471, 4294901760
  %473 = vmatpush1.msra.mxu0 %v472
  %474 = vmatprep.subr.mxu0 0.0
  %v475 = vand.u32 %v250, 4294901760
  %v476 = vsub.f32 %v250, %v475
  %v477 = vand.u32 %v476, 4294901760
  %v478 = vsub.f32 %v476, %v477
  %v479 = vand.u32 %v478, 4294901760
  %480 = vmatpush1.msra.mxu0 %v479
  %481 = vmatprep.subr.mxu0 0.0
  %v482 = vand.u32 %v251, 4294901760
  %v483 = vsub.f32 %v251, %v482
  %v484 = vand.u32 %v483, 4294901760
  %v485 = vsub.f32 %v483, %v484
  %v486 = vand.u32 %v485, 4294901760
  %487 = vmatpush1.msra.mxu0 %v486
  %488 = vmatprep.subr.mxu0 0.0
  %v489 = vand.u32 %v252, 4294901760
  %v490 = vsub.f32 %v252, %v489
  %v491 = vand.u32 %v490, 4294901760
  %v492 = vsub.f32 %v490, %v491
  %v493 = vand.u32 %v492, 4294901760
  %494 = vmatpush1.msra.mxu0 %v493
  %495 = vmatprep.subr.mxu0 0.0
  %v496 = vand.u32 %v253, 4294901760
  %v497 = vsub.f32 %v253, %v496
  %v498 = vand.u32 %v497, 4294901760
  %v499 = vsub.f32 %v497, %v498
  %v500 = vand.u32 %v499, 4294901760
  %501 = vmatpush1.msra.mxu0 %v500
  %502 = vmatprep.subr.mxu0 0.0
  %v503 = vand.u32 %v254, 4294901760
  %v504 = vsub.f32 %v254, %v503
  %v505 = vand.u32 %v504, 4294901760
  %v506 = vsub.f32 %v504, %v505
  %v507 = vand.u32 %v506, 4294901760
  %508 = vmatpush1.msra.mxu0 %v507
  %509 = vmatprep.subr.mxu0 0.0
  %v510 = vand.u32 %v255, 4294901760
  %v511 = vsub.f32 %v255, %v510
  %v512 = vand.u32 %v511, 4294901760
  %v513 = vsub.f32 %v511, %v512
  %v514 = vand.u32 %v513, 4294901760
  %515 = vmatpush1.msra.mxu0 %v514
  %516 = vmatprep.subr.mxu0 0.0
  %v517 = vand.u32 %v256, 4294901760
  %v518 = vsub.f32 %v256, %v517
  %v519 = vand.u32 %v518, 4294901760
  %v520 = vsub.f32 %v518, %v519
  %v521 = vand.u32 %v520, 4294901760
  %522 = vmatpush1.msra.mxu0 %v521
  %523 = vmatprep.subr.mxu0 0.0
  %v524 = vand.u32 %v257, 4294901760
  %v525 = vsub.f32 %v257, %v524
  %v526 = vand.u32 %v525, 4294901760
  %v527 = vsub.f32 %v525, %v526
  %v528 = vand.u32 %v527, 4294901760
  %529 = vmatpush1.msra.mxu0 %v528
  %530 = vmatprep.subr.mxu0 0.0
  %v531 = vand.u32 %v258, 4294901760
  %v532 = vsub.f32 %v258, %v531
  %v533 = vand.u32 %v532, 4294901760
  %v534 = vsub.f32 %v532, %v533
  %v535 = vand.u32 %v534, 4294901760
  %536 = vmatpush1.msra.mxu0 %v535
  %537 = vmatprep.subr.mxu0 0.0
  %538 = vmatpush1.msra.mxu0 0.0
  %539 = vmatprep.subr.mxu0 0.0
  %540 = vmatpush1.msra.mxu0 0.0
  %541 = vmatprep.subr.mxu0 0.0
  %542 = vmatpush1.msra.mxu0 0.0
  %543 = vmatprep.subr.mxu0 0.0
  %544 = vmatpush1.msra.mxu0 0.0
  %545 = vmatprep.subr.mxu0 0.0
  %546 = vmatpush1.msra.mxu0 0.0
  %547 = vmatprep.subr.mxu0 0.0
  %548 = vmatpush1.msra.mxu0 0.0
  %549 = vmatprep.subr.mxu0 0.0
  %550 = vmatpush1.msra.mxu0 0.0
  %551 = vmatprep.subr.mxu0 0.0
  %552 = vmatpush1.msra.mxu0 0.0
  %553 = vmatprep.subr.mxu0 0.0
  %554 = vmatpush1.msra.mxu0 0.0
  %555 = vmatprep.subr.mxu0 0.0
  %556 = vmatpush1.msra.mxu0 0.0
  %557 = vmatprep.subr.mxu0 0.0
  %558 = vmatpush1.msra.mxu0 0.0
  %559 = vmatprep.subr.mxu0 0.0
  %560 = vmatpush1.msra.mxu0 0.0
  %561 = vmatprep.subr.mxu0 0.0
  %562 = vmatpush1.msra.mxu0 0.0
  %563 = vmatprep.subr.mxu0 0.0
  %564 = vmatpush1.msra.mxu0 0.0
  %v565 = vand.u32 %v260, 4294901760
  %566 = vmatprep.mubr.f32.mxu0 %v565
  %v567 = vand.u32 %v218, 4294901760
  %568 = vmatmul.mubr.f32.gmra.mrb[0].mxu0 %v567
  %v569 = vpop.f32.mrb[0].mxu0
  %v570 = vadd.f32 %v363, %v569
  %v571 = vpop.f32.mrb[0].mxu0
  %v572 = vand.u32 %v262, 4294901760
  %573 = vmatprep.mubr.f32.mxu0 %v572
  %v574 = vand.u32 %v223, 4294901760
  %575 = vmatmul.mubr.f32.gmra.mrb[0].mxu0 %v574
  %v576 = vpop.f32.mrb[0].mxu0
  %v577 = vadd.f32 %v378, %v576
  %v578 = vpop.f32.mrb[0].mxu0
  %v579 = vand.u32 %v264, 4294901760
  %580 = vmatprep.mubr.f32.mxu0 %v579
  %v581 = vand.u32 %v228, 4294901760
  %582 = vmatmul.mubr.f32.gmra.mrb[0].mxu0 %v581
  %v583 = vpop.f32.mrb[0].mxu0
  %v584 = vadd.f32 %v393, %v583
  %v585 = vpop.f32.mrb[0].mxu0
  %v586 = vand.u32 %v266, 4294901760
  %587 = vmatprep.mubr.f32.mxu0 %v586
  %v588 = vand.u32 %v233, 4294901760
  %589 = vmatmul.mubr.f32.gmra.mrb[0].mxu0 %v588
  %v590 = vpop.f32.mrb[0].mxu0
  %v591 = vadd.f32 %v408, %v590
  %v592 = vpop.f32.mrb[0].mxu0
  %593 = vdwg.mxu0
  %594 = vmatprep.subr.mxu0 0.0
  %v595 = vand.u32 %v241, 4294901760
  %v596 = vsub.f32 %v241, %v595
  %597 = vmatpush1.msra.mxu0 %v596
  %598 = vmatprep.subr.mxu0 0.0
  %v599 = vand.u32 %v242, 4294901760
  %v600 = vsub.f32 %v242, %v599
  %601 = vmatpush1.msra.mxu0 %v600
  %602 = vmatprep.subr.mxu0 0.0
  %v603 = vand.u32 %v243, 4294901760
  %v604 = vsub.f32 %v243, %v603
  %605 = vmatpush1.msra.mxu0 %v604
  %606 = vmatprep.subr.mxu0 0.0
  %v607 = vand.u32 %v244, 4294901760
  %v608 = vsub.f32 %v244, %v607
  %609 = vmatpush1.msra.mxu0 %v608
  %610 = vmatprep.subr.mxu0 0.0
  %v611 = vand.u32 %v245, 4294901760
  %v612 = vsub.f32 %v245, %v611
  %613 = vmatpush1.msra.mxu0 %v612
  %614 = vmatprep.subr.mxu0 0.0
  %v615 = vand.u32 %v246, 4294901760
  %v616 = vsub.f32 %v246, %v615
  %617 = vmatpush1.msra.mxu0 %v616
  %618 = vmatprep.subr.mxu0 0.0
  %v619 = vand.u32 %v247, 4294901760
  %v620 = vsub.f32 %v247, %v619
  %621 = vmatpush1.msra.mxu0 %v620
  %622 = vmatprep.subr.mxu0 0.0
  %v623 = vand.u32 %v248, 4294901760
  %v624 = vsub.f32 %v248, %v623
  %625 = vmatpush1.msra.mxu0 %v624
  %626 = vmatprep.subr.mxu0 0.0
  %v627 = vand.u32 %v249, 4294901760
  %v628 = vsub.f32 %v249, %v627
  %629 = vmatpush1.msra.mxu0 %v628
  %630 = vmatprep.subr.mxu0 0.0
  %v631 = vand.u32 %v250, 4294901760
  %v632 = vsub.f32 %v250, %v631
  %633 = vmatpush1.msra.mxu0 %v632
  %634 = vmatprep.subr.mxu0 0.0
  %v635 = vand.u32 %v251, 4294901760
  %v636 = vsub.f32 %v251, %v635
  %637 = vmatpush1.msra.mxu0 %v636
  %638 = vmatprep.subr.mxu0 0.0
  %v639 = vand.u32 %v252, 4294901760
  %v640 = vsub.f32 %v252, %v639
  %641 = vmatpush1.msra.mxu0 %v640
  %642 = vmatprep.subr.mxu0 0.0
  %v643 = vand.u32 %v253, 4294901760
  %v644 = vsub.f32 %v253, %v643
  %645 = vmatpush1.msra.mxu0 %v644
  %646 = vmatprep.subr.mxu0 0.0
  %v647 = vand.u32 %v254, 4294901760
  %v648 = vsub.f32 %v254, %v647
  %649 = vmatpush1.msra.mxu0 %v648
  %650 = vmatprep.subr.mxu0 0.0
  %v651 = vand.u32 %v255, 4294901760
  %v652 = vsub.f32 %v255, %v651
  %653 = vmatpush1.msra.mxu0 %v652
  %654 = vmatprep.subr.mxu0 0.0
  %v655 = vand.u32 %v256, 4294901760
  %v656 = vsub.f32 %v256, %v655
  %657 = vmatpush1.msra.mxu0 %v656
  %658 = vmatprep.subr.mxu0 0.0
  %v659 = vand.u32 %v257, 4294901760
  %v660 = vsub.f32 %v257, %v659
  %661 = vmatpush1.msra.mxu0 %v660
  %662 = vmatprep.subr.mxu0 0.0
  %v663 = vand.u32 %v258, 4294901760
  %v664 = vsub.f32 %v258, %v663
  %665 = vmatpush1.msra.mxu0 %v664
  %666 = vmatprep.subr.mxu0 0.0
  %667 = vmatpush1.msra.mxu0 0.0
  %668 = vmatprep.subr.mxu0 0.0
  %669 = vmatpush1.msra.mxu0 0.0
  %670 = vmatprep.subr.mxu0 0.0
  %671 = vmatpush1.msra.mxu0 0.0
  %672 = vmatprep.subr.mxu0 0.0
  %673 = vmatpush1.msra.mxu0 0.0
  %674 = vmatprep.subr.mxu0 0.0
  %675 = vmatpush1.msra.mxu0 0.0
  %676 = vmatprep.subr.mxu0 0.0
  %677 = vmatpush1.msra.mxu0 0.0
  %678 = vmatprep.subr.mxu0 0.0
  %679 = vmatpush1.msra.mxu0 0.0
  %680 = vmatprep.subr.mxu0 0.0
  %681 = vmatpush1.msra.mxu0 0.0
  %682 = vmatprep.subr.mxu0 0.0
  %683 = vmatpush1.msra.mxu0 0.0
  %684 = vmatprep.subr.mxu0 0.0
  %685 = vmatpush1.msra.mxu0 0.0
  %686 = vmatprep.subr.mxu0 0.0
  %687 = vmatpush1.msra.mxu0 0.0
  %688 = vmatprep.subr.mxu0 0.0
  %689 = vmatpush1.msra.mxu0 0.0
  %690 = vmatprep.subr.mxu0 0.0
  %691 = vmatpush1.msra.mxu0 0.0
  %692 = vmatprep.subr.mxu0 0.0
  %693 = vmatpush1.msra.mxu0 0.0
  %v694 = vand.u32 %v260, 4294901760
  %v695 = vsub.f32 %v260, %v694
  %696 = vmatprep.mubr.f32.mxu0 %v695
  %v697 = vand.u32 %v218, 4294901760
  %v698 = vsub.f32 %v218, %v697
  %699 = vmatmul.mubr.f32.gmra.mrb[0].mxu0 %v698
  %v700 = vpop.f32.mrb[0].mxu0
  %v701 = vadd.f32 %v570, %v700
  %v702 = vpop.f32.mrb[0].mxu0
  %v703 = vand.u32 %v262, 4294901760
  %v704 = vsub.f32 %v262, %v703
  %705 = vmatprep.mubr.f32.mxu0 %v704
  %v706 = vand.u32 %v223, 4294901760
  %v707 = vsub.f32 %v223, %v706
  %708 = vmatmul.mubr.f32.gmra.mrb[0].mxu0 %v707
  %v709 = vpop.f32.mrb[0].mxu0
  %v710 = vadd.f32 %v577, %v709
  %v711 = vpop.f32.mrb[0].mxu0
  %v712 = vand.u32 %v264, 4294901760
  %v713 = vsub.f32 %v264, %v712
  %714 = vmatprep.mubr.f32.mxu0 %v713
  %v715 = vand.u32 %v228, 4294901760
  %v716 = vsub.f32 %v228, %v715
  %717 = vmatmul.mubr.f32.gmra.mrb[0].mxu0 %v716
  %v718 = vpop.f32.mrb[0].mxu0
  %v719 = vadd.f32 %v584, %v718
  %v720 = vpop.f32.mrb[0].mxu0
  %v721 = vand.u32 %v266, 4294901760
  %v722 = vsub.f32 %v266, %v721
  %723 = vmatprep.mubr.f32.mxu0 %v722
  %v724 = vand.u32 %v233, 4294901760
  %v725 = vsub.f32 %v233, %v724
  %726 = vmatmul.mubr.f32.gmra.mrb[0].mxu0 %v725
  %v727 = vpop.f32.mrb[0].mxu0
  %v728 = vadd.f32 %v591, %v727
  %v729 = vpop.f32.mrb[0].mxu0
  %730 = vdwg.mxu0
  %731 = vmatprep.subr.mxu0 0.0
  %v732 = vand.u32 %v241, 4294901760
  %733 = vmatpush1.msra.mxu0 %v732
  %734 = vmatprep.subr.mxu0 0.0
  %v735 = vand.u32 %v242, 4294901760
  %736 = vmatpush1.msra.mxu0 %v735
  %737 = vmatprep.subr.mxu0 0.0
  %v738 = vand.u32 %v243, 4294901760
  %739 = vmatpush1.msra.mxu0 %v738
  %740 = vmatprep.subr.mxu0 0.0
  %v741 = vand.u32 %v244, 4294901760
  %742 = vmatpush1.msra.mxu0 %v741
  %743 = vmatprep.subr.mxu0 0.0
  %v744 = vand.u32 %v245, 4294901760
  %745 = vmatpush1.msra.mxu0 %v744
  %746 = vmatprep.subr.mxu0 0.0
  %v747 = vand.u32 %v246, 4294901760
  %748 = vmatpush1.msra.mxu0 %v747
  %749 = vmatprep.subr.mxu0 0.0
  %v750 = vand.u32 %v247, 4294901760
  %751 = vmatpush1.msra.mxu0 %v750
  %752 = vmatprep.subr.mxu0 0.0
  %v753 = vand.u32 %v248, 4294901760
  %754 = vmatpush1.msra.mxu0 %v753
  %755 = vmatprep.subr.mxu0 0.0
  %v756 = vand.u32 %v249, 4294901760
  %757 = vmatpush1.msra.mxu0 %v756
  %758 = vmatprep.subr.mxu0 0.0
  %v759 = vand.u32 %v250, 4294901760
  %760 = vmatpush1.msra.mxu0 %v759
  %761 = vmatprep.subr.mxu0 0.0
  %v762 = vand.u32 %v251, 4294901760
  %763 = vmatpush1.msra.mxu0 %v762
  %764 = vmatprep.subr.mxu0 0.0
  %v765 = vand.u32 %v252, 4294901760
  %766 = vmatpush1.msra.mxu0 %v765
  %767 = vmatprep.subr.mxu0 0.0
  %v768 = vand.u32 %v253, 4294901760
  %769 = vmatpush1.msra.mxu0 %v768
  %770 = vmatprep.subr.mxu0 0.0
  %v771 = vand.u32 %v254, 4294901760
  %772 = vmatpush1.msra.mxu0 %v771
  %773 = vmatprep.subr.mxu0 0.0
  %v774 = vand.u32 %v255, 4294901760
  %775 = vmatpush1.msra.mxu0 %v774
  %776 = vmatprep.subr.mxu0 0.0
  %v777 = vand.u32 %v256, 4294901760
  %778 = vmatpush1.msra.mxu0 %v777
  %779 = vmatprep.subr.mxu0 0.0
  %v780 = vand.u32 %v257, 4294901760
  %781 = vmatpush1.msra.mxu0 %v780
  %782 = vmatprep.subr.mxu0 0.0
  %v783 = vand.u32 %v258, 4294901760
  %784 = vmatpush1.msra.mxu0 %v783
  %785 = vmatprep.subr.mxu0 0.0
  %786 = vmatpush1.msra.mxu0 0.0
  %787 = vmatprep.subr.mxu0 0.0
  %788 = vmatpush1.msra.mxu0 0.0
  %789 = vmatprep.subr.mxu0 0.0
  %790 = vmatpush1.msra.mxu0 0.0
  %791 = vmatprep.subr.mxu0 0.0
  %792 = vmatpush1.msra.mxu0 0.0
  %793 = vmatprep.subr.mxu0 0.0
  %794 = vmatpush1.msra.mxu0 0.0
  %795 = vmatprep.subr.mxu0 0.0
  %796 = vmatpush1.msra.mxu0 0.0
  %797 = vmatprep.subr.mxu0 0.0
  %798 = vmatpush1.msra.mxu0 0.0
  %799 = vmatprep.subr.mxu0 0.0
  %800 = vmatpush1.msra.mxu0 0.0
  %801 = vmatprep.subr.mxu0 0.0
  %802 = vmatpush1.msra.mxu0 0.0
  %803 = vmatprep.subr.mxu0 0.0
  %804 = vmatpush1.msra.mxu0 0.0
  %805 = vmatprep.subr.mxu0 0.0
  %806 = vmatpush1.msra.mxu0 0.0
  %807 = vmatprep.subr.mxu0 0.0
  %808 = vmatpush1.msra.mxu0 0.0
  %809 = vmatprep.subr.mxu0 0.0
  %810 = vmatpush1.msra.mxu0 0.0
  %811 = vmatprep.subr.mxu0 0.0
  %812 = vmatpush1.msra.mxu0 0.0
  %v813 = vand.u32 %v260, 4294901760
  %v814 = vsub.f32 %v260, %v813
  %v815 = vand.u32 %v814, 4294901760
  %816 = vmatprep.mubr.f32.mxu0 %v815
  %v817 = vand.u32 %v218, 4294901760
  %v818 = vsub.f32 %v218, %v817
  %v819 = vand.u32 %v818, 4294901760
  %820 = vmatmul.mubr.f32.gmra.mrb[0].mxu0 %v819
  %v821 = vpop.f32.mrb[0].mxu0
  %v822 = vadd.f32 %v701, %v821
  %v823 = vpop.f32.mrb[0].mxu0
  %v824 = vand.u32 %v262, 4294901760
  %v825 = vsub.f32 %v262, %v824
  %v826 = vand.u32 %v825, 4294901760
  %827 = vmatprep.mubr.f32.mxu0 %v826
  %v828 = vand.u32 %v223, 4294901760
  %v829 = vsub.f32 %v223, %v828
  %v830 = vand.u32 %v829, 4294901760
  %831 = vmatmul.mubr.f32.gmra.mrb[0].mxu0 %v830
  %v832 = vpop.f32.mrb[0].mxu0
  %v833 = vadd.f32 %v710, %v832
  %v834 = vpop.f32.mrb[0].mxu0
  %v835 = vand.u32 %v264, 4294901760
  %v836 = vsub.f32 %v264, %v835
  %v837 = vand.u32 %v836, 4294901760
  %838 = vmatprep.mubr.f32.mxu0 %v837
  %v839 = vand.u32 %v228, 4294901760
  %v840 = vsub.f32 %v228, %v839
  %v841 = vand.u32 %v840, 4294901760
  %842 = vmatmul.mubr.f32.gmra.mrb[0].mxu0 %v841
  %v843 = vpop.f32.mrb[0].mxu0
  %v844 = vadd.f32 %v719, %v843
  %v845 = vpop.f32.mrb[0].mxu0
  %v846 = vand.u32 %v266, 4294901760
  %v847 = vsub.f32 %v266, %v846
  %v848 = vand.u32 %v847, 4294901760
  %849 = vmatprep.mubr.f32.mxu0 %v848
  %v850 = vand.u32 %v233, 4294901760
  %v851 = vsub.f32 %v233, %v850
  %v852 = vand.u32 %v851, 4294901760
  %853 = vmatmul.mubr.f32.gmra.mrb[0].mxu0 %v852
  %v854 = vpop.f32.mrb[0].mxu0
  %v855 = vadd.f32 %v728, %v854
  %v856 = vpop.f32.mrb[0].mxu0
  %857 = vdwg.mxu0
  %858 = vmatprep.subr.mxu0 0.0
  %v859 = vand.u32 %v241, 4294901760
  %v860 = vsub.f32 %v241, %v859
  %v861 = vand.u32 %v860, 4294901760
  %862 = vmatpush1.msra.mxu0 %v861
  %863 = vmatprep.subr.mxu0 0.0
  %v864 = vand.u32 %v242, 4294901760
  %v865 = vsub.f32 %v242, %v864
  %v866 = vand.u32 %v865, 4294901760
  %867 = vmatpush1.msra.mxu0 %v866
  %868 = vmatprep.subr.mxu0 0.0
  %v869 = vand.u32 %v243, 4294901760
  %v870 = vsub.f32 %v243, %v869
  %v871 = vand.u32 %v870, 4294901760
  %872 = vmatpush1.msra.mxu0 %v871
  %873 = vmatprep.subr.mxu0 0.0
  %v874 = vand.u32 %v244, 4294901760
  %v875 = vsub.f32 %v244, %v874
  %v876 = vand.u32 %v875, 4294901760
  %877 = vmatpush1.msra.mxu0 %v876
  %878 = vmatprep.subr.mxu0 0.0
  %v879 = vand.u32 %v245, 4294901760
  %v880 = vsub.f32 %v245, %v879
  %v881 = vand.u32 %v880, 4294901760
  %882 = vmatpush1.msra.mxu0 %v881
  %883 = vmatprep.subr.mxu0 0.0
  %v884 = vand.u32 %v246, 4294901760
  %v885 = vsub.f32 %v246, %v884
  %v886 = vand.u32 %v885, 4294901760
  %887 = vmatpush1.msra.mxu0 %v886
  %888 = vmatprep.subr.mxu0 0.0
  %v889 = vand.u32 %v247, 4294901760
  %v890 = vsub.f32 %v247, %v889
  %v891 = vand.u32 %v890, 4294901760
  %892 = vmatpush1.msra.mxu0 %v891
  %893 = vmatprep.subr.mxu0 0.0
  %v894 = vand.u32 %v248, 4294901760
  %v895 = vsub.f32 %v248, %v894
  %v896 = vand.u32 %v895, 4294901760
  %897 = vmatpush1.msra.mxu0 %v896
  %898 = vmatprep.subr.mxu0 0.0
  %v899 = vand.u32 %v249, 4294901760
  %v900 = vsub.f32 %v249, %v899
  %v901 = vand.u32 %v900, 4294901760
  %902 = vmatpush1.msra.mxu0 %v901
  %903 = vmatprep.subr.mxu0 0.0
  %v904 = vand.u32 %v250, 4294901760
  %v905 = vsub.f32 %v250, %v904
  %v906 = vand.u32 %v905, 4294901760
  %907 = vmatpush1.msra.mxu0 %v906
  %908 = vmatprep.subr.mxu0 0.0
  %v909 = vand.u32 %v251, 4294901760
  %v910 = vsub.f32 %v251, %v909
  %v911 = vand.u32 %v910, 4294901760
  %912 = vmatpush1.msra.mxu0 %v911
  %913 = vmatprep.subr.mxu0 0.0
  %v914 = vand.u32 %v252, 4294901760
  %v915 = vsub.f32 %v252, %v914
  %v916 = vand.u32 %v915, 4294901760
  %917 = vmatpush1.msra.mxu0 %v916
  %918 = vmatprep.subr.mxu0 0.0
  %v919 = vand.u32 %v253, 4294901760
  %v920 = vsub.f32 %v253, %v919
  %v921 = vand.u32 %v920, 4294901760
  %922 = vmatpush1.msra.mxu0 %v921
  %923 = vmatprep.subr.mxu0 0.0
  %v924 = vand.u32 %v254, 4294901760
  %v925 = vsub.f32 %v254, %v924
  %v926 = vand.u32 %v925, 4294901760
  %927 = vmatpush1.msra.mxu0 %v926
  %928 = vmatprep.subr.mxu0 0.0
  %v929 = vand.u32 %v255, 4294901760
  %v930 = vsub.f32 %v255, %v929
  %v931 = vand.u32 %v930, 4294901760
  %932 = vmatpush1.msra.mxu0 %v931
  %933 = vmatprep.subr.mxu0 0.0
  %v934 = vand.u32 %v256, 4294901760
  %v935 = vsub.f32 %v256, %v934
  %v936 = vand.u32 %v935, 4294901760
  %937 = vmatpush1.msra.mxu0 %v936
  %938 = vmatprep.subr.mxu0 0.0
  %v939 = vand.u32 %v257, 4294901760
  %v940 = vsub.f32 %v257, %v939
  %v941 = vand.u32 %v940, 4294901760
  %942 = vmatpush1.msra.mxu0 %v941
  %943 = vmatprep.subr.mxu0 0.0
  %v944 = vand.u32 %v258, 4294901760
  %v945 = vsub.f32 %v258, %v944
  %v946 = vand.u32 %v945, 4294901760
  %947 = vmatpush1.msra.mxu0 %v946
  %948 = vmatprep.subr.mxu0 0.0
  %949 = vmatpush1.msra.mxu0 0.0
  %950 = vmatprep.subr.mxu0 0.0
  %951 = vmatpush1.msra.mxu0 0.0
  %952 = vmatprep.subr.mxu0 0.0
  %953 = vmatpush1.msra.mxu0 0.0
  %954 = vmatprep.subr.mxu0 0.0
  %955 = vmatpush1.msra.mxu0 0.0
  %956 = vmatprep.subr.mxu0 0.0
  %957 = vmatpush1.msra.mxu0 0.0
  %958 = vmatprep.subr.mxu0 0.0
  %959 = vmatpush1.msra.mxu0 0.0
  %960 = vmatprep.subr.mxu0 0.0
  %961 = vmatpush1.msra.mxu0 0.0
  %962 = vmatprep.subr.mxu0 0.0
  %963 = vmatpush1.msra.mxu0 0.0
  %964 = vmatprep.subr.mxu0 0.0
  %965 = vmatpush1.msra.mxu0 0.0
  %966 = vmatprep.subr.mxu0 0.0
  %967 = vmatpush1.msra.mxu0 0.0
  %968 = vmatprep.subr.mxu0 0.0
  %969 = vmatpush1.msra.mxu0 0.0
  %970 = vmatprep.subr.mxu0 0.0
  %971 = vmatpush1.msra.mxu0 0.0
  %972 = vmatprep.subr.mxu0 0.0
  %973 = vmatpush1.msra.mxu0 0.0
  %974 = vmatprep.subr.mxu0 0.0
  %975 = vmatpush1.msra.mxu0 0.0
  %v976 = vand.u32 %v260, 4294901760
  %977 = vmatprep.mubr.f32.mxu0 %v976
  %v978 = vand.u32 %v218, 4294901760
  %979 = vmatmul.mubr.f32.gmra.mrb[0].mxu0 %v978
  %v980 = vpop.f32.mrb[0].mxu0
  %v981 = vadd.f32 %v822, %v980
  %v982 = vpop.f32.mrb[0].mxu0
  %v983 = vand.u32 %v262, 4294901760
  %984 = vmatprep.mubr.f32.mxu0 %v983
  %v985 = vand.u32 %v223, 4294901760
  %986 = vmatmul.mubr.f32.gmra.mrb[0].mxu0 %v985
  %v987 = vpop.f32.mrb[0].mxu0
  %v988 = vadd.f32 %v833, %v987
  %v989 = vpop.f32.mrb[0].mxu0
  %v990 = vand.u32 %v264, 4294901760
  %991 = vmatprep.mubr.f32.mxu0 %v990
  %v992 = vand.u32 %v228, 4294901760
  %993 = vmatmul.mubr.f32.gmra.mrb[0].mxu0 %v992
  %v994 = vpop.f32.mrb[0].mxu0
  %v995 = vadd.f32 %v844, %v994
  %v996 = vpop.f32.mrb[0].mxu0
  %v997 = vand.u32 %v266, 4294901760
  %998 = vmatprep.mubr.f32.mxu0 %v997
  %v999 = vand.u32 %v233, 4294901760
  %1000 = vmatmul.mubr.f32.gmra.mrb[0].mxu0 %v999
  %v1001 = vpop.f32.mrb[0].mxu0
  %v1002 = vadd.f32 %v855, %v1001
  %v1003 = vpop.f32.mrb[0].mxu0
  %1004 = vdwg.mxu0
  %1005 = vmatprep.subr.mxu0 0.0
  %v1006 = vand.u32 %v241, 4294901760
  %1007 = vmatpush1.msra.mxu0 %v1006
  %1008 = vmatprep.subr.mxu0 0.0
  %v1009 = vand.u32 %v242, 4294901760
  %1010 = vmatpush1.msra.mxu0 %v1009
  %1011 = vmatprep.subr.mxu0 0.0
  %v1012 = vand.u32 %v243, 4294901760
  %1013 = vmatpush1.msra.mxu0 %v1012
  %1014 = vmatprep.subr.mxu0 0.0
  %v1015 = vand.u32 %v244, 4294901760
  %1016 = vmatpush1.msra.mxu0 %v1015
  %1017 = vmatprep.subr.mxu0 0.0
  %v1018 = vand.u32 %v245, 4294901760
  %1019 = vmatpush1.msra.mxu0 %v1018
  %1020 = vmatprep.subr.mxu0 0.0
  %v1021 = vand.u32 %v246, 4294901760
  %1022 = vmatpush1.msra.mxu0 %v1021
  %1023 = vmatprep.subr.mxu0 0.0
  %v1024 = vand.u32 %v247, 4294901760
  %1025 = vmatpush1.msra.mxu0 %v1024
  %1026 = vmatprep.subr.mxu0 0.0
  %v1027 = vand.u32 %v248, 4294901760
  %1028 = vmatpush1.msra.mxu0 %v1027
  %1029 = vmatprep.subr.mxu0 0.0
  %v1030 = vand.u32 %v249, 4294901760
  %1031 = vmatpush1.msra.mxu0 %v1030
  %1032 = vmatprep.subr.mxu0 0.0
  %v1033 = vand.u32 %v250, 4294901760
  %1034 = vmatpush1.msra.mxu0 %v1033
  %1035 = vmatprep.subr.mxu0 0.0
  %v1036 = vand.u32 %v251, 4294901760
  %1037 = vmatpush1.msra.mxu0 %v1036
  %1038 = vmatprep.subr.mxu0 0.0
  %v1039 = vand.u32 %v252, 4294901760
  %1040 = vmatpush1.msra.mxu0 %v1039
  %1041 = vmatprep.subr.mxu0 0.0
  %v1042 = vand.u32 %v253, 4294901760
  %1043 = vmatpush1.msra.mxu0 %v1042
  %1044 = vmatprep.subr.mxu0 0.0
  %v1045 = vand.u32 %v254, 4294901760
  %1046 = vmatpush1.msra.mxu0 %v1045
  %1047 = vmatprep.subr.mxu0 0.0
  %v1048 = vand.u32 %v255, 4294901760
  %1049 = vmatpush1.msra.mxu0 %v1048
  %1050 = vmatprep.subr.mxu0 0.0
  %v1051 = vand.u32 %v256, 4294901760
  %1052 = vmatpush1.msra.mxu0 %v1051
  %1053 = vmatprep.subr.mxu0 0.0
  %v1054 = vand.u32 %v257, 4294901760
  %1055 = vmatpush1.msra.mxu0 %v1054
  %1056 = vmatprep.subr.mxu0 0.0
  %v1057 = vand.u32 %v258, 4294901760
  %1058 = vmatpush1.msra.mxu0 %v1057
  %1059 = vmatprep.subr.mxu0 0.0
  %1060 = vmatpush1.msra.mxu0 0.0
  %1061 = vmatprep.subr.mxu0 0.0
  %1062 = vmatpush1.msra.mxu0 0.0
  %1063 = vmatprep.subr.mxu0 0.0
  %1064 = vmatpush1.msra.mxu0 0.0
  %1065 = vmatprep.subr.mxu0 0.0
  %1066 = vmatpush1.msra.mxu0 0.0
  %1067 = vmatprep.subr.mxu0 0.0
  %1068 = vmatpush1.msra.mxu0 0.0
  %1069 = vmatprep.subr.mxu0 0.0
  %1070 = vmatpush1.msra.mxu0 0.0
  %1071 = vmatprep.subr.mxu0 0.0
  %1072 = vmatpush1.msra.mxu0 0.0
  %1073 = vmatprep.subr.mxu0 0.0
  %1074 = vmatpush1.msra.mxu0 0.0
  %1075 = vmatprep.subr.mxu0 0.0
  %1076 = vmatpush1.msra.mxu0 0.0
  %1077 = vmatprep.subr.mxu0 0.0
  %1078 = vmatpush1.msra.mxu0 0.0
  %1079 = vmatprep.subr.mxu0 0.0
  %1080 = vmatpush1.msra.mxu0 0.0
  %1081 = vmatprep.subr.mxu0 0.0
  %1082 = vmatpush1.msra.mxu0 0.0
  %1083 = vmatprep.subr.mxu0 0.0
  %1084 = vmatpush1.msra.mxu0 0.0
  %1085 = vmatprep.subr.mxu0 0.0
  %1086 = vmatpush1.msra.mxu0 0.0
  %v1087 = vand.u32 %v260, 4294901760
  %1088 = vmatprep.mubr.f32.mxu0 %v1087
  %v1089 = vand.u32 %v218, 4294901760
  %1090 = vmatmul.mubr.f32.gmra.mrb[0].mxu0 %v1089
  %v1091 = vpop.f32.mrb[0].mxu0
  %v1092 = vadd.f32 %v981, %v1091
  %v1093 = vpop.f32.mrb[0].mxu0
  %v1094 = vand.u32 %v262, 4294901760
  %1095 = vmatprep.mubr.f32.mxu0 %v1094
  %v1096 = vand.u32 %v223, 4294901760
  %1097 = vmatmul.mubr.f32.gmra.mrb[0].mxu0 %v1096
  %v1098 = vpop.f32.mrb[0].mxu0
  %v1099 = vadd.f32 %v988, %v1098
  %v1100 = vpop.f32.mrb[0].mxu0
  %v1101 = vand.u32 %v264, 4294901760
  %1102 = vmatprep.mubr.f32.mxu0 %v1101
  %v1103 = vand.u32 %v228, 4294901760
  %1104 = vmatmul.mubr.f32.gmra.mrb[0].mxu0 %v1103
  %v1105 = vpop.f32.mrb[0].mxu0
  %v1106 = vadd.f32 %v995, %v1105
  %v1107 = vpop.f32.mrb[0].mxu0
  %v1108 = vand.u32 %v266, 4294901760
  %1109 = vmatprep.mubr.f32.mxu0 %v1108
  %v1110 = vand.u32 %v233, 4294901760
  %1111 = vmatmul.mubr.f32.gmra.mrb[0].mxu0 %v1110
  %v1112 = vpop.f32.mrb[0].mxu0
  %v1113 = vadd.f32 %v1002, %v1112
  %v1114 = vpop.f32.mrb[0].mxu0
  %1115 = vdwg.mxu0
  %v1116 = vsel %vm259, %v174, 0
  %v1118 = vsel %vm259, %v176, 0
  %v1120 = vsel %vm259, %v180, 0
  %v1122 = vsel %vm259, %v182, 0
  %1124 = vmatprep.subr.mxu0 0.0
  %v1125 = vand.u32 %v185, 4294901760
  %1126 = vmatpush1.msra.mxu0 %v1125
  %1127 = vmatprep.subr.mxu0 0.0
  %v1128 = vand.u32 %v186, 4294901760
  %1129 = vmatpush1.msra.mxu0 %v1128
  %1130 = vmatprep.subr.mxu0 0.0
  %v1131 = vand.u32 %v187, 4294901760
  %1132 = vmatpush1.msra.mxu0 %v1131
  %1133 = vmatprep.subr.mxu0 0.0
  %v1134 = vand.u32 %v188, 4294901760
  %1135 = vmatpush1.msra.mxu0 %v1134
  %1136 = vmatprep.subr.mxu0 0.0
  %v1137 = vand.u32 %v189, 4294901760
  %1138 = vmatpush1.msra.mxu0 %v1137
  %1139 = vmatprep.subr.mxu0 0.0
  %v1140 = vand.u32 %v190, 4294901760
  %1141 = vmatpush1.msra.mxu0 %v1140
  %1142 = vmatprep.subr.mxu0 0.0
  %v1143 = vand.u32 %v191, 4294901760
  %1144 = vmatpush1.msra.mxu0 %v1143
  %1145 = vmatprep.subr.mxu0 0.0
  %v1146 = vand.u32 %v192, 4294901760
  %1147 = vmatpush1.msra.mxu0 %v1146
  %1148 = vmatprep.subr.mxu0 0.0
  %v1149 = vand.u32 %v193, 4294901760
  %1150 = vmatpush1.msra.mxu0 %v1149
  %1151 = vmatprep.subr.mxu0 0.0
  %v1152 = vand.u32 %v194, 4294901760
  %1153 = vmatpush1.msra.mxu0 %v1152
  %1154 = vmatprep.subr.mxu0 0.0
  %v1155 = vand.u32 %v195, 4294901760
  %1156 = vmatpush1.msra.mxu0 %v1155
  %1157 = vmatprep.subr.mxu0 0.0
  %v1158 = vand.u32 %v196, 4294901760
  %1159 = vmatpush1.msra.mxu0 %v1158
  %1160 = vmatprep.subr.mxu0 0.0
  %v1161 = vand.u32 %v197, 4294901760
  %1162 = vmatpush1.msra.mxu0 %v1161
  %1163 = vmatprep.subr.mxu0 0.0
  %v1164 = vand.u32 %v198, 4294901760
  %1165 = vmatpush1.msra.mxu0 %v1164
  %1166 = vmatprep.subr.mxu0 0.0
  %v1167 = vand.u32 %v199, 4294901760
  %1168 = vmatpush1.msra.mxu0 %v1167
  %1169 = vmatprep.subr.mxu0 0.0
  %v1170 = vand.u32 %v200, 4294901760
  %1171 = vmatpush1.msra.mxu0 %v1170
  %1172 = vmatprep.subr.mxu0 0.0
  %v1173 = vand.u32 %v201, 4294901760
  %1174 = vmatpush1.msra.mxu0 %v1173
  %1175 = vmatprep.subr.mxu0 0.0
  %v1176 = vand.u32 %v202, 4294901760
  %1177 = vmatpush1.msra.mxu0 %v1176
  %1178 = vmatprep.subr.mxu0 0.0
  %1179 = vmatpush1.msra.mxu0 0.0
  %1180 = vmatprep.subr.mxu0 0.0
  %1181 = vmatpush1.msra.mxu0 0.0
  %1182 = vmatprep.subr.mxu0 0.0
  %1183 = vmatpush1.msra.mxu0 0.0
  %1184 = vmatprep.subr.mxu0 0.0
  %1185 = vmatpush1.msra.mxu0 0.0
  %1186 = vmatprep.subr.mxu0 0.0
  %1187 = vmatpush1.msra.mxu0 0.0
  %1188 = vmatprep.subr.mxu0 0.0
  %1189 = vmatpush1.msra.mxu0 0.0
  %1190 = vmatprep.subr.mxu0 0.0
  %1191 = vmatpush1.msra.mxu0 0.0
  %1192 = vmatprep.subr.mxu0 0.0
  %1193 = vmatpush1.msra.mxu0 0.0
  %1194 = vmatprep.subr.mxu0 0.0
  %1195 = vmatpush1.msra.mxu0 0.0
  %1196 = vmatprep.subr.mxu0 0.0
  %1197 = vmatpush1.msra.mxu0 0.0
  %1198 = vmatprep.subr.mxu0 0.0
  %1199 = vmatpush1.msra.mxu0 0.0
  %1200 = vmatprep.subr.mxu0 0.0
  %1201 = vmatpush1.msra.mxu0 0.0
  %1202 = vmatprep.subr.mxu0 0.0
  %1203 = vmatpush1.msra.mxu0 0.0
  %1204 = vmatprep.subr.mxu0 0.0
  %1205 = vmatpush1.msra.mxu0 0.0
  %v1206 = vand.u32 %v1116, 4294901760
  %v1207 = vsub.f32 %v1116, %v1206
  %v1208 = vand.u32 %v1207, 4294901760
  %v1209 = vsub.f32 %v1207, %v1208
  %v1210 = vand.u32 %v1209, 4294901760
  %1211 = vmatprep.mubr.f32.mxu0 %v1210
  %v1212 = vand.u32 %v173, 4294901760
  %v1213 = vsub.f32 %v173, %v1212
  %v1214 = vand.u32 %v1213, 4294901760
  %v1215 = vsub.f32 %v1213, %v1214
  %v1216 = vand.u32 %v1215, 4294901760
  %1217 = vmatmul.mubr.f32.gmra.mrb[0].mxu0 %v1216
  %v1218 = vpop.f32.mrb[0].mxu0
  %v1219 = vadd.f32 %v1092, %v1218
  %v1220 = vpop.f32.mrb[0].mxu0
  %v1221 = vand.u32 %v1118, 4294901760
  %v1222 = vsub.f32 %v1118, %v1221
  %v1223 = vand.u32 %v1222, 4294901760
  %v1224 = vsub.f32 %v1222, %v1223
  %v1225 = vand.u32 %v1224, 4294901760
  %1226 = vmatprep.mubr.f32.mxu0 %v1225
  %v1227 = vand.u32 %v175, 4294901760
  %v1228 = vsub.f32 %v175, %v1227
  %v1229 = vand.u32 %v1228, 4294901760
  %v1230 = vsub.f32 %v1228, %v1229
  %v1231 = vand.u32 %v1230, 4294901760
  %1232 = vmatmul.mubr.f32.gmra.mrb[0].mxu0 %v1231
  %v1233 = vpop.f32.mrb[0].mxu0
  %v1234 = vadd.f32 %v1099, %v1233
  %v1235 = vpop.f32.mrb[0].mxu0
  %v1236 = vand.u32 %v1120, 4294901760
  %v1237 = vsub.f32 %v1120, %v1236
  %v1238 = vand.u32 %v1237, 4294901760
  %v1239 = vsub.f32 %v1237, %v1238
  %v1240 = vand.u32 %v1239, 4294901760
  %1241 = vmatprep.mubr.f32.mxu0 %v1240
  %v1242 = vand.u32 %v179, 4294901760
  %v1243 = vsub.f32 %v179, %v1242
  %v1244 = vand.u32 %v1243, 4294901760
  %v1245 = vsub.f32 %v1243, %v1244
  %v1246 = vand.u32 %v1245, 4294901760
  %1247 = vmatmul.mubr.f32.gmra.mrb[0].mxu0 %v1246
  %v1248 = vpop.f32.mrb[0].mxu0
  %v1249 = vadd.f32 %v1106, %v1248
  %v1250 = vpop.f32.mrb[0].mxu0
  %v1251 = vand.u32 %v1122, 4294901760
  %v1252 = vsub.f32 %v1122, %v1251
  %v1253 = vand.u32 %v1252, 4294901760
  %v1254 = vsub.f32 %v1252, %v1253
  %v1255 = vand.u32 %v1254, 4294901760
  %1256 = vmatprep.mubr.f32.mxu0 %v1255
  %v1257 = vand.u32 %v181, 4294901760
  %v1258 = vsub.f32 %v181, %v1257
  %v1259 = vand.u32 %v1258, 4294901760
  %v1260 = vsub.f32 %v1258, %v1259
  %v1261 = vand.u32 %v1260, 4294901760
  %1262 = vmatmul.mubr.f32.gmra.mrb[0].mxu0 %v1261
  %v1263 = vpop.f32.mrb[0].mxu0
  %v1264 = vadd.f32 %v1113, %v1263
  %v1265 = vpop.f32.mrb[0].mxu0
  %1266 = vdwg.mxu0
  %1267 = vmatprep.subr.mxu0 0.0
  %v1268 = vand.u32 %v185, 4294901760
  %v1269 = vsub.f32 %v185, %v1268
  %v1270 = vand.u32 %v1269, 4294901760
  %v1271 = vsub.f32 %v1269, %v1270
  %v1272 = vand.u32 %v1271, 4294901760
  %1273 = vmatpush1.msra.mxu0 %v1272
  %1274 = vmatprep.subr.mxu0 0.0
  %v1275 = vand.u32 %v186, 4294901760
  %v1276 = vsub.f32 %v186, %v1275
  %v1277 = vand.u32 %v1276, 4294901760
  %v1278 = vsub.f32 %v1276, %v1277
  %v1279 = vand.u32 %v1278, 4294901760
  %1280 = vmatpush1.msra.mxu0 %v1279
  %1281 = vmatprep.subr.mxu0 0.0
  %v1282 = vand.u32 %v187, 4294901760
  %v1283 = vsub.f32 %v187, %v1282
  %v1284 = vand.u32 %v1283, 4294901760
  %v1285 = vsub.f32 %v1283, %v1284
  %v1286 = vand.u32 %v1285, 4294901760
  %1287 = vmatpush1.msra.mxu0 %v1286
  %1288 = vmatprep.subr.mxu0 0.0
  %v1289 = vand.u32 %v188, 4294901760
  %v1290 = vsub.f32 %v188, %v1289
  %v1291 = vand.u32 %v1290, 4294901760
  %v1292 = vsub.f32 %v1290, %v1291
  %v1293 = vand.u32 %v1292, 4294901760
  %1294 = vmatpush1.msra.mxu0 %v1293
  %1295 = vmatprep.subr.mxu0 0.0
  %v1296 = vand.u32 %v189, 4294901760
  %v1297 = vsub.f32 %v189, %v1296
  %v1298 = vand.u32 %v1297, 4294901760
  %v1299 = vsub.f32 %v1297, %v1298
  %v1300 = vand.u32 %v1299, 4294901760
  %1301 = vmatpush1.msra.mxu0 %v1300
  %1302 = vmatprep.subr.mxu0 0.0
  %v1303 = vand.u32 %v190, 4294901760
  %v1304 = vsub.f32 %v190, %v1303
  %v1305 = vand.u32 %v1304, 4294901760
  %v1306 = vsub.f32 %v1304, %v1305
  %v1307 = vand.u32 %v1306, 4294901760
  %1308 = vmatpush1.msra.mxu0 %v1307
  %1309 = vmatprep.subr.mxu0 0.0
  %v1310 = vand.u32 %v191, 4294901760
  %v1311 = vsub.f32 %v191, %v1310
  %v1312 = vand.u32 %v1311, 4294901760
  %v1313 = vsub.f32 %v1311, %v1312
  %v1314 = vand.u32 %v1313, 4294901760
  %1315 = vmatpush1.msra.mxu0 %v1314
  %1316 = vmatprep.subr.mxu0 0.0
  %v1317 = vand.u32 %v192, 4294901760
  %v1318 = vsub.f32 %v192, %v1317
  %v1319 = vand.u32 %v1318, 4294901760
  %v1320 = vsub.f32 %v1318, %v1319
  %v1321 = vand.u32 %v1320, 4294901760
  %1322 = vmatpush1.msra.mxu0 %v1321
  %1323 = vmatprep.subr.mxu0 0.0
  %v1324 = vand.u32 %v193, 4294901760
  %v1325 = vsub.f32 %v193, %v1324
  %v1326 = vand.u32 %v1325, 4294901760
  %v1327 = vsub.f32 %v1325, %v1326
  %v1328 = vand.u32 %v1327, 4294901760
  %1329 = vmatpush1.msra.mxu0 %v1328
  %1330 = vmatprep.subr.mxu0 0.0
  %v1331 = vand.u32 %v194, 4294901760
  %v1332 = vsub.f32 %v194, %v1331
  %v1333 = vand.u32 %v1332, 4294901760
  %v1334 = vsub.f32 %v1332, %v1333
  %v1335 = vand.u32 %v1334, 4294901760
  %1336 = vmatpush1.msra.mxu0 %v1335
  %1337 = vmatprep.subr.mxu0 0.0
  %v1338 = vand.u32 %v195, 4294901760
  %v1339 = vsub.f32 %v195, %v1338
  %v1340 = vand.u32 %v1339, 4294901760
  %v1341 = vsub.f32 %v1339, %v1340
  %v1342 = vand.u32 %v1341, 4294901760
  %1343 = vmatpush1.msra.mxu0 %v1342
  %1344 = vmatprep.subr.mxu0 0.0
  %v1345 = vand.u32 %v196, 4294901760
  %v1346 = vsub.f32 %v196, %v1345
  %v1347 = vand.u32 %v1346, 4294901760
  %v1348 = vsub.f32 %v1346, %v1347
  %v1349 = vand.u32 %v1348, 4294901760
  %1350 = vmatpush1.msra.mxu0 %v1349
  %1351 = vmatprep.subr.mxu0 0.0
  %v1352 = vand.u32 %v197, 4294901760
  %v1353 = vsub.f32 %v197, %v1352
  %v1354 = vand.u32 %v1353, 4294901760
  %v1355 = vsub.f32 %v1353, %v1354
  %v1356 = vand.u32 %v1355, 4294901760
  %1357 = vmatpush1.msra.mxu0 %v1356
  %1358 = vmatprep.subr.mxu0 0.0
  %v1359 = vand.u32 %v198, 4294901760
  %v1360 = vsub.f32 %v198, %v1359
  %v1361 = vand.u32 %v1360, 4294901760
  %v1362 = vsub.f32 %v1360, %v1361
  %v1363 = vand.u32 %v1362, 4294901760
  %1364 = vmatpush1.msra.mxu0 %v1363
  %1365 = vmatprep.subr.mxu0 0.0
  %v1366 = vand.u32 %v199, 4294901760
  %v1367 = vsub.f32 %v199, %v1366
  %v1368 = vand.u32 %v1367, 4294901760
  %v1369 = vsub.f32 %v1367, %v1368
  %v1370 = vand.u32 %v1369, 4294901760
  %1371 = vmatpush1.msra.mxu0 %v1370
  %1372 = vmatprep.subr.mxu0 0.0
  %v1373 = vand.u32 %v200, 4294901760
  %v1374 = vsub.f32 %v200, %v1373
  %v1375 = vand.u32 %v1374, 4294901760
  %v1376 = vsub.f32 %v1374, %v1375
  %v1377 = vand.u32 %v1376, 4294901760
  %1378 = vmatpush1.msra.mxu0 %v1377
  %1379 = vmatprep.subr.mxu0 0.0
  %v1380 = vand.u32 %v201, 4294901760
  %v1381 = vsub.f32 %v201, %v1380
  %v1382 = vand.u32 %v1381, 4294901760
  %v1383 = vsub.f32 %v1381, %v1382
  %v1384 = vand.u32 %v1383, 4294901760
  %1385 = vmatpush1.msra.mxu0 %v1384
  %1386 = vmatprep.subr.mxu0 0.0
  %v1387 = vand.u32 %v202, 4294901760
  %v1388 = vsub.f32 %v202, %v1387
  %v1389 = vand.u32 %v1388, 4294901760
  %v1390 = vsub.f32 %v1388, %v1389
  %v1391 = vand.u32 %v1390, 4294901760
  %1392 = vmatpush1.msra.mxu0 %v1391
  %1393 = vmatprep.subr.mxu0 0.0
  %1394 = vmatpush1.msra.mxu0 0.0
  %1395 = vmatprep.subr.mxu0 0.0
  %1396 = vmatpush1.msra.mxu0 0.0
  %1397 = vmatprep.subr.mxu0 0.0
  %1398 = vmatpush1.msra.mxu0 0.0
  %1399 = vmatprep.subr.mxu0 0.0
  %1400 = vmatpush1.msra.mxu0 0.0
  %1401 = vmatprep.subr.mxu0 0.0
  %1402 = vmatpush1.msra.mxu0 0.0
  %1403 = vmatprep.subr.mxu0 0.0
  %1404 = vmatpush1.msra.mxu0 0.0
  %1405 = vmatprep.subr.mxu0 0.0
  %1406 = vmatpush1.msra.mxu0 0.0
  %1407 = vmatprep.subr.mxu0 0.0
  %1408 = vmatpush1.msra.mxu0 0.0
  %1409 = vmatprep.subr.mxu0 0.0
  %1410 = vmatpush1.msra.mxu0 0.0
  %1411 = vmatprep.subr.mxu0 0.0
  %1412 = vmatpush1.msra.mxu0 0.0
  %1413 = vmatprep.subr.mxu0 0.0
  %1414 = vmatpush1.msra.mxu0 0.0
  %1415 = vmatprep.subr.mxu0 0.0
  %1416 = vmatpush1.msra.mxu0 0.0
  %1417 = vmatprep.subr.mxu0 0.0
  %1418 = vmatpush1.msra.mxu0 0.0
  %1419 = vmatprep.subr.mxu0 0.0
  %1420 = vmatpush1.msra.mxu0 0.0
  %v1421 = vand.u32 %v1116, 4294901760
  %1422 = vmatprep.mubr.f32.mxu0 %v1421
  %v1423 = vand.u32 %v173, 4294901760
  %1424 = vmatmul.mubr.f32.gmra.mrb[0].mxu0 %v1423
  %v1425 = vpop.f32.mrb[0].mxu0
  %v1426 = vadd.f32 %v1219, %v1425
  %v1427 = vpop.f32.mrb[0].mxu0
  %v1428 = vand.u32 %v1118, 4294901760
  %1429 = vmatprep.mubr.f32.mxu0 %v1428
  %v1430 = vand.u32 %v175, 4294901760
  %1431 = vmatmul.mubr.f32.gmra.mrb[0].mxu0 %v1430
  %v1432 = vpop.f32.mrb[0].mxu0
  %v1433 = vadd.f32 %v1234, %v1432
  %v1434 = vpop.f32.mrb[0].mxu0
  %v1435 = vand.u32 %v1120, 4294901760
  %1436 = vmatprep.mubr.f32.mxu0 %v1435
  %v1437 = vand.u32 %v179, 4294901760
  %1438 = vmatmul.mubr.f32.gmra.mrb[0].mxu0 %v1437
  %v1439 = vpop.f32.mrb[0].mxu0
  %v1440 = vadd.f32 %v1249, %v1439
  %v1441 = vpop.f32.mrb[0].mxu0
  %v1442 = vand.u32 %v1122, 4294901760
  %1443 = vmatprep.mubr.f32.mxu0 %v1442
  %v1444 = vand.u32 %v181, 4294901760
  %1445 = vmatmul.mubr.f32.gmra.mrb[0].mxu0 %v1444
  %v1446 = vpop.f32.mrb[0].mxu0
  %v1447 = vadd.f32 %v1264, %v1446
  %v1448 = vpop.f32.mrb[0].mxu0
  %1449 = vdwg.mxu0
  %1450 = vmatprep.subr.mxu0 0.0
  %v1451 = vand.u32 %v185, 4294901760
  %v1452 = vsub.f32 %v185, %v1451
  %1453 = vmatpush1.msra.mxu0 %v1452
  %1454 = vmatprep.subr.mxu0 0.0
  %v1455 = vand.u32 %v186, 4294901760
  %v1456 = vsub.f32 %v186, %v1455
  %1457 = vmatpush1.msra.mxu0 %v1456
  %1458 = vmatprep.subr.mxu0 0.0
  %v1459 = vand.u32 %v187, 4294901760
  %v1460 = vsub.f32 %v187, %v1459
  %1461 = vmatpush1.msra.mxu0 %v1460
  %1462 = vmatprep.subr.mxu0 0.0
  %v1463 = vand.u32 %v188, 4294901760
  %v1464 = vsub.f32 %v188, %v1463
  %1465 = vmatpush1.msra.mxu0 %v1464
  %1466 = vmatprep.subr.mxu0 0.0
  %v1467 = vand.u32 %v189, 4294901760
  %v1468 = vsub.f32 %v189, %v1467
  %1469 = vmatpush1.msra.mxu0 %v1468
  %1470 = vmatprep.subr.mxu0 0.0
  %v1471 = vand.u32 %v190, 4294901760
  %v1472 = vsub.f32 %v190, %v1471
  %1473 = vmatpush1.msra.mxu0 %v1472
  %1474 = vmatprep.subr.mxu0 0.0
  %v1475 = vand.u32 %v191, 4294901760
  %v1476 = vsub.f32 %v191, %v1475
  %1477 = vmatpush1.msra.mxu0 %v1476
  %1478 = vmatprep.subr.mxu0 0.0
  %v1479 = vand.u32 %v192, 4294901760
  %v1480 = vsub.f32 %v192, %v1479
  %1481 = vmatpush1.msra.mxu0 %v1480
  %1482 = vmatprep.subr.mxu0 0.0
  %v1483 = vand.u32 %v193, 4294901760
  %v1484 = vsub.f32 %v193, %v1483
  %1485 = vmatpush1.msra.mxu0 %v1484
  %1486 = vmatprep.subr.mxu0 0.0
  %v1487 = vand.u32 %v194, 4294901760
  %v1488 = vsub.f32 %v194, %v1487
  %1489 = vmatpush1.msra.mxu0 %v1488
  %1490 = vmatprep.subr.mxu0 0.0
  %v1491 = vand.u32 %v195, 4294901760
  %v1492 = vsub.f32 %v195, %v1491
  %1493 = vmatpush1.msra.mxu0 %v1492
  %1494 = vmatprep.subr.mxu0 0.0
  %v1495 = vand.u32 %v196, 4294901760
  %v1496 = vsub.f32 %v196, %v1495
  %1497 = vmatpush1.msra.mxu0 %v1496
  %1498 = vmatprep.subr.mxu0 0.0
  %v1499 = vand.u32 %v197, 4294901760
  %v1500 = vsub.f32 %v197, %v1499
  %1501 = vmatpush1.msra.mxu0 %v1500
  %1502 = vmatprep.subr.mxu0 0.0
  %v1503 = vand.u32 %v198, 4294901760
  %v1504 = vsub.f32 %v198, %v1503
  %1505 = vmatpush1.msra.mxu0 %v1504
  %1506 = vmatprep.subr.mxu0 0.0
  %v1507 = vand.u32 %v199, 4294901760
  %v1508 = vsub.f32 %v199, %v1507
  %1509 = vmatpush1.msra.mxu0 %v1508
  %1510 = vmatprep.subr.mxu0 0.0
  %v1511 = vand.u32 %v200, 4294901760
  %v1512 = vsub.f32 %v200, %v1511
  %1513 = vmatpush1.msra.mxu0 %v1512
  %1514 = vmatprep.subr.mxu0 0.0
  %v1515 = vand.u32 %v201, 4294901760
  %v1516 = vsub.f32 %v201, %v1515
  %1517 = vmatpush1.msra.mxu0 %v1516
  %1518 = vmatprep.subr.mxu0 0.0
  %v1519 = vand.u32 %v202, 4294901760
  %v1520 = vsub.f32 %v202, %v1519
  %1521 = vmatpush1.msra.mxu0 %v1520
  %1522 = vmatprep.subr.mxu0 0.0
  %1523 = vmatpush1.msra.mxu0 0.0
  %1524 = vmatprep.subr.mxu0 0.0
  %1525 = vmatpush1.msra.mxu0 0.0
  %1526 = vmatprep.subr.mxu0 0.0
  %1527 = vmatpush1.msra.mxu0 0.0
  %1528 = vmatprep.subr.mxu0 0.0
  %1529 = vmatpush1.msra.mxu0 0.0
  %1530 = vmatprep.subr.mxu0 0.0
  %1531 = vmatpush1.msra.mxu0 0.0
  %1532 = vmatprep.subr.mxu0 0.0
  %1533 = vmatpush1.msra.mxu0 0.0
  %1534 = vmatprep.subr.mxu0 0.0
  %1535 = vmatpush1.msra.mxu0 0.0
  %1536 = vmatprep.subr.mxu0 0.0
  %1537 = vmatpush1.msra.mxu0 0.0
  %1538 = vmatprep.subr.mxu0 0.0
  %1539 = vmatpush1.msra.mxu0 0.0
  %1540 = vmatprep.subr.mxu0 0.0
  %1541 = vmatpush1.msra.mxu0 0.0
  %1542 = vmatprep.subr.mxu0 0.0
  %1543 = vmatpush1.msra.mxu0 0.0
  %1544 = vmatprep.subr.mxu0 0.0
  %1545 = vmatpush1.msra.mxu0 0.0
  %1546 = vmatprep.subr.mxu0 0.0
  %1547 = vmatpush1.msra.mxu0 0.0
  %1548 = vmatprep.subr.mxu0 0.0
  %1549 = vmatpush1.msra.mxu0 0.0
  %v1550 = vand.u32 %v1116, 4294901760
  %v1551 = vsub.f32 %v1116, %v1550
  %1552 = vmatprep.mubr.f32.mxu0 %v1551
  %v1553 = vand.u32 %v173, 4294901760
  %v1554 = vsub.f32 %v173, %v1553
  %1555 = vmatmul.mubr.f32.gmra.mrb[0].mxu0 %v1554
  %v1556 = vpop.f32.mrb[0].mxu0
  %v1557 = vadd.f32 %v1426, %v1556
  %v1558 = vpop.f32.mrb[0].mxu0
  %v1559 = vand.u32 %v1118, 4294901760
  %v1560 = vsub.f32 %v1118, %v1559
  %1561 = vmatprep.mubr.f32.mxu0 %v1560
  %v1562 = vand.u32 %v175, 4294901760
  %v1563 = vsub.f32 %v175, %v1562
  %1564 = vmatmul.mubr.f32.gmra.mrb[0].mxu0 %v1563
  %v1565 = vpop.f32.mrb[0].mxu0
  %v1566 = vadd.f32 %v1433, %v1565
  %v1567 = vpop.f32.mrb[0].mxu0
  %v1568 = vand.u32 %v1120, 4294901760
  %v1569 = vsub.f32 %v1120, %v1568
  %1570 = vmatprep.mubr.f32.mxu0 %v1569
  %v1571 = vand.u32 %v179, 4294901760
  %v1572 = vsub.f32 %v179, %v1571
  %1573 = vmatmul.mubr.f32.gmra.mrb[0].mxu0 %v1572
  %v1574 = vpop.f32.mrb[0].mxu0
  %v1575 = vadd.f32 %v1440, %v1574
  %v1576 = vpop.f32.mrb[0].mxu0
  %v1577 = vand.u32 %v1122, 4294901760
  %v1578 = vsub.f32 %v1122, %v1577
  %1579 = vmatprep.mubr.f32.mxu0 %v1578
  %v1580 = vand.u32 %v181, 4294901760
  %v1581 = vsub.f32 %v181, %v1580
  %1582 = vmatmul.mubr.f32.gmra.mrb[0].mxu0 %v1581
  %v1583 = vpop.f32.mrb[0].mxu0
  %v1584 = vadd.f32 %v1447, %v1583
  %v1585 = vpop.f32.mrb[0].mxu0
  %1586 = vdwg.mxu0
  %1587 = vmatprep.subr.mxu0 0.0
  %v1588 = vand.u32 %v185, 4294901760
  %1589 = vmatpush1.msra.mxu0 %v1588
  %1590 = vmatprep.subr.mxu0 0.0
  %v1591 = vand.u32 %v186, 4294901760
  %1592 = vmatpush1.msra.mxu0 %v1591
  %1593 = vmatprep.subr.mxu0 0.0
  %v1594 = vand.u32 %v187, 4294901760
  %1595 = vmatpush1.msra.mxu0 %v1594
  %1596 = vmatprep.subr.mxu0 0.0
  %v1597 = vand.u32 %v188, 4294901760
  %1598 = vmatpush1.msra.mxu0 %v1597
  %1599 = vmatprep.subr.mxu0 0.0
  %v1600 = vand.u32 %v189, 4294901760
  %1601 = vmatpush1.msra.mxu0 %v1600
  %1602 = vmatprep.subr.mxu0 0.0
  %v1603 = vand.u32 %v190, 4294901760
  %1604 = vmatpush1.msra.mxu0 %v1603
  %1605 = vmatprep.subr.mxu0 0.0
  %v1606 = vand.u32 %v191, 4294901760
  %1607 = vmatpush1.msra.mxu0 %v1606
  %1608 = vmatprep.subr.mxu0 0.0
  %v1609 = vand.u32 %v192, 4294901760
  %1610 = vmatpush1.msra.mxu0 %v1609
  %1611 = vmatprep.subr.mxu0 0.0
  %v1612 = vand.u32 %v193, 4294901760
  %1613 = vmatpush1.msra.mxu0 %v1612
  %1614 = vmatprep.subr.mxu0 0.0
  %v1615 = vand.u32 %v194, 4294901760
  %1616 = vmatpush1.msra.mxu0 %v1615
  %1617 = vmatprep.subr.mxu0 0.0
  %v1618 = vand.u32 %v195, 4294901760
  %1619 = vmatpush1.msra.mxu0 %v1618
  %1620 = vmatprep.subr.mxu0 0.0
  %v1621 = vand.u32 %v196, 4294901760
  %1622 = vmatpush1.msra.mxu0 %v1621
  %1623 = vmatprep.subr.mxu0 0.0
  %v1624 = vand.u32 %v197, 4294901760
  %1625 = vmatpush1.msra.mxu0 %v1624
  %1626 = vmatprep.subr.mxu0 0.0
  %v1627 = vand.u32 %v198, 4294901760
  %1628 = vmatpush1.msra.mxu0 %v1627
  %1629 = vmatprep.subr.mxu0 0.0
  %v1630 = vand.u32 %v199, 4294901760
  %1631 = vmatpush1.msra.mxu0 %v1630
  %1632 = vmatprep.subr.mxu0 0.0
  %v1633 = vand.u32 %v200, 4294901760
  %1634 = vmatpush1.msra.mxu0 %v1633
  %1635 = vmatprep.subr.mxu0 0.0
  %v1636 = vand.u32 %v201, 4294901760
  %1637 = vmatpush1.msra.mxu0 %v1636
  %1638 = vmatprep.subr.mxu0 0.0
  %v1639 = vand.u32 %v202, 4294901760
  %1640 = vmatpush1.msra.mxu0 %v1639
  %1641 = vmatprep.subr.mxu0 0.0
  %1642 = vmatpush1.msra.mxu0 0.0
  %1643 = vmatprep.subr.mxu0 0.0
  %1644 = vmatpush1.msra.mxu0 0.0
  %1645 = vmatprep.subr.mxu0 0.0
  %1646 = vmatpush1.msra.mxu0 0.0
  %1647 = vmatprep.subr.mxu0 0.0
  %1648 = vmatpush1.msra.mxu0 0.0
  %1649 = vmatprep.subr.mxu0 0.0
  %1650 = vmatpush1.msra.mxu0 0.0
  %1651 = vmatprep.subr.mxu0 0.0
  %1652 = vmatpush1.msra.mxu0 0.0
  %1653 = vmatprep.subr.mxu0 0.0
  %1654 = vmatpush1.msra.mxu0 0.0
  %1655 = vmatprep.subr.mxu0 0.0
  %1656 = vmatpush1.msra.mxu0 0.0
  %1657 = vmatprep.subr.mxu0 0.0
  %1658 = vmatpush1.msra.mxu0 0.0
  %1659 = vmatprep.subr.mxu0 0.0
  %1660 = vmatpush1.msra.mxu0 0.0
  %1661 = vmatprep.subr.mxu0 0.0
  %1662 = vmatpush1.msra.mxu0 0.0
  %1663 = vmatprep.subr.mxu0 0.0
  %1664 = vmatpush1.msra.mxu0 0.0
  %1665 = vmatprep.subr.mxu0 0.0
  %1666 = vmatpush1.msra.mxu0 0.0
  %1667 = vmatprep.subr.mxu0 0.0
  %1668 = vmatpush1.msra.mxu0 0.0
  %v1669 = vand.u32 %v1116, 4294901760
  %v1670 = vsub.f32 %v1116, %v1669
  %v1671 = vand.u32 %v1670, 4294901760
  %1672 = vmatprep.mubr.f32.mxu0 %v1671
  %v1673 = vand.u32 %v173, 4294901760
  %v1674 = vsub.f32 %v173, %v1673
  %v1675 = vand.u32 %v1674, 4294901760
  %1676 = vmatmul.mubr.f32.gmra.mrb[0].mxu0 %v1675
  %v1677 = vpop.f32.mrb[0].mxu0
  %v1678 = vadd.f32 %v1557, %v1677
  %v1679 = vpop.f32.mrb[0].mxu0
  %v1680 = vand.u32 %v1118, 4294901760
  %v1681 = vsub.f32 %v1118, %v1680
  %v1682 = vand.u32 %v1681, 4294901760
  %1683 = vmatprep.mubr.f32.mxu0 %v1682
  %v1684 = vand.u32 %v175, 4294901760
  %v1685 = vsub.f32 %v175, %v1684
  %v1686 = vand.u32 %v1685, 4294901760
  %1687 = vmatmul.mubr.f32.gmra.mrb[0].mxu0 %v1686
  %v1688 = vpop.f32.mrb[0].mxu0
  %v1689 = vadd.f32 %v1566, %v1688
  %v1690 = vpop.f32.mrb[0].mxu0
  %v1691 = vand.u32 %v1120, 4294901760
  %v1692 = vsub.f32 %v1120, %v1691
  %v1693 = vand.u32 %v1692, 4294901760
  %1694 = vmatprep.mubr.f32.mxu0 %v1693
  %v1695 = vand.u32 %v179, 4294901760
  %v1696 = vsub.f32 %v179, %v1695
  %v1697 = vand.u32 %v1696, 4294901760
  %1698 = vmatmul.mubr.f32.gmra.mrb[0].mxu0 %v1697
  %v1699 = vpop.f32.mrb[0].mxu0
  %v1700 = vadd.f32 %v1575, %v1699
  %v1701 = vpop.f32.mrb[0].mxu0
  %v1702 = vand.u32 %v1122, 4294901760
  %v1703 = vsub.f32 %v1122, %v1702
  %v1704 = vand.u32 %v1703, 4294901760
  %1705 = vmatprep.mubr.f32.mxu0 %v1704
  %v1706 = vand.u32 %v181, 4294901760
  %v1707 = vsub.f32 %v181, %v1706
  %v1708 = vand.u32 %v1707, 4294901760
  %1709 = vmatmul.mubr.f32.gmra.mrb[0].mxu0 %v1708
  %v1710 = vpop.f32.mrb[0].mxu0
  %v1711 = vadd.f32 %v1584, %v1710
  %v1712 = vpop.f32.mrb[0].mxu0
  %1713 = vdwg.mxu0
  %1714 = vmatprep.subr.mxu0 0.0
  %v1715 = vand.u32 %v185, 4294901760
  %v1716 = vsub.f32 %v185, %v1715
  %v1717 = vand.u32 %v1716, 4294901760
  %1718 = vmatpush1.msra.mxu0 %v1717
  %1719 = vmatprep.subr.mxu0 0.0
  %v1720 = vand.u32 %v186, 4294901760
  %v1721 = vsub.f32 %v186, %v1720
  %v1722 = vand.u32 %v1721, 4294901760
  %1723 = vmatpush1.msra.mxu0 %v1722
  %1724 = vmatprep.subr.mxu0 0.0
  %v1725 = vand.u32 %v187, 4294901760
  %v1726 = vsub.f32 %v187, %v1725
  %v1727 = vand.u32 %v1726, 4294901760
  %1728 = vmatpush1.msra.mxu0 %v1727
  %1729 = vmatprep.subr.mxu0 0.0
  %v1730 = vand.u32 %v188, 4294901760
  %v1731 = vsub.f32 %v188, %v1730
  %v1732 = vand.u32 %v1731, 4294901760
  %1733 = vmatpush1.msra.mxu0 %v1732
  %1734 = vmatprep.subr.mxu0 0.0
  %v1735 = vand.u32 %v189, 4294901760
  %v1736 = vsub.f32 %v189, %v1735
  %v1737 = vand.u32 %v1736, 4294901760
  %1738 = vmatpush1.msra.mxu0 %v1737
  %1739 = vmatprep.subr.mxu0 0.0
  %v1740 = vand.u32 %v190, 4294901760
  %v1741 = vsub.f32 %v190, %v1740
  %v1742 = vand.u32 %v1741, 4294901760
  %1743 = vmatpush1.msra.mxu0 %v1742
  %1744 = vmatprep.subr.mxu0 0.0
  %v1745 = vand.u32 %v191, 4294901760
  %v1746 = vsub.f32 %v191, %v1745
  %v1747 = vand.u32 %v1746, 4294901760
  %1748 = vmatpush1.msra.mxu0 %v1747
  %1749 = vmatprep.subr.mxu0 0.0
  %v1750 = vand.u32 %v192, 4294901760
  %v1751 = vsub.f32 %v192, %v1750
  %v1752 = vand.u32 %v1751, 4294901760
  %1753 = vmatpush1.msra.mxu0 %v1752
  %1754 = vmatprep.subr.mxu0 0.0
  %v1755 = vand.u32 %v193, 4294901760
  %v1756 = vsub.f32 %v193, %v1755
  %v1757 = vand.u32 %v1756, 4294901760
  %1758 = vmatpush1.msra.mxu0 %v1757
  %1759 = vmatprep.subr.mxu0 0.0
  %v1760 = vand.u32 %v194, 4294901760
  %v1761 = vsub.f32 %v194, %v1760
  %v1762 = vand.u32 %v1761, 4294901760
  %1763 = vmatpush1.msra.mxu0 %v1762
  %1764 = vmatprep.subr.mxu0 0.0
  %v1765 = vand.u32 %v195, 4294901760
  %v1766 = vsub.f32 %v195, %v1765
  %v1767 = vand.u32 %v1766, 4294901760
  %1768 = vmatpush1.msra.mxu0 %v1767
  %1769 = vmatprep.subr.mxu0 0.0
  %v1770 = vand.u32 %v196, 4294901760
  %v1771 = vsub.f32 %v196, %v1770
  %v1772 = vand.u32 %v1771, 4294901760
  %1773 = vmatpush1.msra.mxu0 %v1772
  %1774 = vmatprep.subr.mxu0 0.0
  %v1775 = vand.u32 %v197, 4294901760
  %v1776 = vsub.f32 %v197, %v1775
  %v1777 = vand.u32 %v1776, 4294901760
  %1778 = vmatpush1.msra.mxu0 %v1777
  %1779 = vmatprep.subr.mxu0 0.0
  %v1780 = vand.u32 %v198, 4294901760
  %v1781 = vsub.f32 %v198, %v1780
  %v1782 = vand.u32 %v1781, 4294901760
  %1783 = vmatpush1.msra.mxu0 %v1782
  %1784 = vmatprep.subr.mxu0 0.0
  %v1785 = vand.u32 %v199, 4294901760
  %v1786 = vsub.f32 %v199, %v1785
  %v1787 = vand.u32 %v1786, 4294901760
  %1788 = vmatpush1.msra.mxu0 %v1787
  %1789 = vmatprep.subr.mxu0 0.0
  %v1790 = vand.u32 %v200, 4294901760
  %v1791 = vsub.f32 %v200, %v1790
  %v1792 = vand.u32 %v1791, 4294901760
  %1793 = vmatpush1.msra.mxu0 %v1792
  %1794 = vmatprep.subr.mxu0 0.0
  %v1795 = vand.u32 %v201, 4294901760
  %v1796 = vsub.f32 %v201, %v1795
  %v1797 = vand.u32 %v1796, 4294901760
  %1798 = vmatpush1.msra.mxu0 %v1797
  %1799 = vmatprep.subr.mxu0 0.0
  %v1800 = vand.u32 %v202, 4294901760
  %v1801 = vsub.f32 %v202, %v1800
  %v1802 = vand.u32 %v1801, 4294901760
  %1803 = vmatpush1.msra.mxu0 %v1802
  %1804 = vmatprep.subr.mxu0 0.0
  %1805 = vmatpush1.msra.mxu0 0.0
  %1806 = vmatprep.subr.mxu0 0.0
  %1807 = vmatpush1.msra.mxu0 0.0
  %1808 = vmatprep.subr.mxu0 0.0
  %1809 = vmatpush1.msra.mxu0 0.0
  %1810 = vmatprep.subr.mxu0 0.0
  %1811 = vmatpush1.msra.mxu0 0.0
  %1812 = vmatprep.subr.mxu0 0.0
  %1813 = vmatpush1.msra.mxu0 0.0
  %1814 = vmatprep.subr.mxu0 0.0
  %1815 = vmatpush1.msra.mxu0 0.0
  %1816 = vmatprep.subr.mxu0 0.0
  %1817 = vmatpush1.msra.mxu0 0.0
  %1818 = vmatprep.subr.mxu0 0.0
  %1819 = vmatpush1.msra.mxu0 0.0
  %1820 = vmatprep.subr.mxu0 0.0
  %1821 = vmatpush1.msra.mxu0 0.0
  %1822 = vmatprep.subr.mxu0 0.0
  %1823 = vmatpush1.msra.mxu0 0.0
  %1824 = vmatprep.subr.mxu0 0.0
  %1825 = vmatpush1.msra.mxu0 0.0
  %1826 = vmatprep.subr.mxu0 0.0
  %1827 = vmatpush1.msra.mxu0 0.0
  %1828 = vmatprep.subr.mxu0 0.0
  %1829 = vmatpush1.msra.mxu0 0.0
  %1830 = vmatprep.subr.mxu0 0.0
  %1831 = vmatpush1.msra.mxu0 0.0
  %v1832 = vand.u32 %v1116, 4294901760
  %1833 = vmatprep.mubr.f32.mxu0 %v1832
  %v1834 = vand.u32 %v173, 4294901760
  %1835 = vmatmul.mubr.f32.gmra.mrb[0].mxu0 %v1834
  %v1836 = vpop.f32.mrb[0].mxu0
  %v1837 = vadd.f32 %v1678, %v1836
  %v1838 = vpop.f32.mrb[0].mxu0
  %v1839 = vand.u32 %v1118, 4294901760
  %1840 = vmatprep.mubr.f32.mxu0 %v1839
  %v1841 = vand.u32 %v175, 4294901760
  %1842 = vmatmul.mubr.f32.gmra.mrb[0].mxu0 %v1841
  %v1843 = vpop.f32.mrb[0].mxu0
  %v1844 = vadd.f32 %v1689, %v1843
  %v1845 = vpop.f32.mrb[0].mxu0
  %v1846 = vand.u32 %v1120, 4294901760
  %1847 = vmatprep.mubr.f32.mxu0 %v1846
  %v1848 = vand.u32 %v179, 4294901760
  %1849 = vmatmul.mubr.f32.gmra.mrb[0].mxu0 %v1848
  %v1850 = vpop.f32.mrb[0].mxu0
  %v1851 = vadd.f32 %v1700, %v1850
  %v1852 = vpop.f32.mrb[0].mxu0
  %v1853 = vand.u32 %v1122, 4294901760
  %1854 = vmatprep.mubr.f32.mxu0 %v1853
  %v1855 = vand.u32 %v181, 4294901760
  %1856 = vmatmul.mubr.f32.gmra.mrb[0].mxu0 %v1855
  %v1857 = vpop.f32.mrb[0].mxu0
  %v1858 = vadd.f32 %v1711, %v1857
  %v1859 = vpop.f32.mrb[0].mxu0
  %1860 = vdwg.mxu0
  %1861 = vmatprep.subr.mxu0 0.0
  %v1862 = vand.u32 %v185, 4294901760
  %1863 = vmatpush1.msra.mxu0 %v1862
  %1864 = vmatprep.subr.mxu0 0.0
  %v1865 = vand.u32 %v186, 4294901760
  %1866 = vmatpush1.msra.mxu0 %v1865
  %1867 = vmatprep.subr.mxu0 0.0
  %v1868 = vand.u32 %v187, 4294901760
  %1869 = vmatpush1.msra.mxu0 %v1868
  %1870 = vmatprep.subr.mxu0 0.0
  %v1871 = vand.u32 %v188, 4294901760
  %1872 = vmatpush1.msra.mxu0 %v1871
  %1873 = vmatprep.subr.mxu0 0.0
  %v1874 = vand.u32 %v189, 4294901760
  %1875 = vmatpush1.msra.mxu0 %v1874
  %1876 = vmatprep.subr.mxu0 0.0
  %v1877 = vand.u32 %v190, 4294901760
  %1878 = vmatpush1.msra.mxu0 %v1877
  %1879 = vmatprep.subr.mxu0 0.0
  %v1880 = vand.u32 %v191, 4294901760
  %1881 = vmatpush1.msra.mxu0 %v1880
  %1882 = vmatprep.subr.mxu0 0.0
  %v1883 = vand.u32 %v192, 4294901760
  %1884 = vmatpush1.msra.mxu0 %v1883
  %1885 = vmatprep.subr.mxu0 0.0
  %v1886 = vand.u32 %v193, 4294901760
  %1887 = vmatpush1.msra.mxu0 %v1886
  %1888 = vmatprep.subr.mxu0 0.0
  %v1889 = vand.u32 %v194, 4294901760
  %1890 = vmatpush1.msra.mxu0 %v1889
  %1891 = vmatprep.subr.mxu0 0.0
  %v1892 = vand.u32 %v195, 4294901760
  %1893 = vmatpush1.msra.mxu0 %v1892
  %1894 = vmatprep.subr.mxu0 0.0
  %v1895 = vand.u32 %v196, 4294901760
  %1896 = vmatpush1.msra.mxu0 %v1895
  %1897 = vmatprep.subr.mxu0 0.0
  %v1898 = vand.u32 %v197, 4294901760
  %1899 = vmatpush1.msra.mxu0 %v1898
  %1900 = vmatprep.subr.mxu0 0.0
  %v1901 = vand.u32 %v198, 4294901760
  %1902 = vmatpush1.msra.mxu0 %v1901
  %1903 = vmatprep.subr.mxu0 0.0
  %v1904 = vand.u32 %v199, 4294901760
  %1905 = vmatpush1.msra.mxu0 %v1904
  %1906 = vmatprep.subr.mxu0 0.0
  %v1907 = vand.u32 %v200, 4294901760
  %1908 = vmatpush1.msra.mxu0 %v1907
  %1909 = vmatprep.subr.mxu0 0.0
  %v1910 = vand.u32 %v201, 4294901760
  %1911 = vmatpush1.msra.mxu0 %v1910
  %1912 = vmatprep.subr.mxu0 0.0
  %v1913 = vand.u32 %v202, 4294901760
  %1914 = vmatpush1.msra.mxu0 %v1913
  %1915 = vmatprep.subr.mxu0 0.0
  %1916 = vmatpush1.msra.mxu0 0.0
  %1917 = vmatprep.subr.mxu0 0.0
  %1918 = vmatpush1.msra.mxu0 0.0
  %1919 = vmatprep.subr.mxu0 0.0
  %1920 = vmatpush1.msra.mxu0 0.0
  %1921 = vmatprep.subr.mxu0 0.0
  %1922 = vmatpush1.msra.mxu0 0.0
  %1923 = vmatprep.subr.mxu0 0.0
  %1924 = vmatpush1.msra.mxu0 0.0
  %1925 = vmatprep.subr.mxu0 0.0
  %1926 = vmatpush1.msra.mxu0 0.0
  %1927 = vmatprep.subr.mxu0 0.0
  %1928 = vmatpush1.msra.mxu0 0.0
  %1929 = vmatprep.subr.mxu0 0.0
  %1930 = vmatpush1.msra.mxu0 0.0
  %1931 = vmatprep.subr.mxu0 0.0
  %1932 = vmatpush1.msra.mxu0 0.0
  %1933 = vmatprep.subr.mxu0 0.0
  %1934 = vmatpush1.msra.mxu0 0.0
  %1935 = vmatprep.subr.mxu0 0.0
  %1936 = vmatpush1.msra.mxu0 0.0
  %1937 = vmatprep.subr.mxu0 0.0
  %1938 = vmatpush1.msra.mxu0 0.0
  %1939 = vmatprep.subr.mxu0 0.0
  %1940 = vmatpush1.msra.mxu0 0.0
  %1941 = vmatprep.subr.mxu0 0.0
  %1942 = vmatpush1.msra.mxu0 0.0
  %v1943 = vand.u32 %v1116, 4294901760
  %1944 = vmatprep.mubr.f32.mxu0 %v1943
  %v1945 = vand.u32 %v173, 4294901760
  %1946 = vmatmul.mubr.f32.gmra.mrb[0].mxu0 %v1945
  %v1947 = vpop.f32.mrb[0].mxu0
  %v1948 = vadd.f32 %v1837, %v1947
  %v1949 = vpop.f32.mrb[0].mxu0
  %v1950 = vand.u32 %v1118, 4294901760
  %1951 = vmatprep.mubr.f32.mxu0 %v1950
  %v1952 = vand.u32 %v175, 4294901760
  %1953 = vmatmul.mubr.f32.gmra.mrb[0].mxu0 %v1952
  %v1954 = vpop.f32.mrb[0].mxu0
  %v1955 = vadd.f32 %v1844, %v1954
  %v1956 = vpop.f32.mrb[0].mxu0
  %v1957 = vand.u32 %v1120, 4294901760
  %1958 = vmatprep.mubr.f32.mxu0 %v1957
  %v1959 = vand.u32 %v179, 4294901760
  %1960 = vmatmul.mubr.f32.gmra.mrb[0].mxu0 %v1959
  %v1961 = vpop.f32.mrb[0].mxu0
  %v1962 = vadd.f32 %v1851, %v1961
  %v1963 = vpop.f32.mrb[0].mxu0
  %v1964 = vand.u32 %v1122, 4294901760
  %1965 = vmatprep.mubr.f32.mxu0 %v1964
  %v1966 = vand.u32 %v181, 4294901760
  %1967 = vmatmul.mubr.f32.gmra.mrb[0].mxu0 %v1966
  %v1968 = vpop.f32.mrb[0].mxu0
  %v1969 = vadd.f32 %v1858, %v1968
  %v1970 = vpop.f32.mrb[0].mxu0
  %1971 = vdwg.mxu0
  %vm1972 = vcmask 1045504
  %v1973 = vrot.slane %v173, 2
  %v1974 = vrot.slane %v175, 2
  %v1975 = vsel %vm1972, %v1973, %v1974
  %v1976 = vrot.slane %v174, 2
  %v1977 = vrot.slane %v176, 2
  %v1978 = vsel %vm1972, %v1976, %v1977
  %v1979 = vrot.slane %v177, 2
  %v1980 = vsel %vm1972, %v1974, %v1979
  %v1981 = vrot.slane %v178, 2
  %v1982 = vsel %vm1972, %v1977, %v1981
  %v1983 = vrot.slane %v179, 2
  %v1984 = vrot.slane %v181, 2
  %v1985 = vsel %vm1972, %v1983, %v1984
  %v1986 = vrot.slane %v180, 2
  %v1987 = vrot.slane %v182, 2
  %v1988 = vsel %vm1972, %v1986, %v1987
  %v1989 = vrot.slane %v183, 2
  %v1990 = vsel %vm1972, %v1984, %v1989
  %v1991 = vrot.slane %v184, 2
  %v1992 = vsel %vm1972, %v1987, %v1991
  %s1997 = scalar_lea.vmem %s4, 288
  %v1998 = vld [vmem:[%s1997] sm:$0xff]
  %v1999 = vld [vmem:[%s1997 + $0x8] sm:$0xff]
  %v2000 = vld [vmem:[%s1997 + $0x10] sm:$0xff]
  %v2001 = vld [vmem:[%s1997 + $0x18] sm:$0xff]
  %v2002 = vld [vmem:[%s1997 + $0x20] sm:$0xff]
  %v2003 = vld [vmem:[%s1997 + $0x28] sm:$0xff]
  %v2004 = vld [vmem:[%s1997 + $0x30] sm:$0xff]
  %v2005 = vld [vmem:[%s1997 + $0x38] sm:$0xff]
  %v2006 = vld [vmem:[%s1997 + $0x40] sm:$0xff]
  %v2007 = vld [vmem:[%s1997 + $0x48] sm:$0xff]
  %v2008 = vld [vmem:[%s1997 + $0x50] sm:$0xff]
  %v2009 = vld [vmem:[%s1997 + $0x58] sm:$0xff]
  %v2010 = vld [vmem:[%s1997 + $0x60] sm:$0xff]
  %v2011 = vld [vmem:[%s1997 + $0x68] sm:$0xff]
  %v2012 = vld [vmem:[%s1997 + $0x70] sm:$0xff]
  %v2013 = vld [vmem:[%s1997 + $0x78] sm:$0xff]
  %v2014 = vld [vmem:[%s1997 + $0x80] sm:$0xff]
  %v2015 = vld [vmem:[%s1997 + $0x88] sm:$0xff]
  %v2016 = vsel %vm259, %v1978, 0
  %v2018 = vsel %vm259, %v1982, 0
  %v2020 = vsel %vm259, %v1988, 0
  %v2022 = vsel %vm259, %v1992, 0
  %2024 = vmatprep.subr.mxu0 0.0
  %v2025 = vand.u32 %v1998, 4294901760
  %2026 = vmatpush1.msra.mxu0 %v2025
  %2027 = vmatprep.subr.mxu0 0.0
  %v2028 = vand.u32 %v1999, 4294901760
  %2029 = vmatpush1.msra.mxu0 %v2028
  %2030 = vmatprep.subr.mxu0 0.0
  %v2031 = vand.u32 %v2000, 4294901760
  %2032 = vmatpush1.msra.mxu0 %v2031
  %2033 = vmatprep.subr.mxu0 0.0
  %v2034 = vand.u32 %v2001, 4294901760
  %2035 = vmatpush1.msra.mxu0 %v2034
  %2036 = vmatprep.subr.mxu0 0.0
  %v2037 = vand.u32 %v2002, 4294901760
  %2038 = vmatpush1.msra.mxu0 %v2037
  %2039 = vmatprep.subr.mxu0 0.0
  %v2040 = vand.u32 %v2003, 4294901760
  %2041 = vmatpush1.msra.mxu0 %v2040
  %2042 = vmatprep.subr.mxu0 0.0
  %v2043 = vand.u32 %v2004, 4294901760
  %2044 = vmatpush1.msra.mxu0 %v2043
  %2045 = vmatprep.subr.mxu0 0.0
  %v2046 = vand.u32 %v2005, 4294901760
  %2047 = vmatpush1.msra.mxu0 %v2046
  %2048 = vmatprep.subr.mxu0 0.0
  %v2049 = vand.u32 %v2006, 4294901760
  %2050 = vmatpush1.msra.mxu0 %v2049
  %2051 = vmatprep.subr.mxu0 0.0
  %v2052 = vand.u32 %v2007, 4294901760
  %2053 = vmatpush1.msra.mxu0 %v2052
  %2054 = vmatprep.subr.mxu0 0.0
  %v2055 = vand.u32 %v2008, 4294901760
  %2056 = vmatpush1.msra.mxu0 %v2055
  %2057 = vmatprep.subr.mxu0 0.0
  %v2058 = vand.u32 %v2009, 4294901760
  %2059 = vmatpush1.msra.mxu0 %v2058
  %2060 = vmatprep.subr.mxu0 0.0
  %v2061 = vand.u32 %v2010, 4294901760
  %2062 = vmatpush1.msra.mxu0 %v2061
  %2063 = vmatprep.subr.mxu0 0.0
  %v2064 = vand.u32 %v2011, 4294901760
  %2065 = vmatpush1.msra.mxu0 %v2064
  %2066 = vmatprep.subr.mxu0 0.0
  %v2067 = vand.u32 %v2012, 4294901760
  %2068 = vmatpush1.msra.mxu0 %v2067
  %2069 = vmatprep.subr.mxu0 0.0
  %v2070 = vand.u32 %v2013, 4294901760
  %2071 = vmatpush1.msra.mxu0 %v2070
  %2072 = vmatprep.subr.mxu0 0.0
  %v2073 = vand.u32 %v2014, 4294901760
  %2074 = vmatpush1.msra.mxu0 %v2073
  %2075 = vmatprep.subr.mxu0 0.0
  %v2076 = vand.u32 %v2015, 4294901760
  %2077 = vmatpush1.msra.mxu0 %v2076
  %2078 = vmatprep.subr.mxu0 0.0
  %2079 = vmatpush1.msra.mxu0 0.0
  %2080 = vmatprep.subr.mxu0 0.0
  %2081 = vmatpush1.msra.mxu0 0.0
  %2082 = vmatprep.subr.mxu0 0.0
  %2083 = vmatpush1.msra.mxu0 0.0
  %2084 = vmatprep.subr.mxu0 0.0
  %2085 = vmatpush1.msra.mxu0 0.0
  %2086 = vmatprep.subr.mxu0 0.0
  %2087 = vmatpush1.msra.mxu0 0.0
  %2088 = vmatprep.subr.mxu0 0.0
  %2089 = vmatpush1.msra.mxu0 0.0
  %2090 = vmatprep.subr.mxu0 0.0
  %2091 = vmatpush1.msra.mxu0 0.0
  %2092 = vmatprep.subr.mxu0 0.0
  %2093 = vmatpush1.msra.mxu0 0.0
  %2094 = vmatprep.subr.mxu0 0.0
  %2095 = vmatpush1.msra.mxu0 0.0
  %2096 = vmatprep.subr.mxu0 0.0
  %2097 = vmatpush1.msra.mxu0 0.0
  %2098 = vmatprep.subr.mxu0 0.0
  %2099 = vmatpush1.msra.mxu0 0.0
  %2100 = vmatprep.subr.mxu0 0.0
  %2101 = vmatpush1.msra.mxu0 0.0
  %2102 = vmatprep.subr.mxu0 0.0
  %2103 = vmatpush1.msra.mxu0 0.0
  %2104 = vmatprep.subr.mxu0 0.0
  %2105 = vmatpush1.msra.mxu0 0.0
  %v2106 = vand.u32 %v2016, 4294901760
  %v2107 = vsub.f32 %v2016, %v2106
  %v2108 = vand.u32 %v2107, 4294901760
  %v2109 = vsub.f32 %v2107, %v2108
  %v2110 = vand.u32 %v2109, 4294901760
  %2111 = vmatprep.mubr.f32.mxu0 %v2110
  %v2112 = vand.u32 %v1975, 4294901760
  %v2113 = vsub.f32 %v1975, %v2112
  %v2114 = vand.u32 %v2113, 4294901760
  %v2115 = vsub.f32 %v2113, %v2114
  %v2116 = vand.u32 %v2115, 4294901760
  %2117 = vmatmul.mubr.f32.gmra.mrb[0].mxu0 %v2116
  %v2118 = vpop.f32.mrb[0].mxu0
  %v2119 = vadd.f32 0.0, %v2118
  %v2120 = vpop.f32.mrb[0].mxu0
  %v2121 = vand.u32 %v2018, 4294901760
  %v2122 = vsub.f32 %v2018, %v2121
  %v2123 = vand.u32 %v2122, 4294901760
  %v2124 = vsub.f32 %v2122, %v2123
  %v2125 = vand.u32 %v2124, 4294901760
  %2126 = vmatprep.mubr.f32.mxu0 %v2125
  %v2127 = vand.u32 %v1980, 4294901760
  %v2128 = vsub.f32 %v1980, %v2127
  %v2129 = vand.u32 %v2128, 4294901760
  %v2130 = vsub.f32 %v2128, %v2129
  %v2131 = vand.u32 %v2130, 4294901760
  %2132 = vmatmul.mubr.f32.gmra.mrb[0].mxu0 %v2131
  %v2133 = vpop.f32.mrb[0].mxu0
  %v2134 = vadd.f32 0.0, %v2133
  %v2135 = vpop.f32.mrb[0].mxu0
  %v2136 = vand.u32 %v2020, 4294901760
  %v2137 = vsub.f32 %v2020, %v2136
  %v2138 = vand.u32 %v2137, 4294901760
  %v2139 = vsub.f32 %v2137, %v2138
  %v2140 = vand.u32 %v2139, 4294901760
  %2141 = vmatprep.mubr.f32.mxu0 %v2140
  %v2142 = vand.u32 %v1985, 4294901760
  %v2143 = vsub.f32 %v1985, %v2142
  %v2144 = vand.u32 %v2143, 4294901760
  %v2145 = vsub.f32 %v2143, %v2144
  %v2146 = vand.u32 %v2145, 4294901760
  %2147 = vmatmul.mubr.f32.gmra.mrb[0].mxu0 %v2146
  %v2148 = vpop.f32.mrb[0].mxu0
  %v2149 = vadd.f32 0.0, %v2148
  %v2150 = vpop.f32.mrb[0].mxu0
  %v2151 = vand.u32 %v2022, 4294901760
  %v2152 = vsub.f32 %v2022, %v2151
  %v2153 = vand.u32 %v2152, 4294901760
  %v2154 = vsub.f32 %v2152, %v2153
  %v2155 = vand.u32 %v2154, 4294901760
  %2156 = vmatprep.mubr.f32.mxu0 %v2155
  %v2157 = vand.u32 %v1990, 4294901760
  %v2158 = vsub.f32 %v1990, %v2157
  %v2159 = vand.u32 %v2158, 4294901760
  %v2160 = vsub.f32 %v2158, %v2159
  %v2161 = vand.u32 %v2160, 4294901760
  %2162 = vmatmul.mubr.f32.gmra.mrb[0].mxu0 %v2161
  %v2163 = vpop.f32.mrb[0].mxu0
  %v2164 = vadd.f32 0.0, %v2163
  %v2165 = vpop.f32.mrb[0].mxu0
  %2166 = vdwg.mxu0
  %2167 = vmatprep.subr.mxu0 0.0
  %v2168 = vand.u32 %v1998, 4294901760
  %v2169 = vsub.f32 %v1998, %v2168
  %v2170 = vand.u32 %v2169, 4294901760
  %v2171 = vsub.f32 %v2169, %v2170
  %v2172 = vand.u32 %v2171, 4294901760
  %2173 = vmatpush1.msra.mxu0 %v2172
  %2174 = vmatprep.subr.mxu0 0.0
  %v2175 = vand.u32 %v1999, 4294901760
  %v2176 = vsub.f32 %v1999, %v2175
  %v2177 = vand.u32 %v2176, 4294901760
  %v2178 = vsub.f32 %v2176, %v2177
  %v2179 = vand.u32 %v2178, 4294901760
  %2180 = vmatpush1.msra.mxu0 %v2179
  %2181 = vmatprep.subr.mxu0 0.0
  %v2182 = vand.u32 %v2000, 4294901760
  %v2183 = vsub.f32 %v2000, %v2182
  %v2184 = vand.u32 %v2183, 4294901760
  %v2185 = vsub.f32 %v2183, %v2184
  %v2186 = vand.u32 %v2185, 4294901760
  %2187 = vmatpush1.msra.mxu0 %v2186
  %2188 = vmatprep.subr.mxu0 0.0
  %v2189 = vand.u32 %v2001, 4294901760
  %v2190 = vsub.f32 %v2001, %v2189
  %v2191 = vand.u32 %v2190, 4294901760
  %v2192 = vsub.f32 %v2190, %v2191
  %v2193 = vand.u32 %v2192, 4294901760
  %2194 = vmatpush1.msra.mxu0 %v2193
  %2195 = vmatprep.subr.mxu0 0.0
  %v2196 = vand.u32 %v2002, 4294901760
  %v2197 = vsub.f32 %v2002, %v2196
  %v2198 = vand.u32 %v2197, 4294901760
  %v2199 = vsub.f32 %v2197, %v2198
  %v2200 = vand.u32 %v2199, 4294901760
  %2201 = vmatpush1.msra.mxu0 %v2200
  %2202 = vmatprep.subr.mxu0 0.0
  %v2203 = vand.u32 %v2003, 4294901760
  %v2204 = vsub.f32 %v2003, %v2203
  %v2205 = vand.u32 %v2204, 4294901760
  %v2206 = vsub.f32 %v2204, %v2205
  %v2207 = vand.u32 %v2206, 4294901760
  %2208 = vmatpush1.msra.mxu0 %v2207
  %2209 = vmatprep.subr.mxu0 0.0
  %v2210 = vand.u32 %v2004, 4294901760
  %v2211 = vsub.f32 %v2004, %v2210
  %v2212 = vand.u32 %v2211, 4294901760
  %v2213 = vsub.f32 %v2211, %v2212
  %v2214 = vand.u32 %v2213, 4294901760
  %2215 = vmatpush1.msra.mxu0 %v2214
  %2216 = vmatprep.subr.mxu0 0.0
  %v2217 = vand.u32 %v2005, 4294901760
  %v2218 = vsub.f32 %v2005, %v2217
  %v2219 = vand.u32 %v2218, 4294901760
  %v2220 = vsub.f32 %v2218, %v2219
  %v2221 = vand.u32 %v2220, 4294901760
  %2222 = vmatpush1.msra.mxu0 %v2221
  %2223 = vmatprep.subr.mxu0 0.0
  %v2224 = vand.u32 %v2006, 4294901760
  %v2225 = vsub.f32 %v2006, %v2224
  %v2226 = vand.u32 %v2225, 4294901760
  %v2227 = vsub.f32 %v2225, %v2226
  %v2228 = vand.u32 %v2227, 4294901760
  %2229 = vmatpush1.msra.mxu0 %v2228
  %2230 = vmatprep.subr.mxu0 0.0
  %v2231 = vand.u32 %v2007, 4294901760
  %v2232 = vsub.f32 %v2007, %v2231
  %v2233 = vand.u32 %v2232, 4294901760
  %v2234 = vsub.f32 %v2232, %v2233
  %v2235 = vand.u32 %v2234, 4294901760
  %2236 = vmatpush1.msra.mxu0 %v2235
  %2237 = vmatprep.subr.mxu0 0.0
  %v2238 = vand.u32 %v2008, 4294901760
  %v2239 = vsub.f32 %v2008, %v2238
  %v2240 = vand.u32 %v2239, 4294901760
  %v2241 = vsub.f32 %v2239, %v2240
  %v2242 = vand.u32 %v2241, 4294901760
  %2243 = vmatpush1.msra.mxu0 %v2242
  %2244 = vmatprep.subr.mxu0 0.0
  %v2245 = vand.u32 %v2009, 4294901760
  %v2246 = vsub.f32 %v2009, %v2245
  %v2247 = vand.u32 %v2246, 4294901760
  %v2248 = vsub.f32 %v2246, %v2247
  %v2249 = vand.u32 %v2248, 4294901760
  %2250 = vmatpush1.msra.mxu0 %v2249
  %2251 = vmatprep.subr.mxu0 0.0
  %v2252 = vand.u32 %v2010, 4294901760
  %v2253 = vsub.f32 %v2010, %v2252
  %v2254 = vand.u32 %v2253, 4294901760
  %v2255 = vsub.f32 %v2253, %v2254
  %v2256 = vand.u32 %v2255, 4294901760
  %2257 = vmatpush1.msra.mxu0 %v2256
  %2258 = vmatprep.subr.mxu0 0.0
  %v2259 = vand.u32 %v2011, 4294901760
  %v2260 = vsub.f32 %v2011, %v2259
  %v2261 = vand.u32 %v2260, 4294901760
  %v2262 = vsub.f32 %v2260, %v2261
  %v2263 = vand.u32 %v2262, 4294901760
  %2264 = vmatpush1.msra.mxu0 %v2263
  %2265 = vmatprep.subr.mxu0 0.0
  %v2266 = vand.u32 %v2012, 4294901760
  %v2267 = vsub.f32 %v2012, %v2266
  %v2268 = vand.u32 %v2267, 4294901760
  %v2269 = vsub.f32 %v2267, %v2268
  %v2270 = vand.u32 %v2269, 4294901760
  %2271 = vmatpush1.msra.mxu0 %v2270
  %2272 = vmatprep.subr.mxu0 0.0
  %v2273 = vand.u32 %v2013, 4294901760
  %v2274 = vsub.f32 %v2013, %v2273
  %v2275 = vand.u32 %v2274, 4294901760
  %v2276 = vsub.f32 %v2274, %v2275
  %v2277 = vand.u32 %v2276, 4294901760
  %2278 = vmatpush1.msra.mxu0 %v2277
  %2279 = vmatprep.subr.mxu0 0.0
  %v2280 = vand.u32 %v2014, 4294901760
  %v2281 = vsub.f32 %v2014, %v2280
  %v2282 = vand.u32 %v2281, 4294901760
  %v2283 = vsub.f32 %v2281, %v2282
  %v2284 = vand.u32 %v2283, 4294901760
  %2285 = vmatpush1.msra.mxu0 %v2284
  %2286 = vmatprep.subr.mxu0 0.0
  %v2287 = vand.u32 %v2015, 4294901760
  %v2288 = vsub.f32 %v2015, %v2287
  %v2289 = vand.u32 %v2288, 4294901760
  %v2290 = vsub.f32 %v2288, %v2289
  %v2291 = vand.u32 %v2290, 4294901760
  %2292 = vmatpush1.msra.mxu0 %v2291
  %2293 = vmatprep.subr.mxu0 0.0
  %2294 = vmatpush1.msra.mxu0 0.0
  %2295 = vmatprep.subr.mxu0 0.0
  %2296 = vmatpush1.msra.mxu0 0.0
  %2297 = vmatprep.subr.mxu0 0.0
  %2298 = vmatpush1.msra.mxu0 0.0
  %2299 = vmatprep.subr.mxu0 0.0
  %2300 = vmatpush1.msra.mxu0 0.0
  %2301 = vmatprep.subr.mxu0 0.0
  %2302 = vmatpush1.msra.mxu0 0.0
  %2303 = vmatprep.subr.mxu0 0.0
  %2304 = vmatpush1.msra.mxu0 0.0
  %2305 = vmatprep.subr.mxu0 0.0
  %2306 = vmatpush1.msra.mxu0 0.0
  %2307 = vmatprep.subr.mxu0 0.0
  %2308 = vmatpush1.msra.mxu0 0.0
  %2309 = vmatprep.subr.mxu0 0.0
  %2310 = vmatpush1.msra.mxu0 0.0
  %2311 = vmatprep.subr.mxu0 0.0
  %2312 = vmatpush1.msra.mxu0 0.0
  %2313 = vmatprep.subr.mxu0 0.0
  %2314 = vmatpush1.msra.mxu0 0.0
  %2315 = vmatprep.subr.mxu0 0.0
  %2316 = vmatpush1.msra.mxu0 0.0
  %2317 = vmatprep.subr.mxu0 0.0
  %2318 = vmatpush1.msra.mxu0 0.0
  %2319 = vmatprep.subr.mxu0 0.0
  %2320 = vmatpush1.msra.mxu0 0.0
  %v2321 = vand.u32 %v2016, 4294901760
  %2322 = vmatprep.mubr.f32.mxu0 %v2321
  %v2323 = vand.u32 %v1975, 4294901760
  %2324 = vmatmul.mubr.f32.gmra.mrb[0].mxu0 %v2323
  %v2325 = vpop.f32.mrb[0].mxu0
  %v2326 = vadd.f32 %v2119, %v2325
  %v2327 = vpop.f32.mrb[0].mxu0
  %v2328 = vand.u32 %v2018, 4294901760
  %2329 = vmatprep.mubr.f32.mxu0 %v2328
  %v2330 = vand.u32 %v1980, 4294901760
  %2331 = vmatmul.mubr.f32.gmra.mrb[0].mxu0 %v2330
  %v2332 = vpop.f32.mrb[0].mxu0
  %v2333 = vadd.f32 %v2134, %v2332
  %v2334 = vpop.f32.mrb[0].mxu0
  %v2335 = vand.u32 %v2020, 4294901760
  %2336 = vmatprep.mubr.f32.mxu0 %v2335
  %v2337 = vand.u32 %v1985, 4294901760
  %2338 = vmatmul.mubr.f32.gmra.mrb[0].mxu0 %v2337
  %v2339 = vpop.f32.mrb[0].mxu0
  %v2340 = vadd.f32 %v2149, %v2339
  %v2341 = vpop.f32.mrb[0].mxu0
  %v2342 = vand.u32 %v2022, 4294901760
  %2343 = vmatprep.mubr.f32.mxu0 %v2342
  %v2344 = vand.u32 %v1990, 4294901760
  %2345 = vmatmul.mubr.f32.gmra.mrb[0].mxu0 %v2344
  %v2346 = vpop.f32.mrb[0].mxu0
  %v2347 = vadd.f32 %v2164, %v2346
  %v2348 = vpop.f32.mrb[0].mxu0
  %2349 = vdwg.mxu0
  %2350 = vmatprep.subr.mxu0 0.0
  %v2351 = vand.u32 %v1998, 4294901760
  %v2352 = vsub.f32 %v1998, %v2351
  %2353 = vmatpush1.msra.mxu0 %v2352
  %2354 = vmatprep.subr.mxu0 0.0
  %v2355 = vand.u32 %v1999, 4294901760
  %v2356 = vsub.f32 %v1999, %v2355
  %2357 = vmatpush1.msra.mxu0 %v2356
  %2358 = vmatprep.subr.mxu0 0.0
  %v2359 = vand.u32 %v2000, 4294901760
  %v2360 = vsub.f32 %v2000, %v2359
  %2361 = vmatpush1.msra.mxu0 %v2360
  %2362 = vmatprep.subr.mxu0 0.0
  %v2363 = vand.u32 %v2001, 4294901760
  %v2364 = vsub.f32 %v2001, %v2363
  %2365 = vmatpush1.msra.mxu0 %v2364
  %2366 = vmatprep.subr.mxu0 0.0
  %v2367 = vand.u32 %v2002, 4294901760
  %v2368 = vsub.f32 %v2002, %v2367
  %2369 = vmatpush1.msra.mxu0 %v2368
  %2370 = vmatprep.subr.mxu0 0.0
  %v2371 = vand.u32 %v2003, 4294901760
  %v2372 = vsub.f32 %v2003, %v2371
  %2373 = vmatpush1.msra.mxu0 %v2372
  %2374 = vmatprep.subr.mxu0 0.0
  %v2375 = vand.u32 %v2004, 4294901760
  %v2376 = vsub.f32 %v2004, %v2375
  %2377 = vmatpush1.msra.mxu0 %v2376
  %2378 = vmatprep.subr.mxu0 0.0
  %v2379 = vand.u32 %v2005, 4294901760
  %v2380 = vsub.f32 %v2005, %v2379
  %2381 = vmatpush1.msra.mxu0 %v2380
  %2382 = vmatprep.subr.mxu0 0.0
  %v2383 = vand.u32 %v2006, 4294901760
  %v2384 = vsub.f32 %v2006, %v2383
  %2385 = vmatpush1.msra.mxu0 %v2384
  %2386 = vmatprep.subr.mxu0 0.0
  %v2387 = vand.u32 %v2007, 4294901760
  %v2388 = vsub.f32 %v2007, %v2387
  %2389 = vmatpush1.msra.mxu0 %v2388
  %2390 = vmatprep.subr.mxu0 0.0
  %v2391 = vand.u32 %v2008, 4294901760
  %v2392 = vsub.f32 %v2008, %v2391
  %2393 = vmatpush1.msra.mxu0 %v2392
  %2394 = vmatprep.subr.mxu0 0.0
  %v2395 = vand.u32 %v2009, 4294901760
  %v2396 = vsub.f32 %v2009, %v2395
  %2397 = vmatpush1.msra.mxu0 %v2396
  %2398 = vmatprep.subr.mxu0 0.0
  %v2399 = vand.u32 %v2010, 4294901760
  %v2400 = vsub.f32 %v2010, %v2399
  %2401 = vmatpush1.msra.mxu0 %v2400
  %2402 = vmatprep.subr.mxu0 0.0
  %v2403 = vand.u32 %v2011, 4294901760
  %v2404 = vsub.f32 %v2011, %v2403
  %2405 = vmatpush1.msra.mxu0 %v2404
  %2406 = vmatprep.subr.mxu0 0.0
  %v2407 = vand.u32 %v2012, 4294901760
  %v2408 = vsub.f32 %v2012, %v2407
  %2409 = vmatpush1.msra.mxu0 %v2408
  %2410 = vmatprep.subr.mxu0 0.0
  %v2411 = vand.u32 %v2013, 4294901760
  %v2412 = vsub.f32 %v2013, %v2411
  %2413 = vmatpush1.msra.mxu0 %v2412
  %2414 = vmatprep.subr.mxu0 0.0
  %v2415 = vand.u32 %v2014, 4294901760
  %v2416 = vsub.f32 %v2014, %v2415
  %2417 = vmatpush1.msra.mxu0 %v2416
  %2418 = vmatprep.subr.mxu0 0.0
  %v2419 = vand.u32 %v2015, 4294901760
  %v2420 = vsub.f32 %v2015, %v2419
  %2421 = vmatpush1.msra.mxu0 %v2420
  %2422 = vmatprep.subr.mxu0 0.0
  %2423 = vmatpush1.msra.mxu0 0.0
  %2424 = vmatprep.subr.mxu0 0.0
  %2425 = vmatpush1.msra.mxu0 0.0
  %2426 = vmatprep.subr.mxu0 0.0
  %2427 = vmatpush1.msra.mxu0 0.0
  %2428 = vmatprep.subr.mxu0 0.0
  %2429 = vmatpush1.msra.mxu0 0.0
  %2430 = vmatprep.subr.mxu0 0.0
  %2431 = vmatpush1.msra.mxu0 0.0
  %2432 = vmatprep.subr.mxu0 0.0
  %2433 = vmatpush1.msra.mxu0 0.0
  %2434 = vmatprep.subr.mxu0 0.0
  %2435 = vmatpush1.msra.mxu0 0.0
  %2436 = vmatprep.subr.mxu0 0.0
  %2437 = vmatpush1.msra.mxu0 0.0
  %2438 = vmatprep.subr.mxu0 0.0
  %2439 = vmatpush1.msra.mxu0 0.0
  %2440 = vmatprep.subr.mxu0 0.0
  %2441 = vmatpush1.msra.mxu0 0.0
  %2442 = vmatprep.subr.mxu0 0.0
  %2443 = vmatpush1.msra.mxu0 0.0
  %2444 = vmatprep.subr.mxu0 0.0
  %2445 = vmatpush1.msra.mxu0 0.0
  %2446 = vmatprep.subr.mxu0 0.0
  %2447 = vmatpush1.msra.mxu0 0.0
  %2448 = vmatprep.subr.mxu0 0.0
  %2449 = vmatpush1.msra.mxu0 0.0
  %v2450 = vand.u32 %v2016, 4294901760
  %v2451 = vsub.f32 %v2016, %v2450
  %2452 = vmatprep.mubr.f32.mxu0 %v2451
  %v2453 = vand.u32 %v1975, 4294901760
  %v2454 = vsub.f32 %v1975, %v2453
  %2455 = vmatmul.mubr.f32.gmra.mrb[0].mxu0 %v2454
  %v2456 = vpop.f32.mrb[0].mxu0
  %v2457 = vadd.f32 %v2326, %v2456
  %v2458 = vpop.f32.mrb[0].mxu0
  %v2459 = vand.u32 %v2018, 4294901760
  %v2460 = vsub.f32 %v2018, %v2459
  %2461 = vmatprep.mubr.f32.mxu0 %v2460
  %v2462 = vand.u32 %v1980, 4294901760
  %v2463 = vsub.f32 %v1980, %v2462
  %2464 = vmatmul.mubr.f32.gmra.mrb[0].mxu0 %v2463
  %v2465 = vpop.f32.mrb[0].mxu0
  %v2466 = vadd.f32 %v2333, %v2465
  %v2467 = vpop.f32.mrb[0].mxu0
  %v2468 = vand.u32 %v2020, 4294901760
  %v2469 = vsub.f32 %v2020, %v2468
  %2470 = vmatprep.mubr.f32.mxu0 %v2469
  %v2471 = vand.u32 %v1985, 4294901760
  %v2472 = vsub.f32 %v1985, %v2471
  %2473 = vmatmul.mubr.f32.gmra.mrb[0].mxu0 %v2472
  %v2474 = vpop.f32.mrb[0].mxu0
  %v2475 = vadd.f32 %v2340, %v2474
  %v2476 = vpop.f32.mrb[0].mxu0
  %v2477 = vand.u32 %v2022, 4294901760
  %v2478 = vsub.f32 %v2022, %v2477
  %2479 = vmatprep.mubr.f32.mxu0 %v2478
  %v2480 = vand.u32 %v1990, 4294901760
  %v2481 = vsub.f32 %v1990, %v2480
  %2482 = vmatmul.mubr.f32.gmra.mrb[0].mxu0 %v2481
  %v2483 = vpop.f32.mrb[0].mxu0
  %v2484 = vadd.f32 %v2347, %v2483
  %v2485 = vpop.f32.mrb[0].mxu0
  %2486 = vdwg.mxu0
  %2487 = vmatprep.subr.mxu0 0.0
  %v2488 = vand.u32 %v1998, 4294901760
  %2489 = vmatpush1.msra.mxu0 %v2488
  %2490 = vmatprep.subr.mxu0 0.0
  %v2491 = vand.u32 %v1999, 4294901760
  %2492 = vmatpush1.msra.mxu0 %v2491
  %2493 = vmatprep.subr.mxu0 0.0
  %v2494 = vand.u32 %v2000, 4294901760
  %2495 = vmatpush1.msra.mxu0 %v2494
  %2496 = vmatprep.subr.mxu0 0.0
  %v2497 = vand.u32 %v2001, 4294901760
  %2498 = vmatpush1.msra.mxu0 %v2497
  %2499 = vmatprep.subr.mxu0 0.0
  %v2500 = vand.u32 %v2002, 4294901760
  %2501 = vmatpush1.msra.mxu0 %v2500
  %2502 = vmatprep.subr.mxu0 0.0
  %v2503 = vand.u32 %v2003, 4294901760
  %2504 = vmatpush1.msra.mxu0 %v2503
  %2505 = vmatprep.subr.mxu0 0.0
  %v2506 = vand.u32 %v2004, 4294901760
  %2507 = vmatpush1.msra.mxu0 %v2506
  %2508 = vmatprep.subr.mxu0 0.0
  %v2509 = vand.u32 %v2005, 4294901760
  %2510 = vmatpush1.msra.mxu0 %v2509
  %2511 = vmatprep.subr.mxu0 0.0
  %v2512 = vand.u32 %v2006, 4294901760
  %2513 = vmatpush1.msra.mxu0 %v2512
  %2514 = vmatprep.subr.mxu0 0.0
  %v2515 = vand.u32 %v2007, 4294901760
  %2516 = vmatpush1.msra.mxu0 %v2515
  %2517 = vmatprep.subr.mxu0 0.0
  %v2518 = vand.u32 %v2008, 4294901760
  %2519 = vmatpush1.msra.mxu0 %v2518
  %2520 = vmatprep.subr.mxu0 0.0
  %v2521 = vand.u32 %v2009, 4294901760
  %2522 = vmatpush1.msra.mxu0 %v2521
  %2523 = vmatprep.subr.mxu0 0.0
  %v2524 = vand.u32 %v2010, 4294901760
  %2525 = vmatpush1.msra.mxu0 %v2524
  %2526 = vmatprep.subr.mxu0 0.0
  %v2527 = vand.u32 %v2011, 4294901760
  %2528 = vmatpush1.msra.mxu0 %v2527
  %2529 = vmatprep.subr.mxu0 0.0
  %v2530 = vand.u32 %v2012, 4294901760
  %2531 = vmatpush1.msra.mxu0 %v2530
  %2532 = vmatprep.subr.mxu0 0.0
  %v2533 = vand.u32 %v2013, 4294901760
  %2534 = vmatpush1.msra.mxu0 %v2533
  %2535 = vmatprep.subr.mxu0 0.0
  %v2536 = vand.u32 %v2014, 4294901760
  %2537 = vmatpush1.msra.mxu0 %v2536
  %2538 = vmatprep.subr.mxu0 0.0
  %v2539 = vand.u32 %v2015, 4294901760
  %2540 = vmatpush1.msra.mxu0 %v2539
  %2541 = vmatprep.subr.mxu0 0.0
  %2542 = vmatpush1.msra.mxu0 0.0
  %2543 = vmatprep.subr.mxu0 0.0
  %2544 = vmatpush1.msra.mxu0 0.0
  %2545 = vmatprep.subr.mxu0 0.0
  %2546 = vmatpush1.msra.mxu0 0.0
  %2547 = vmatprep.subr.mxu0 0.0
  %2548 = vmatpush1.msra.mxu0 0.0
  %2549 = vmatprep.subr.mxu0 0.0
  %2550 = vmatpush1.msra.mxu0 0.0
  %2551 = vmatprep.subr.mxu0 0.0
  %2552 = vmatpush1.msra.mxu0 0.0
  %2553 = vmatprep.subr.mxu0 0.0
  %2554 = vmatpush1.msra.mxu0 0.0
  %2555 = vmatprep.subr.mxu0 0.0
  %2556 = vmatpush1.msra.mxu0 0.0
  %2557 = vmatprep.subr.mxu0 0.0
  %2558 = vmatpush1.msra.mxu0 0.0
  %2559 = vmatprep.subr.mxu0 0.0
  %2560 = vmatpush1.msra.mxu0 0.0
  %2561 = vmatprep.subr.mxu0 0.0
  %2562 = vmatpush1.msra.mxu0 0.0
  %2563 = vmatprep.subr.mxu0 0.0
  %2564 = vmatpush1.msra.mxu0 0.0
  %2565 = vmatprep.subr.mxu0 0.0
  %2566 = vmatpush1.msra.mxu0 0.0
  %2567 = vmatprep.subr.mxu0 0.0
  %2568 = vmatpush1.msra.mxu0 0.0
  %v2569 = vand.u32 %v2016, 4294901760
  %v2570 = vsub.f32 %v2016, %v2569
  %v2571 = vand.u32 %v2570, 4294901760
  %2572 = vmatprep.mubr.f32.mxu0 %v2571
  %v2573 = vand.u32 %v1975, 4294901760
  %v2574 = vsub.f32 %v1975, %v2573
  %v2575 = vand.u32 %v2574, 4294901760
  %2576 = vmatmul.mubr.f32.gmra.mrb[0].mxu0 %v2575
  %v2577 = vpop.f32.mrb[0].mxu0
  %v2578 = vadd.f32 %v2457, %v2577
  %v2579 = vpop.f32.mrb[0].mxu0
  %v2580 = vand.u32 %v2018, 4294901760
  %v2581 = vsub.f32 %v2018, %v2580
  %v2582 = vand.u32 %v2581, 4294901760
  %2583 = vmatprep.mubr.f32.mxu0 %v2582
  %v2584 = vand.u32 %v1980, 4294901760
  %v2585 = vsub.f32 %v1980, %v2584
  %v2586 = vand.u32 %v2585, 4294901760
  %2587 = vmatmul.mubr.f32.gmra.mrb[0].mxu0 %v2586
  %v2588 = vpop.f32.mrb[0].mxu0
  %v2589 = vadd.f32 %v2466, %v2588
  %v2590 = vpop.f32.mrb[0].mxu0
  %v2591 = vand.u32 %v2020, 4294901760
  %v2592 = vsub.f32 %v2020, %v2591
  %v2593 = vand.u32 %v2592, 4294901760
  %2594 = vmatprep.mubr.f32.mxu0 %v2593
  %v2595 = vand.u32 %v1985, 4294901760
  %v2596 = vsub.f32 %v1985, %v2595
  %v2597 = vand.u32 %v2596, 4294901760
  %2598 = vmatmul.mubr.f32.gmra.mrb[0].mxu0 %v2597
  %v2599 = vpop.f32.mrb[0].mxu0
  %v2600 = vadd.f32 %v2475, %v2599
  %v2601 = vpop.f32.mrb[0].mxu0
  %v2602 = vand.u32 %v2022, 4294901760
  %v2603 = vsub.f32 %v2022, %v2602
  %v2604 = vand.u32 %v2603, 4294901760
  %2605 = vmatprep.mubr.f32.mxu0 %v2604
  %v2606 = vand.u32 %v1990, 4294901760
  %v2607 = vsub.f32 %v1990, %v2606
  %v2608 = vand.u32 %v2607, 4294901760
  %2609 = vmatmul.mubr.f32.gmra.mrb[0].mxu0 %v2608
  %v2610 = vpop.f32.mrb[0].mxu0
  %v2611 = vadd.f32 %v2484, %v2610
  %v2612 = vpop.f32.mrb[0].mxu0
  %2613 = vdwg.mxu0
  %2614 = vmatprep.subr.mxu0 0.0
  %v2615 = vand.u32 %v1998, 4294901760
  %v2616 = vsub.f32 %v1998, %v2615
  %v2617 = vand.u32 %v2616, 4294901760
  %2618 = vmatpush1.msra.mxu0 %v2617
  %2619 = vmatprep.subr.mxu0 0.0
  %v2620 = vand.u32 %v1999, 4294901760
  %v2621 = vsub.f32 %v1999, %v2620
  %v2622 = vand.u32 %v2621, 4294901760
  %2623 = vmatpush1.msra.mxu0 %v2622
  %2624 = vmatprep.subr.mxu0 0.0
  %v2625 = vand.u32 %v2000, 4294901760
  %v2626 = vsub.f32 %v2000, %v2625
  %v2627 = vand.u32 %v2626, 4294901760
  %2628 = vmatpush1.msra.mxu0 %v2627
  %2629 = vmatprep.subr.mxu0 0.0
  %v2630 = vand.u32 %v2001, 4294901760
  %v2631 = vsub.f32 %v2001, %v2630
  %v2632 = vand.u32 %v2631, 4294901760
  %2633 = vmatpush1.msra.mxu0 %v2632
  %2634 = vmatprep.subr.mxu0 0.0
  %v2635 = vand.u32 %v2002, 4294901760
  %v2636 = vsub.f32 %v2002, %v2635
  %v2637 = vand.u32 %v2636, 4294901760
  %2638 = vmatpush1.msra.mxu0 %v2637
  %2639 = vmatprep.subr.mxu0 0.0
  %v2640 = vand.u32 %v2003, 4294901760
  %v2641 = vsub.f32 %v2003, %v2640
  %v2642 = vand.u32 %v2641, 4294901760
  %2643 = vmatpush1.msra.mxu0 %v2642
  %2644 = vmatprep.subr.mxu0 0.0
  %v2645 = vand.u32 %v2004, 4294901760
  %v2646 = vsub.f32 %v2004, %v2645
  %v2647 = vand.u32 %v2646, 4294901760
  %2648 = vmatpush1.msra.mxu0 %v2647
  %2649 = vmatprep.subr.mxu0 0.0
  %v2650 = vand.u32 %v2005, 4294901760
  %v2651 = vsub.f32 %v2005, %v2650
  %v2652 = vand.u32 %v2651, 4294901760
  %2653 = vmatpush1.msra.mxu0 %v2652
  %2654 = vmatprep.subr.mxu0 0.0
  %v2655 = vand.u32 %v2006, 4294901760
  %v2656 = vsub.f32 %v2006, %v2655
  %v2657 = vand.u32 %v2656, 4294901760
  %2658 = vmatpush1.msra.mxu0 %v2657
  %2659 = vmatprep.subr.mxu0 0.0
  %v2660 = vand.u32 %v2007, 4294901760
  %v2661 = vsub.f32 %v2007, %v2660
  %v2662 = vand.u32 %v2661, 4294901760
  %2663 = vmatpush1.msra.mxu0 %v2662
  %2664 = vmatprep.subr.mxu0 0.0
  %v2665 = vand.u32 %v2008, 4294901760
  %v2666 = vsub.f32 %v2008, %v2665
  %v2667 = vand.u32 %v2666, 4294901760
  %2668 = vmatpush1.msra.mxu0 %v2667
  %2669 = vmatprep.subr.mxu0 0.0
  %v2670 = vand.u32 %v2009, 4294901760
  %v2671 = vsub.f32 %v2009, %v2670
  %v2672 = vand.u32 %v2671, 4294901760
  %2673 = vmatpush1.msra.mxu0 %v2672
  %2674 = vmatprep.subr.mxu0 0.0
  %v2675 = vand.u32 %v2010, 4294901760
  %v2676 = vsub.f32 %v2010, %v2675
  %v2677 = vand.u32 %v2676, 4294901760
  %2678 = vmatpush1.msra.mxu0 %v2677
  %2679 = vmatprep.subr.mxu0 0.0
  %v2680 = vand.u32 %v2011, 4294901760
  %v2681 = vsub.f32 %v2011, %v2680
  %v2682 = vand.u32 %v2681, 4294901760
  %2683 = vmatpush1.msra.mxu0 %v2682
  %2684 = vmatprep.subr.mxu0 0.0
  %v2685 = vand.u32 %v2012, 4294901760
  %v2686 = vsub.f32 %v2012, %v2685
  %v2687 = vand.u32 %v2686, 4294901760
  %2688 = vmatpush1.msra.mxu0 %v2687
  %2689 = vmatprep.subr.mxu0 0.0
  %v2690 = vand.u32 %v2013, 4294901760
  %v2691 = vsub.f32 %v2013, %v2690
  %v2692 = vand.u32 %v2691, 4294901760
  %2693 = vmatpush1.msra.mxu0 %v2692
  %2694 = vmatprep.subr.mxu0 0.0
  %v2695 = vand.u32 %v2014, 4294901760
  %v2696 = vsub.f32 %v2014, %v2695
  %v2697 = vand.u32 %v2696, 4294901760
  %2698 = vmatpush1.msra.mxu0 %v2697
  %2699 = vmatprep.subr.mxu0 0.0
  %v2700 = vand.u32 %v2015, 4294901760
  %v2701 = vsub.f32 %v2015, %v2700
  %v2702 = vand.u32 %v2701, 4294901760
  %2703 = vmatpush1.msra.mxu0 %v2702
  %2704 = vmatprep.subr.mxu0 0.0
  %2705 = vmatpush1.msra.mxu0 0.0
  %2706 = vmatprep.subr.mxu0 0.0
  %2707 = vmatpush1.msra.mxu0 0.0
  %2708 = vmatprep.subr.mxu0 0.0
  %2709 = vmatpush1.msra.mxu0 0.0
  %2710 = vmatprep.subr.mxu0 0.0
  %2711 = vmatpush1.msra.mxu0 0.0
  %2712 = vmatprep.subr.mxu0 0.0
  %2713 = vmatpush1.msra.mxu0 0.0
  %2714 = vmatprep.subr.mxu0 0.0
  %2715 = vmatpush1.msra.mxu0 0.0
  %2716 = vmatprep.subr.mxu0 0.0
  %2717 = vmatpush1.msra.mxu0 0.0
  %2718 = vmatprep.subr.mxu0 0.0
  %2719 = vmatpush1.msra.mxu0 0.0
  %2720 = vmatprep.subr.mxu0 0.0
  %2721 = vmatpush1.msra.mxu0 0.0
  %2722 = vmatprep.subr.mxu0 0.0
  %2723 = vmatpush1.msra.mxu0 0.0
  %2724 = vmatprep.subr.mxu0 0.0
  %2725 = vmatpush1.msra.mxu0 0.0
  %2726 = vmatprep.subr.mxu0 0.0
  %2727 = vmatpush1.msra.mxu0 0.0
  %2728 = vmatprep.subr.mxu0 0.0
  %2729 = vmatpush1.msra.mxu0 0.0
  %2730 = vmatprep.subr.mxu0 0.0
  %2731 = vmatpush1.msra.mxu0 0.0
  %v2732 = vand.u32 %v2016, 4294901760
  %2733 = vmatprep.mubr.f32.mxu0 %v2732
  %v2734 = vand.u32 %v1975, 4294901760
  %2735 = vmatmul.mubr.f32.gmra.mrb[0].mxu0 %v2734
  %v2736 = vpop.f32.mrb[0].mxu0
  %v2737 = vadd.f32 %v2578, %v2736
  %v2738 = vpop.f32.mrb[0].mxu0
  %v2739 = vand.u32 %v2018, 4294901760
  %2740 = vmatprep.mubr.f32.mxu0 %v2739
  %v2741 = vand.u32 %v1980, 4294901760
  %2742 = vmatmul.mubr.f32.gmra.mrb[0].mxu0 %v2741
  %v2743 = vpop.f32.mrb[0].mxu0
  %v2744 = vadd.f32 %v2589, %v2743
  %v2745 = vpop.f32.mrb[0].mxu0
  %v2746 = vand.u32 %v2020, 4294901760
  %2747 = vmatprep.mubr.f32.mxu0 %v2746
  %v2748 = vand.u32 %v1985, 4294901760
  %2749 = vmatmul.mubr.f32.gmra.mrb[0].mxu0 %v2748
  %v2750 = vpop.f32.mrb[0].mxu0
  %v2751 = vadd.f32 %v2600, %v2750
  %v2752 = vpop.f32.mrb[0].mxu0
  %v2753 = vand.u32 %v2022, 4294901760
  %2754 = vmatprep.mubr.f32.mxu0 %v2753
  %v2755 = vand.u32 %v1990, 4294901760
  %2756 = vmatmul.mubr.f32.gmra.mrb[0].mxu0 %v2755
  %v2757 = vpop.f32.mrb[0].mxu0
  %v2758 = vadd.f32 %v2611, %v2757
  %v2759 = vpop.f32.mrb[0].mxu0
  %2760 = vdwg.mxu0
  %2761 = vmatprep.subr.mxu0 0.0
  %v2762 = vand.u32 %v1998, 4294901760
  %2763 = vmatpush1.msra.mxu0 %v2762
  %2764 = vmatprep.subr.mxu0 0.0
  %v2765 = vand.u32 %v1999, 4294901760
  %2766 = vmatpush1.msra.mxu0 %v2765
  %2767 = vmatprep.subr.mxu0 0.0
  %v2768 = vand.u32 %v2000, 4294901760
  %2769 = vmatpush1.msra.mxu0 %v2768
  %2770 = vmatprep.subr.mxu0 0.0
  %v2771 = vand.u32 %v2001, 4294901760
  %2772 = vmatpush1.msra.mxu0 %v2771
  %2773 = vmatprep.subr.mxu0 0.0
  %v2774 = vand.u32 %v2002, 4294901760
  %2775 = vmatpush1.msra.mxu0 %v2774
  %2776 = vmatprep.subr.mxu0 0.0
  %v2777 = vand.u32 %v2003, 4294901760
  %2778 = vmatpush1.msra.mxu0 %v2777
  %2779 = vmatprep.subr.mxu0 0.0
  %v2780 = vand.u32 %v2004, 4294901760
  %2781 = vmatpush1.msra.mxu0 %v2780
  %2782 = vmatprep.subr.mxu0 0.0
  %v2783 = vand.u32 %v2005, 4294901760
  %2784 = vmatpush1.msra.mxu0 %v2783
  %2785 = vmatprep.subr.mxu0 0.0
  %v2786 = vand.u32 %v2006, 4294901760
  %2787 = vmatpush1.msra.mxu0 %v2786
  %2788 = vmatprep.subr.mxu0 0.0
  %v2789 = vand.u32 %v2007, 4294901760
  %2790 = vmatpush1.msra.mxu0 %v2789
  %2791 = vmatprep.subr.mxu0 0.0
  %v2792 = vand.u32 %v2008, 4294901760
  %2793 = vmatpush1.msra.mxu0 %v2792
  %2794 = vmatprep.subr.mxu0 0.0
  %v2795 = vand.u32 %v2009, 4294901760
  %2796 = vmatpush1.msra.mxu0 %v2795
  %2797 = vmatprep.subr.mxu0 0.0
  %v2798 = vand.u32 %v2010, 4294901760
  %2799 = vmatpush1.msra.mxu0 %v2798
  %2800 = vmatprep.subr.mxu0 0.0
  %v2801 = vand.u32 %v2011, 4294901760
  %2802 = vmatpush1.msra.mxu0 %v2801
  %2803 = vmatprep.subr.mxu0 0.0
  %v2804 = vand.u32 %v2012, 4294901760
  %2805 = vmatpush1.msra.mxu0 %v2804
  %2806 = vmatprep.subr.mxu0 0.0
  %v2807 = vand.u32 %v2013, 4294901760
  %2808 = vmatpush1.msra.mxu0 %v2807
  %2809 = vmatprep.subr.mxu0 0.0
  %v2810 = vand.u32 %v2014, 4294901760
  %2811 = vmatpush1.msra.mxu0 %v2810
  %2812 = vmatprep.subr.mxu0 0.0
  %v2813 = vand.u32 %v2015, 4294901760
  %2814 = vmatpush1.msra.mxu0 %v2813
  %2815 = vmatprep.subr.mxu0 0.0
  %2816 = vmatpush1.msra.mxu0 0.0
  %2817 = vmatprep.subr.mxu0 0.0
  %2818 = vmatpush1.msra.mxu0 0.0
  %2819 = vmatprep.subr.mxu0 0.0
  %2820 = vmatpush1.msra.mxu0 0.0
  %2821 = vmatprep.subr.mxu0 0.0
  %2822 = vmatpush1.msra.mxu0 0.0
  %2823 = vmatprep.subr.mxu0 0.0
  %2824 = vmatpush1.msra.mxu0 0.0
  %2825 = vmatprep.subr.mxu0 0.0
  %2826 = vmatpush1.msra.mxu0 0.0
  %2827 = vmatprep.subr.mxu0 0.0
  %2828 = vmatpush1.msra.mxu0 0.0
  %2829 = vmatprep.subr.mxu0 0.0
  %2830 = vmatpush1.msra.mxu0 0.0
  %2831 = vmatprep.subr.mxu0 0.0
  %2832 = vmatpush1.msra.mxu0 0.0
  %2833 = vmatprep.subr.mxu0 0.0
  %2834 = vmatpush1.msra.mxu0 0.0
  %2835 = vmatprep.subr.mxu0 0.0
  %2836 = vmatpush1.msra.mxu0 0.0
  %2837 = vmatprep.subr.mxu0 0.0
  %2838 = vmatpush1.msra.mxu0 0.0
  %2839 = vmatprep.subr.mxu0 0.0
  %2840 = vmatpush1.msra.mxu0 0.0
  %2841 = vmatprep.subr.mxu0 0.0
  %2842 = vmatpush1.msra.mxu0 0.0
  %v2843 = vand.u32 %v2016, 4294901760
  %2844 = vmatprep.mubr.f32.mxu0 %v2843
  %v2845 = vand.u32 %v1975, 4294901760
  %2846 = vmatmul.mubr.f32.gmra.mrb[0].mxu0 %v2845
  %v2847 = vpop.f32.mrb[0].mxu0
  %v2848 = vadd.f32 %v2737, %v2847
  %v2849 = vpop.f32.mrb[0].mxu0
  %v2850 = vand.u32 %v2018, 4294901760
  %2851 = vmatprep.mubr.f32.mxu0 %v2850
  %v2852 = vand.u32 %v1980, 4294901760
  %2853 = vmatmul.mubr.f32.gmra.mrb[0].mxu0 %v2852
  %v2854 = vpop.f32.mrb[0].mxu0
  %v2855 = vadd.f32 %v2744, %v2854
  %v2856 = vpop.f32.mrb[0].mxu0
  %v2857 = vand.u32 %v2020, 4294901760
  %2858 = vmatprep.mubr.f32.mxu0 %v2857
  %v2859 = vand.u32 %v1985, 4294901760
  %2860 = vmatmul.mubr.f32.gmra.mrb[0].mxu0 %v2859
  %v2861 = vpop.f32.mrb[0].mxu0
  %v2862 = vadd.f32 %v2751, %v2861
  %v2863 = vpop.f32.mrb[0].mxu0
  %v2864 = vand.u32 %v2022, 4294901760
  %2865 = vmatprep.mubr.f32.mxu0 %v2864
  %v2866 = vand.u32 %v1990, 4294901760
  %2867 = vmatmul.mubr.f32.gmra.mrb[0].mxu0 %v2866
  %v2868 = vpop.f32.mrb[0].mxu0
  %v2869 = vadd.f32 %v2758, %v2868
  %v2870 = vpop.f32.mrb[0].mxu0
  %2871 = vdwg.mxu0
  %v2872 = vadd.f32 %v1948, %v2848
  %v2873 = vadd.f32 %v1955, %v2855
  %v2874 = vadd.f32 %v1962, %v2862
  %v2875 = vadd.f32 %v1969, %v2869
  %2876 = vst [vmem:[%s5] sm:$0xff] %v2872
  %2877 = vst [vmem:[%s5 + $0x8] sm:$0xff] %v2873
  %2878 = vst [vmem:[%s5 + $0x10] sm:$0xff] %v2874
  %2879 = vst [vmem:[%s5 + $0x18] sm:$0xff] %v2875
  %v2880 = vadd.f32 %v2872, %v2873
  %v2881 = vadd.f32 %v2880, %v2874
  %v2882 = vadd.f32 %v2881, %v2875
  %v2883 = vrot.slane %v2882, 4
  %v2884 = vadd.f32 %v2882, %v2883
  %v2885 = vrot.slane %v2884, 2
  %v2886 = vadd.f32 %v2884, %v2885
  %v2887 = vrot.slane %v2886, 1
  %v2888 = vadd.f32 %v2886, %v2887
  %2889 = vst [vmem:[%s6] sm:$0x1] %v2888
  %v2890 = vmul.f32 %v2872, %v2872
  %v2891 = vmul.f32 %v2873, %v2873
  %v2892 = vmul.f32 %v2874, %v2874
  %v2893 = vmul.f32 %v2875, %v2875
  %v2894 = vadd.f32 %v2890, %v2891
  %v2895 = vadd.f32 %v2894, %v2892
  %v2896 = vadd.f32 %v2895, %v2893
  %v2897 = vrot.slane %v2896, 4
  %v2898 = vadd.f32 %v2896, %v2897
  %v2899 = vrot.slane %v2898, 2
  %v2900 = vadd.f32 %v2898, %v2899
  %v2901 = vrot.slane %v2900, 1
  %v2902 = vadd.f32 %v2900, %v2901
  %2903 = vst [vmem:[%s7] sm:$0x1] %v2902
  // Predicated region
  $region22: #{double_conv.4} parent=0 // pred_check
    _
  $region23: #{double_conv.4} parent=0 // pred_check_branch
    %2905 = sbr.rel (0) target = $region25
  $region24: #{double_conv.4} parent=0 // pred_region
    _
  $region25: #{double_conv.4} parent=0 // pred_fallthru
    _
  // Predicated region
  $region26: #{double_conv.4} parent=0 // pred_check
    _
  $region27: #{double_conv.4} parent=0 // pred_check_branch
    %2907 = sbr.rel (0) target = $region29
  $region28: #{double_conv.4} parent=0 // pred_region
    _
  $region29: #{double_conv.4} parent=0 // pred_fallthru
    _
  // Predicated region
  $region30: #{double_conv.4} parent=0 // pred_check
    _
  $region31: #{double_conv.4} parent=0 // pred_check_branch
    %2909 = sbr.rel (0) target = $region33
  $region32: #{double_conv.4} parent=0 // pred_region
    _
  $region33: #{double_conv.4} parent=0 // pred_fallthru
    _
  // Predicated region
  $region34: #{double_conv.4} parent=0 // pred_check
    _
  $region35: #{double_conv.4} parent=0 // pred_check_branch
    %2911 = sbr.rel (0) target = $region37
  $region36: #{double_conv.4} parent=0 // pred_region
    _
  $region37: #{double_conv.4} parent=0 // pred_fallthru
    _
  // Predicated region
  $region38: #{double_conv.4} parent=0 // pred_check
    _
  $region39: #{double_conv.4} parent=0 // pred_check_branch
    %2913 = sbr.rel (0) target = $region41
  $region40: #{double_conv.4} parent=0 // pred_region
    _
  $region41: #{double_conv.4} parent=0 // pred_fallthru
    _
  // Predicated region
  $region42: #{double_conv.4} parent=0 // pred_check
    _
  $region43: #{double_conv.4} parent=0 // pred_check_branch
    %2915 = sbr.rel (0) target = $region45
  $region44: #{double_conv.4} parent=0 // pred_region
    _
  $region45: #{double_conv.4} parent=0 // pred_fallthru
    _

// kernel: double_conv.5
$region0: #{double_conv.5}
  #allocation0 [shape = 'u32[]', space=smem, size = 0x4, offset = 0x4, fixed_abs, tag = 'smem constant byte address 0x4 - core index']
  #allocation1 [shape = 'u32[144,128]{1,0:T(1,128)}', space=vmem, size = 0x12000, scoped, tag = 'internal scratch']
  %s0 = inlined_call_operand.vmem [shape: f32[2,16,128], index: 0, kind: input, shape index: {}]
  %s1 = inlined_call_operand.vmem [shape: f32[2,16,128], index: 1, kind: input, shape index: {}]
  %s2 = inlined_call_operand.vmem [shape: f32[1,128], index: 2, kind: input, shape index: {}]
  %s3 = inlined_call_operand.vmem [shape: f32[1,128], index: 3, kind: input, shape index: {}]
  %s4 = inlined_call_operand.vmem [shape: f32[1,128], index: 4, kind: input, shape index: {}]
  %s5 = inlined_call_operand.vmem [shape: f32[1,128], index: 5, kind: input, shape index: {}]
  %s6 = inlined_call_operand.vmem [shape: f32[2,16,128], index: 6, kind: output, shape index: {}]
  %s7 = sld [smem:[#allocation0]]
  $region34: #{double_conv.5} parent=0
    _
  %s9 = ssub.s32 1, %s7
  %s10 = scalar_select 0, %s9, %s7
  // Predicated region
  $region2: #{double_conv.5} parent=0 // pred_check
    _
  $region3: #{double_conv.5} parent=0 // pred_check_branch
    %12 = sbr.rel (0) target = $region5
  $region4: #{double_conv.5} parent=0 // pred_region
    _
  $region5: #{double_conv.5} parent=0 // pred_fallthru
    _
  // Predicated region
  $region6: #{double_conv.5} parent=0 // pred_check
    _
  $region7: #{double_conv.5} parent=0 // pred_check_branch
    %14 = sbr.rel (0) target = $region9
  $region8: #{double_conv.5} parent=0 // pred_region
    _
  $region9: #{double_conv.5} parent=0 // pred_fallthru
    _
  // Predicated region
  $region10: #{double_conv.5} parent=0 // pred_check
    _
  $region11: #{double_conv.5} parent=0 // pred_check_branch
    %16 = sbr.rel (0) target = $region13
  $region12: #{double_conv.5} parent=0 // pred_region
    _
  $region13: #{double_conv.5} parent=0 // pred_fallthru
    _
  // Predicated region
  $region14: #{double_conv.5} parent=0 // pred_check
    _
  $region15: #{double_conv.5} parent=0 // pred_check_branch
    %18 = sbr.rel (0) target = $region17
  $region16: #{double_conv.5} parent=0 // pred_region
    _
  $region17: #{double_conv.5} parent=0 // pred_fallthru
    _
  // Predicated region
  $region18: #{double_conv.5} parent=0 // pred_check
    _
  $region19: #{double_conv.5} parent=0 // pred_check_branch
    %20 = sbr.rel (0) target = $region21
  $region20: #{double_conv.5} parent=0 // pred_region
    _
  $region21: #{double_conv.5} parent=0 // pred_fallthru
    _
  // Predicated region
  $region22: #{double_conv.5} parent=0 // pred_check
    _
  $region23: #{double_conv.5} parent=0 // pred_check_branch
    %22 = sbr.rel (0) target = $region25
  $region24: #{double_conv.5} parent=0 // pred_region
    _
  $region25: #{double_conv.5} parent=0 // pred_fallthru
    _
  %v23 = vld [vmem:[%s0] sm:$0xff]
  %v24 = vld [vmem:[%s0 + $0x8] sm:$0xff]
  %v25 = vld [vmem:[%s0 + $0x10] sm:$0xff]
  %v26 = vld [vmem:[%s0 + $0x18] sm:$0xff]
  %v27 = vld [vmem:[%s2] sm:$0x1]
  %v29 = vlaneseq
  %v30 = vshrl.u32 %v29, 7
  %v31 = vsub.s32 0, %v30
  %v32 = vrot.slane %v27, %v31
  %v34 = vmul.f32 %v23, %v32
  %v35 = vmul.f32 %v24, %v32
  %v36 = vmul.f32 %v25, %v32
  %v37 = vmul.f32 %v26, %v32
  %v38 = vld [vmem:[%s3] sm:$0x1]
  %v40 = vlaneseq
  %v41 = vshrl.u32 %v40, 7
  %v42 = vsub.s32 0, %v41
  %v43 = vrot.slane %v38, %v42
  %v45 = vadd.f32 %v34, %v43
  %v46 = vadd.f32 %v35, %v43
  %v47 = vadd.f32 %v36, %v43
  %v48 = vadd.f32 %v37, %v43
  %v49 = vxor.u32 %v45, 2147483648
  %v50 = vxor.u32 %v46, 2147483648
  %v51 = vxor.u32 %v47, 2147483648
  %v52 = vxor.u32 %v48, 2147483648
  %v53 = vmul.f32 %v49, 1.442695
  %v54 = vpow.pop %v53
  %v55 = vmul.f32 %v50, 1.442695
  %v56 = vpow.pop %v55
  %v57 = vmul.f32 %v51, 1.442695
  %v58 = vpow.pop %v57
  %v59 = vmul.f32 %v52, 1.442695
  %v60 = vpow.pop %v59
  %v61 = vadd.f32 %v54, 1.0
  %v62 = vadd.f32 %v56, 1.0
  %v63 = vadd.f32 %v58, 1.0
  %v64 = vadd.f32 %v60, 1.0
  %v65 = vrcp.pop %v61
  %v66 = vmul.f32 1.0, %v65
  %v67 = vrcp.pop %v62
  %v68 = vmul.f32 1.0, %v67
  %v69 = vrcp.pop %v63
  %v70 = vmul.f32 1.0, %v69
  %v71 = vrcp.pop %v64
  %v72 = vmul.f32 1.0, %v71
  %v73 = vmul.f32 %v45, %v66
  %v74 = vmul.f32 %v46, %v68
  %v75 = vmul.f32 %v47, %v70
  %v76 = vmul.f32 %v48, %v72
  %v77 = vld [vmem:[%s1] sm:$0xff]
  %v78 = vld [vmem:[%s1 + $0x8] sm:$0xff]
  %v79 = vld [vmem:[%s1 + $0x10] sm:$0xff]
  %v80 = vld [vmem:[%s1 + $0x18] sm:$0xff]
  %v81 = vld [vmem:[%s4] sm:$0x1]
  %v83 = vlaneseq
  %v84 = vshrl.u32 %v83, 7
  %v85 = vsub.s32 0, %v84
  %v86 = vrot.slane %v81, %v85
  %v88 = vmul.f32 %v77, %v86
  %v89 = vmul.f32 %v78, %v86
  %v90 = vmul.f32 %v79, %v86
  %v91 = vmul.f32 %v80, %v86
  %v92 = vld [vmem:[%s5] sm:$0x1]
  %v94 = vlaneseq
  %v95 = vshrl.u32 %v94, 7
  %v96 = vsub.s32 0, %v95
  %v97 = vrot.slane %v92, %v96
  %v99 = vadd.f32 %v88, %v97
  %v100 = vadd.f32 %v89, %v97
  %v101 = vadd.f32 %v90, %v97
  %v102 = vadd.f32 %v91, %v97
  %v103 = vxor.u32 %v99, 2147483648
  %v104 = vxor.u32 %v100, 2147483648
  %v105 = vxor.u32 %v101, 2147483648
  %v106 = vxor.u32 %v102, 2147483648
  %v107 = vmul.f32 %v103, 1.442695
  %v108 = vpow.pop %v107
  %v109 = vmul.f32 %v104, 1.442695
  %v110 = vpow.pop %v109
  %v111 = vmul.f32 %v105, 1.442695
  %v112 = vpow.pop %v111
  %v113 = vmul.f32 %v106, 1.442695
  %v114 = vpow.pop %v113
  %v115 = vadd.f32 %v108, 1.0
  %v116 = vadd.f32 %v110, 1.0
  %v117 = vadd.f32 %v112, 1.0
  %v118 = vadd.f32 %v114, 1.0
  %v119 = vrcp.pop %v115
  %v120 = vmul.f32 1.0, %v119
  %v121 = vrcp.pop %v116
  %v122 = vmul.f32 1.0, %v121
  %v123 = vrcp.pop %v117
  %v124 = vmul.f32 1.0, %v123
  %v125 = vrcp.pop %v118
  %v126 = vmul.f32 1.0, %v125
  %v127 = vmul.f32 %v99, %v120
  %v128 = vmul.f32 %v100, %v122
  %v129 = vmul.f32 %v101, %v124
  %v130 = vmul.f32 %v102, %v126
  %v131 = vadd.f32 %v73, %v127
  %v132 = vadd.f32 %v74, %v128
  %v133 = vadd.f32 %v75, %v129
  %v134 = vadd.f32 %v76, %v130
  %135 = vst [vmem:[%s6] sm:$0xff] %v131
  %136 = vst [vmem:[%s6 + $0x8] sm:$0xff] %v132
  %137 = vst [vmem:[%s6 + $0x10] sm:$0xff] %v133
  %138 = vst [vmem:[%s6 + $0x18] sm:$0xff] %v134
  // Predicated region
  $region26: #{double_conv.5} parent=0 // pred_check
    _
  $region27: #{double_conv.5} parent=0 // pred_check_branch
    %140 = sbr.rel (0) target = $region29
  $region28: #{double_conv.5} parent=0 // pred_region
    _
  $region29: #{double_conv.5} parent=0 // pred_fallthru
    _
  // Predicated region
  $region30: #{double_conv.5} parent=0 // pred_check
    _
  $region31: #{double_conv.5} parent=0 // pred_check_branch
    %142 = sbr.rel (0) target = $region33
  $region32: #{double_conv.5} parent=0 // pred_region
    _
  $region33: #{double_conv.5} parent=0 // pred_fallthru
    _

</llo_original>
